<compile_context>
chip_gen: v7x
topology: tpu7x:2x2x1
jax: 0.10.0
libtpu: 0.0.40
codegen_flags: <defaults>
</compile_context>

<pallas_src>
import jax
import jax.numpy as jnp
from jax import lax
from jax.experimental import pallas as pl
from jax.experimental.pallas import tpu as pltpu

VMEM_SPEC = pl.BlockSpec(memory_space=pltpu.MemorySpace.VMEM)
_VMEM_LIMIT = 32 * 1024 * 1024


# ----------------------------------------------------------------------------
# Pallas kernels
# ----------------------------------------------------------------------------
def _conv_t_kernel(x_ref, w_ref, b_ref, o_ref):
    """o = relu(w @ x + b); channel-major (transposed) so lanes carry M."""
    y = jnp.dot(w_ref[...], x_ref[...], preferred_element_type=jnp.float32)
    y = jnp.maximum(y + b_ref[...], 0.0)
    o_ref[...] = y.astype(o_ref.dtype)


def conv_matmul_t(cols, w, b):
    """cols: (K, M_pad) bf16 with M_pad % 256 == 0; w: (cout, K) bf16; b: (cout,) f32.

    Returns relu(w @ cols + b) as (cout, M_pad) bf16.  Lane-dense output, 2-step
    grid over the lane (M) dim marked "parallel" (megacore sharding on v7x)."""
    k, m_pad = cols.shape
    cout = w.shape[0]
    lane_block = m_pad // 2                      # multiple of 128 by construction
    ce = pl.CostEstimate(
        flops=2 * k * m_pad * cout,
        transcendentals=0,
        bytes_accessed=int(cols.size * 2 + w.size * 2 + cout * 4 + cout * m_pad * 2),
    )
    return pl.pallas_call(
        _conv_t_kernel,
        out_shape=jax.ShapeDtypeStruct((cout, m_pad), jnp.bfloat16),
        grid=(m_pad // lane_block,),
        in_specs=[
            pl.BlockSpec((k, lane_block), lambda i: (0, i)),
            pl.BlockSpec((cout, k), lambda i: (0, 0)),
            pl.BlockSpec((cout, 1), lambda i: (0, 0)),
        ],
        out_specs=pl.BlockSpec((cout, lane_block), lambda i: (0, i)),
        compiler_params=pltpu.CompilerParams(
            dimension_semantics=("parallel",),
            vmem_limit_bytes=_VMEM_LIMIT),
        cost_estimate=ce,
    )(cols, w, b.reshape(cout, 1))


def _conv4_pool_mlp_kernel(stack_ref, w4_ref, b4_ref, w1_ref, b1_ref,
                           w2_ref, b2_ref, w3_ref, b3_ref, o_ref):
    """conv4 (per pool window) -> max over windows -> ReLU -> MLP -> log_softmax.

    stack_ref: (nw=4, n, 450); each slab is the im2col rows of one conv4 output
    position (which are exactly the final 2x2/2 pool windows when the conv4
    output map is 2x2)."""
    nw = stack_ref.shape[0]
    feat = None
    for j in range(nw):                                  # static unroll (4)
        yj = jnp.dot(stack_ref[j], w4_ref[...],
                     preferred_element_type=jnp.float32) + b4_ref[...]
        feat = yj if feat is None else jnp.maximum(feat, yj)
    feat = jnp.maximum(feat, 0.0)                        # pool then ReLU (ref order)
    h = jnp.dot(feat.astype(w1_ref.dtype), w1_ref[...],
                preferred_element_type=jnp.float32) + b1_ref[...]
    h = jnp.maximum(h, 0.0)
    h = jnp.dot(h.astype(w2_ref.dtype), w2_ref[...],
                preferred_element_type=jnp.float32) + b2_ref[...]
    h = jnp.maximum(h, 0.0)
    z = jnp.dot(h.astype(w3_ref.dtype), w3_ref[...],
                preferred_element_type=jnp.float32) + b3_ref[...]
    z = jnp.maximum(z, 0.0)                              # ReLU before log_softmax (spec)
    m = jnp.max(z, axis=-1, keepdims=True)
    lse = m + jnp.log(jnp.sum(jnp.exp(z - m), axis=-1, keepdims=True))
    o_ref[...] = z - lse


def fused_conv4_pool_mlp(stack, w4, b4, w1, b1, w2, b2, w3, b3):
    nw, n, k4 = stack.shape
    n_cls = w3.shape[1]
    flops = 2 * (nw * n * k4 * w4.shape[1]
                 + n * w1.shape[0] * w1.shape[1]
                 + n * w2.shape[0] * w2.shape[1]
                 + n * w3.shape[0] * w3.shape[1])
    in_bytes = sum(int(a.size) * a.dtype.itemsize
                   for a in (stack, w4, b4, w1, b1, w2, b2, w3, b3))
    ce = pl.CostEstimate(flops=flops, transcendentals=n * (n_cls + 1),
                         bytes_accessed=in_bytes + n * n_cls * 4)
    return pl.pallas_call(
        _conv4_pool_mlp_kernel,
        out_shape=jax.ShapeDtypeStruct((n, n_cls), jnp.float32),
        in_specs=[VMEM_SPEC] * 9,
        out_specs=VMEM_SPEC,
        compiler_params=pltpu.CompilerParams(vmem_limit_bytes=_VMEM_LIMIT),
        cost_estimate=ce,
    )(stack, w4, b4.reshape(1, -1), w1, b1.reshape(1, -1),
      w2, b2.reshape(1, -1), w3, b3.reshape(1, -1))


# ----------------------------------------------------------------------------
# Plain-JAX layout plumbing (channel-leading maxpool / im2col gathers)
# ----------------------------------------------------------------------------
def maxpool_cf(y, pk, ps):
    """Channel-leading max pool: y (c, n, h, w) -> (c, n, ph, pw); a few strided
    slices + jnp.maximum, which XLA fuses into the following gather."""
    c, n, h, w = y.shape
    ph, pw = (h - pk) // ps + 1, (w - pk) // ps + 1
    out = None
    for pi in range(pk):
        for pj in range(pk):
            blk = lax.slice(y, (0, 0, pi, pj),
                            (c, n, pi + ps * (ph - 1) + 1, pj + ps * (pw - 1) + 1),
                            (1, 1, ps, ps))
            out = blk if out is None else jnp.maximum(out, blk)
    return out


def im2col_cf(y, ck):
    """Channel-leading transposed im2col: y (c, n, h, w) -> (ck*ck*c, n*oh*ow).

    Row order (kh, kw, cin) matches w.reshape(kh*kw*cin, cout); column order is
    (n, oh, ow)."""
    c, n, h, w = y.shape
    oh, ow = h - ck + 1, w - ck + 1
    rows = [y[:, :, ci:ci + oh, cj:cj + ow].reshape(c, n * oh * ow)
            for ci in range(ck) for cj in range(ck)]
    return jnp.concatenate(rows, axis=0), (n, oh, ow)


def conv4_pool_stack(p2, ck):
    """Build the (oh*ow, n, ck*ck*c) window-major im2col stack for the fused
    conv4 + final-pool kernel from the channel-leading map p2 (c, n, h, w)."""
    c, n, h, w = p2.shape
    oh, ow = h - ck + 1, w - ck + 1
    blocks = []
    for kh in range(ck):
        for kw in range(ck):
            slab = p2[:, :, kh:kh + oh, kw:kw + ow]          # (c, n, oh, ow)
            slab = jnp.transpose(slab, (2, 3, 1, 0))         # (oh, ow, n, c)
            blocks.append(slab.reshape(oh * ow, n, c))
    return jnp.concatenate(blocks, axis=-1), (oh, ow)        # (oh*ow, n, ck*ck*c)


def pad_lanes(x, mult):
    """Zero-pad the last (lane) dim up to a multiple of `mult`."""
    m = x.shape[-1]
    m_pad = ((m + mult - 1) // mult) * mult
    if m_pad == m:
        return x, m
    pad = [(0, 0)] * (x.ndim - 1) + [(0, m_pad - m)]
    return jnp.pad(x, pad), m


# ----------------------------------------------------------------------------
# Parameter setup with conv1 / BatchNorm folding
# ----------------------------------------------------------------------------
def init_params(key, image_size):
    nodes = ((((image_size - 2) // 2 - 2) // 2 - 2) // 2) ** 2 * 250
    ki = iter(jax.random.split(key, 26))

    def conv_w(k, cin, cout):
        fan_in = k * k * cin
        return jax.random.normal(next(ki), (k, k, cin, cout),
                                 jnp.float32) / jnp.sqrt(fan_in)

    def vec(c, s=0.01):
        return s * jax.random.normal(next(ki), (c,), jnp.float32)

    def bn(c, eps=1e-5):
        gamma = 1.0 + 0.1 * jax.random.normal(next(ki), (c,), jnp.float32)
        beta = 0.1 * jax.random.normal(next(ki), (c,), jnp.float32)
        mean = 0.1 * jax.random.normal(next(ki), (c,), jnp.float32)
        var = jax.random.uniform(next(ki), (c,), jnp.float32, minval=0.5, maxval=1.5)
        scale = gamma / jnp.sqrt(var + eps)
        shift = beta - mean * scale
        return scale, shift

    def lin(i, o):
        w = jax.random.normal(next(ki), (i, o), jnp.float32) / jnp.sqrt(i)
        b = 0.01 * jax.random.normal(next(ki), (o,), jnp.float32)
        return w, b

    # Raw parameters.
    w1, b1 = conv_w(1, 3, 1), vec(1)          # Conv2d(3, 1, 1x1)  (folded below)
    w2, b2 = conv_w(3, 1, 10), vec(10)        # Conv2d(1, 10, 3x3)
    s2, t2 = bn(10)
    w3, b3 = conv_w(3, 10, 50), vec(50)
    s3, t3 = bn(50)
    w4, b4 = conv_w(3, 50, 250), vec(250)
    s4, t4 = bn(250)
    wl1, bl1 = lin(nodes, 1000)
    wl2, bl2 = lin(1000, 150)
    wl3, bl3 = lin(150, 2)

    # Fold the purely-linear 1x1 conv1 into conv2 (no nonlinearity in between):
    #   w2'[kh,kw,ci,co] = w2[kh,kw,0,co] * w1[0,0,ci,0]
    #   b2'             = b2 + b1 * sum_{kh,kw} w2[kh,kw,0,:]
    w2f = w2[:, :, 0, None, :] * w1[0, 0, :, 0][None, None, :, None]  # (3,3,3,10)
    b2f = b2 + b1[0] * jnp.sum(w2[:, :, 0, :], axis=(0, 1))

    # Fold eval-mode BatchNorm (per-output-channel scale/shift) into conv params.
    def fold_bn(w, b, scale, shift):
        return w * scale, b * scale + shift

    w2f, b2f = fold_bn(w2f, b2f, s2, t2)
    w3f, b3f = fold_bn(w3, b3, s3, t3)
    w4f, b4f = fold_bn(w4, b4, s4, t4)

    return {
        # Conv weights in bf16 (f32 accumulation in-kernel), biases in f32.
        "w_c2_t": w2f.reshape(-1, 10).T.astype(jnp.bfloat16),   # (10, 27)
        "b_c2": b2f,
        "w_c3_t": w3f.reshape(-1, 50).T.astype(jnp.bfloat16),   # (50, 90)
        "b_c3": b3f,
        "w_c4": w4f.reshape(-1, 250).astype(jnp.bfloat16),      # (450, 250)
        "b_c4": b4f,
        "w_l1": wl1.astype(jnp.bfloat16), "b_l1": bl1,
        "w_l2": wl2.astype(jnp.bfloat16), "b_l2": bl2,
        "w_l3": wl3.astype(jnp.bfloat16), "b_l3": bl3,
    }


# ----------------------------------------------------------------------------
# Forward pass (3 pallas_calls)
# ----------------------------------------------------------------------------
def custom_net_forward(x_nchw, p):
    n = x_nchw.shape[0]
    # Channel-leading layout (c, n, h, w); bf16 activations throughout.
    x = jnp.transpose(x_nchw.astype(jnp.bfloat16), (1, 0, 2, 3))

    # A: conv2' (conv1 + BN2 folded) + ReLU, transposed / lane-dense.
    colsA, (_, ohA, owA) = im2col_cf(x, 3)                     # (27, n*22*22)
    colsA, mA = pad_lanes(colsA, 256)
    yA = conv_matmul_t(colsA, p["w_c2_t"], p["b_c2"])          # (10, MA_pad) bf16
    yA = yA[:, :mA].reshape(yA.shape[0], n, ohA, owA)          # (10, n, 22, 22)

    # B: maxpool(2x2/2) in XLA (fuses into the gather), then conv3(+BN3)+ReLU.
    p1 = maxpool_cf(yA, 2, 2)                                  # (10, n, 11, 11)
    colsB, (_, ohB, owB) = im2col_cf(p1, 3)                    # (90, n*81)
    colsB, mB = pad_lanes(colsB, 256)
    yB = conv_matmul_t(colsB, p["w_c3_t"], p["b_c3"])          # (50, MB_pad) bf16
    yB = yB[:, :mB].reshape(yB.shape[0], n, ohB, owB)          # (50, n, 9, 9)

    # C+D fused: maxpool(3x3/2) in XLA, then conv4(+BN4) + final 2x2/2 pool
    # + ReLU + NCHW flatten (trivial at 1x1) + MLP head + log_softmax in-kernel.
    p2 = maxpool_cf(yB, 3, 2)                                  # (50, n, 4, 4)
    stack, (oh4, ow4) = conv4_pool_stack(p2, 3)                # (4, n, 450)
    assert (oh4, ow4) == (2, 2), "fused C+D path requires a 2x2 pre-pool map"
    assert p["w_l1"].shape[0] == p["w_c4"].shape[1], (p["w_l1"].shape,)
    return fused_conv4_pool_mlp(stack, p["w_c4"], p["b_c4"],
                                p["w_l1"], p["b_l1"],
                                p["w_l2"], p["b_l2"],
                                p["w_l3"], p["b_l3"])


if __name__ == "__main__":
    IMAGE_SIZE = 24          # -> final feature map 1x1x250, nodes = 250
    key = jax.random.PRNGKey(0)
    pkey, xkey = jax.random.split(key)
    params = init_params(pkey, IMAGE_SIZE)
    x = jax.random.normal(xkey, (2, 3, IMAGE_SIZE, IMAGE_SIZE), jnp.float32)

    forward = jax.jit(custom_net_forward)
    out = jax.block_until_ready(forward(x, params))

    assert out.shape == (2, 2) and out.dtype == jnp.float32
    # log_softmax rows must exponentiate to ~1
    assert bool(jnp.all(jnp.abs(jnp.sum(jnp.exp(out), axis=1) - 1.0) < 1e-4))
    print("KERNEL_OK")
</pallas_src>

<mosaic_0001>
module attributes {stable_mosaic.version = 11 : i64} {
  func.func @_conv_t_kernel(%arg0: i32, %arg1: memref<27x512xbf16, #tpu.memory_space<vmem>>, %arg2: memref<10x27xbf16, #tpu.memory_space<vmem>>, %arg3: memref<10x1xf32, #tpu.memory_space<vmem>>, %arg4: memref<10x512xbf16, #tpu.memory_space<vmem>>) attributes {dimension_semantics = [#tpu.dimension_semantics<parallel>], iteration_bounds = array<i64: 2>, scalar_prefetch = 0 : i64, scratch_operands = 0 : i64, tpu.core_type = #tpu.core_type<tc>, window_params = [{transform_indices = @transform_0, window_bounds = array<i64: 27, 512>}, {pipeline_mode = #tpu.pipeline_mode<synchronous>, transform_indices = @transform_1, window_bounds = array<i64: 10, 27>}, {pipeline_mode = #tpu.pipeline_mode<synchronous>, transform_indices = @transform_2, window_bounds = array<i64: 10, 1>}, {transform_indices = @transform_3, window_bounds = array<i64: 10, 512>}]} {
    %c0 = arith.constant 0 : index
    %c0_0 = arith.constant 0 : index
    %0 = vector.load %arg2[%c0, %c0_0] : memref<10x27xbf16, #tpu.memory_space<vmem>>, vector<10x27xbf16>
    %c0_1 = arith.constant 0 : index
    %c0_2 = arith.constant 0 : index
    %1 = vector.load %arg1[%c0_1, %c0_2] : memref<27x512xbf16, #tpu.memory_space<vmem>>, vector<27x512xbf16>
    %cst = arith.constant dense<0.000000e+00> : vector<10x512xf32>
    %2 = tpu.matmul %0, %1, %cst {dimension_numbers = #tpu.dot_dimension_numbers<[1], [0], [0], [1], [0, 0, 1, 1], [], []>} : vector<10x27xbf16>, vector<27x512xbf16>, vector<10x512xf32> -> vector<10x512xf32>
    %c0_3 = arith.constant 0 : index
    %c0_4 = arith.constant 0 : index
    %3 = vector.load %arg3[%c0_3, %c0_4] : memref<10x1xf32, #tpu.memory_space<vmem>>, vector<10x1xf32>
    %4 = vector.broadcast %3 : vector<10x1xf32> to vector<10x512xf32>
    %5 = arith.addf %2, %4 : vector<10x512xf32>
    %cst_5 = arith.constant 0.000000e+00 : f32
    %6 = vector.broadcast %cst_5 : f32 to vector<10x512xf32>
    %7 = arith.maximumf %5, %6 : vector<10x512xf32>
    %8 = arith.truncf %7 : vector<10x512xf32> to vector<10x512xbf16>
    %c0_6 = arith.constant 0 : index
    %c0_7 = arith.constant 0 : index
    %9 = vector.load %arg4[%c0_6, %c0_7] : memref<10x512xbf16, #tpu.memory_space<vmem>>, vector<10x512xbf16>
    tpu.vector_store %arg4[%c0_6, %c0_7], %8 {strides = array<i32>} : memref<10x512xbf16, #tpu.memory_space<vmem>>, vector<10x512xbf16>,
    return
  }
  func.func @transform_0(%arg0: i32) -> (i32, i32) {
    %c0_i32 = arith.constant 0 : i32
    %c0_i32_0 = arith.constant 0 : i32
    return %c0_i32, %arg0 : i32, i32
  }
  func.func @transform_1(%arg0: i32) -> (i32, i32) {
    %c0_i32 = arith.constant 0 : i32
    %c0_i32_0 = arith.constant 0 : i32
    %c0_i32_1 = arith.constant 0 : i32
    return %c0_i32, %c0_i32_0 : i32, i32
  }
  func.func @transform_2(%arg0: i32) -> (i32, i32) {
    %c0_i32 = arith.constant 0 : i32
    %c0_i32_0 = arith.constant 0 : i32
    %c0_i32_1 = arith.constant 0 : i32
    return %c0_i32, %c0_i32_0 : i32, i32
  }
  func.func @transform_3(%arg0: i32) -> (i32, i32) {
    %c0_i32 = arith.constant 0 : i32
    %c0_i32_0 = arith.constant 0 : i32
    return %c0_i32, %arg0 : i32, i32
  }
}

module attributes {stable_mosaic.version = 11 : i64} {
  func.func @_conv_t_kernel(%arg0: i32, %arg1: memref<90x128xbf16, #tpu.memory_space<vmem>>, %arg2: memref<50x90xbf16, #tpu.memory_space<vmem>>, %arg3: memref<50x1xf32, #tpu.memory_space<vmem>>, %arg4: memref<50x128xbf16, #tpu.memory_space<vmem>>) attributes {dimension_semantics = [#tpu.dimension_semantics<parallel>], iteration_bounds = array<i64: 2>, scalar_prefetch = 0 : i64, scratch_operands = 0 : i64, tpu.core_type = #tpu.core_type<tc>, window_params = [{transform_indices = @transform_0, window_bounds = array<i64: 90, 128>}, {pipeline_mode = #tpu.pipeline_mode<synchronous>, transform_indices = @transform_1, window_bounds = array<i64: 50, 90>}, {pipeline_mode = #tpu.pipeline_mode<synchronous>, transform_indices = @transform_2, window_bounds = array<i64: 50, 1>}, {transform_indices = @transform_3, window_bounds = array<i64: 50, 128>}]} {
    %c0 = arith.constant 0 : index
    %c0_0 = arith.constant 0 : index
    %0 = vector.load %arg2[%c0, %c0_0] : memref<50x90xbf16, #tpu.memory_space<vmem>>, vector<50x90xbf16>
    %c0_1 = arith.constant 0 : index
    %c0_2 = arith.constant 0 : index
    %1 = vector.load %arg1[%c0_1, %c0_2] : memref<90x128xbf16, #tpu.memory_space<vmem>>, vector<90x128xbf16>
    %cst = arith.constant dense<0.000000e+00> : vector<50x128xf32>
    %2 = tpu.matmul %0, %1, %cst {dimension_numbers = #tpu.dot_dimension_numbers<[1], [0], [0], [1], [0, 0, 1, 1], [], []>} : vector<50x90xbf16>, vector<90x128xbf16>, vector<50x128xf32> -> vector<50x128xf32>
    %c0_3 = arith.constant 0 : index
    %c0_4 = arith.constant 0 : index
    %3 = vector.load %arg3[%c0_3, %c0_4] : memref<50x1xf32, #tpu.memory_space<vmem>>, vector<50x1xf32>
    %4 = vector.broadcast %3 : vector<50x1xf32> to vector<50x128xf32>
    %5 = arith.addf %2, %4 : vector<50x128xf32>
    %cst_5 = arith.constant 0.000000e+00 : f32
    %6 = vector.broadcast %cst_5 : f32 to vector<50x128xf32>
    %7 = arith.maximumf %5, %6 : vector<50x128xf32>
    %8 = arith.truncf %7 : vector<50x128xf32> to vector<50x128xbf16>
    %c0_6 = arith.constant 0 : index
    %c0_7 = arith.constant 0 : index
    %9 = vector.load %arg4[%c0_6, %c0_7] : memref<50x128xbf16, #tpu.memory_space<vmem>>, vector<50x128xbf16>
    tpu.vector_store %arg4[%c0_6, %c0_7], %8 {strides = array<i32>} : memref<50x128xbf16, #tpu.memory_space<vmem>>, vector<50x128xbf16>,
    return
  }
  func.func @transform_0(%arg0: i32) -> (i32, i32) {
    %c0_i32 = arith.constant 0 : i32
    %c0_i32_0 = arith.constant 0 : i32
    return %c0_i32, %arg0 : i32, i32
  }
  func.func @transform_1(%arg0: i32) -> (i32, i32) {
    %c0_i32 = arith.constant 0 : i32
    %c0_i32_0 = arith.constant 0 : i32
    %c0_i32_1 = arith.constant 0 : i32
    return %c0_i32, %c0_i32_0 : i32, i32
  }
  func.func @transform_2(%arg0: i32) -> (i32, i32) {
    %c0_i32 = arith.constant 0 : i32
    %c0_i32_0 = arith.constant 0 : i32
    %c0_i32_1 = arith.constant 0 : i32
    return %c0_i32, %c0_i32_0 : i32, i32
  }
  func.func @transform_3(%arg0: i32) -> (i32, i32) {
    %c0_i32 = arith.constant 0 : i32
    %c0_i32_0 = arith.constant 0 : i32
    return %c0_i32, %arg0 : i32, i32
  }
}

module attributes {stable_mosaic.version = 11 : i64} {
  func.func @_conv4_pool_mlp_kernel(%arg0: memref<4x2x450xbf16, #tpu.memory_space<vmem>>, %arg1: memref<450x250xbf16, #tpu.memory_space<vmem>>, %arg2: memref<1x250xf32, #tpu.memory_space<vmem>>, %arg3: memref<250x1000xbf16, #tpu.memory_space<vmem>>, %arg4: memref<1x1000xf32, #tpu.memory_space<vmem>>, %arg5: memref<1000x150xbf16, #tpu.memory_space<vmem>>, %arg6: memref<1x150xf32, #tpu.memory_space<vmem>>, %arg7: memref<150x2xbf16, #tpu.memory_space<vmem>>, %arg8: memref<1x2xf32, #tpu.memory_space<vmem>>, %arg9: memref<2x2xf32, #tpu.memory_space<vmem>>) attributes {dimension_semantics = [], scalar_prefetch = 0 : i64, scratch_operands = 0 : i64, tpu.core_type = #tpu.core_type<tc>} {
    %c0 = arith.constant 0 : index
    %c0_0 = arith.constant 0 : index
    %c0_1 = arith.constant 0 : index
    %0 = vector.load %arg0[%c0, %c0_0, %c0_1] : memref<4x2x450xbf16, #tpu.memory_space<vmem>>, vector<1x2x450xbf16>
    %1 = vector.shape_cast %0 : vector<1x2x450xbf16> to vector<2x450xbf16>
    %c0_2 = arith.constant 0 : index
    %c0_3 = arith.constant 0 : index
    %2 = vector.load %arg1[%c0_2, %c0_3] : memref<450x250xbf16, #tpu.memory_space<vmem>>, vector<450x250xbf16>
    %cst = arith.constant dense<0.000000e+00> : vector<2x250xf32>
    %3 = tpu.matmul %1, %2, %cst {dimension_numbers = #tpu.dot_dimension_numbers<[1], [0], [0], [1], [0, 0, 1, 1], [], []>} : vector<2x450xbf16>, vector<450x250xbf16>, vector<2x250xf32> -> vector<2x250xf32>
    %c0_4 = arith.constant 0 : index
    %c0_5 = arith.constant 0 : index
    %4 = vector.load %arg2[%c0_4, %c0_5] : memref<1x250xf32, #tpu.memory_space<vmem>>, vector<1x250xf32>
    %5 = vector.broadcast %4 : vector<1x250xf32> to vector<2x250xf32>
    %6 = arith.addf %3, %5 : vector<2x250xf32>
    %c1 = arith.constant 1 : index
    %c0_6 = arith.constant 0 : index
    %c0_7 = arith.constant 0 : index
    %7 = vector.load %arg0[%c1, %c0_6, %c0_7] : memref<4x2x450xbf16, #tpu.memory_space<vmem>>, vector<1x2x450xbf16>
    %8 = vector.shape_cast %7 : vector<1x2x450xbf16> to vector<2x450xbf16>
    %c0_8 = arith.constant 0 : index
    %c0_9 = arith.constant 0 : index
    %9 = vector.load %arg1[%c0_8, %c0_9] : memref<450x250xbf16, #tpu.memory_space<vmem>>, vector<450x250xbf16>
    %cst_10 = arith.constant dense<0.000000e+00> : vector<2x250xf32>
    %10 = tpu.matmul %8, %9, %cst_10 {dimension_numbers = #tpu.dot_dimension_numbers<[1], [0], [0], [1], [0, 0, 1, 1], [], []>} : vector<2x450xbf16>, vector<450x250xbf16>, vector<2x250xf32> -> vector<2x250xf32>
    %c0_11 = arith.constant 0 : index
    %c0_12 = arith.constant 0 : index
    %11 = vector.load %arg2[%c0_11, %c0_12] : memref<1x250xf32, #tpu.memory_space<vmem>>, vector<1x250xf32>
    %12 = vector.broadcast %11 : vector<1x250xf32> to vector<2x250xf32>
    %13 = arith.addf %10, %12 : vector<2x250xf32>
    %14 = arith.maximumf %6, %13 : vector<2x250xf32>
    %c2 = arith.constant 2 : index
    %c0_13 = arith.constant 0 : index
    %c0_14 = arith.constant 0 : index
    %15 = vector.load %arg0[%c2, %c0_13, %c0_14] : memref<4x2x450xbf16, #tpu.memory_space<vmem>>, vector<1x2x450xbf16>
    %16 = vector.shape_cast %15 : vector<1x2x450xbf16> to vector<2x450xbf16>
    %c0_15 = arith.constant 0 : index
    %c0_16 = arith.constant 0 : index
    %17 = vector.load %arg1[%c0_15, %c0_16] : memref<450x250xbf16, #tpu.memory_space<vmem>>, vector<450x250xbf16>
    %cst_17 = arith.constant dense<0.000000e+00> : vector<2x250xf32>
    %18 = tpu.matmul %16, %17, %cst_17 {dimension_numbers = #tpu.dot_dimension_numbers<[1], [0], [0], [1], [0, 0, 1, 1], [], []>} : vector<2x450xbf16>, vector<450x250xbf16>, vector<2x250xf32> -> vector<2x250xf32>
    %c0_18 = arith.constant 0 : index
    %c0_19 = arith.constant 0 : index
    %19 = vector.load %arg2[%c0_18, %c0_19] : memref<1x250xf32, #tpu.memory_space<vmem>>, vector<1x250xf32>
    %20 = vector.broadcast %19 : vector<1x250xf32> to vector<2x250xf32>
    %21 = arith.addf %18, %20 : vector<2x250xf32>
    %22 = arith.maximumf %14, %21 : vector<2x250xf32>
    %c3 = arith.constant 3 : index
    %c0_20 = arith.constant 0 : index
    %c0_21 = arith.constant 0 : index
    %23 = vector.load %arg0[%c3, %c0_20, %c0_21] : memref<4x2x450xbf16, #tpu.memory_space<vmem>>, vector<1x2x450xbf16>
    %24 = vector.shape_cast %23 : vector<1x2x450xbf16> to vector<2x450xbf16>
    %c0_22 = arith.constant 0 : index
    %c0_23 = arith.constant 0 : index
    %25 = vector.load %arg1[%c0_22, %c0_23] : memref<450x250xbf16, #tpu.memory_space<vmem>>, vector<450x250xbf16>
    %cst_24 = arith.constant dense<0.000000e+00> : vector<2x250xf32>
    %26 = tpu.matmul %24, %25, %cst_24 {dimension_numbers = #tpu.dot_dimension_numbers<[1], [0], [0], [1], [0, 0, 1, 1], [], []>} : vector<2x450xbf16>, vector<450x250xbf16>, vector<2x250xf32> -> vector<2x250xf32>
    %c0_25 = arith.constant 0 : index
    %c0_26 = arith.constant 0 : index
    %27 = vector.load %arg2[%c0_25, %c0_26] : memref<1x250xf32, #tpu.memory_space<vmem>>, vector<1x250xf32>
    %28 = vector.broadcast %27 : vector<1x250xf32> to vector<2x250xf32>
    %29 = arith.addf %26, %28 : vector<2x250xf32>
    %30 = arith.maximumf %22, %29 : vector<2x250xf32>
    %cst_27 = arith.constant 0.000000e+00 : f32
    %31 = vector.broadcast %cst_27 : f32 to vector<2x250xf32>
    %32 = arith.maximumf %30, %31 : vector<2x250xf32>
    %33 = arith.truncf %32 : vector<2x250xf32> to vector<2x250xbf16>
    %c0_28 = arith.constant 0 : index
    %c0_29 = arith.constant 0 : index
    %34 = vector.load %arg3[%c0_28, %c0_29] : memref<250x1000xbf16, #tpu.memory_space<vmem>>, vector<250x1000xbf16>
    %cst_30 = arith.constant dense<0.000000e+00> : vector<2x1000xf32>
    %35 = tpu.matmul %33, %34, %cst_30 {dimension_numbers = #tpu.dot_dimension_numbers<[1], [0], [0], [1], [0, 0, 1, 1], [], []>} : vector<2x250xbf16>, vector<250x1000xbf16>, vector<2x1000xf32> -> vector<2x1000xf32>
    %c0_31 = arith.constant 0 : index
    %c0_32 = arith.constant 0 : index
    %36 = vector.load %arg4[%c0_31, %c0_32] : memref<1x1000xf32, #tpu.memory_space<vmem>>, vector<1x1000xf32>
    %37 = vector.broadcast %36 : vector<1x1000xf32> to vector<2x1000xf32>
    %38 = arith.addf %35, %37 : vector<2x1000xf32>
    %cst_33 = arith.constant 0.000000e+00 : f32
    %39 = vector.broadcast %cst_33 : f32 to vector<2x1000xf32>
    %40 = arith.maximumf %38, %39 : vector<2x1000xf32>
    %41 = arith.truncf %40 : vector<2x1000xf32> to vector<2x1000xbf16>
    %c0_34 = arith.constant 0 : index
    %c0_35 = arith.constant 0 : index
    %42 = vector.load %arg5[%c0_34, %c0_35] : memref<1000x150xbf16, #tpu.memory_space<vmem>>, vector<1000x150xbf16>
    %cst_36 = arith.constant dense<0.000000e+00> : vector<2x150xf32>
    %43 = tpu.matmul %41, %42, %cst_36 {dimension_numbers = #tpu.dot_dimension_numbers<[1], [0], [0], [1], [0, 0, 1, 1], [], []>} : vector<2x1000xbf16>, vector<1000x150xbf16>, vector<2x150xf32> -> vector<2x150xf32>
    %c0_37 = arith.constant 0 : index
    %c0_38 = arith.constant 0 : index
    %44 = vector.load %arg6[%c0_37, %c0_38] : memref<1x150xf32, #tpu.memory_space<vmem>>, vector<1x150xf32>
    %45 = vector.broadcast %44 : vector<1x150xf32> to vector<2x150xf32>
    %46 = arith.addf %43, %45 : vector<2x150xf32>
    %cst_39 = arith.constant 0.000000e+00 : f32
    %47 = vector.broadcast %cst_39 : f32 to vector<2x150xf32>
    %48 = arith.maximumf %46, %47 : vector<2x150xf32>
    %49 = arith.truncf %48 : vector<2x150xf32> to vector<2x150xbf16>
    %c0_40 = arith.constant 0 : index
    %c0_41 = arith.constant 0 : index
    %50 = vector.load %arg7[%c0_40, %c0_41] : memref<150x2xbf16, #tpu.memory_space<vmem>>, vector<150x2xbf16>
    %cst_42 = arith.constant dense<0.000000e+00> : vector<2x2xf32>
    %51 = tpu.matmul %49, %50, %cst_42 {dimension_numbers = #tpu.dot_dimension_numbers<[1], [0], [0], [1], [0, 0, 1, 1], [], []>} : vector<2x150xbf16>, vector<150x2xbf16>, vector<2x2xf32> -> vector<2x2xf32>
    %c0_43 = arith.constant 0 : index
    %c0_44 = arith.constant 0 : index
    %52 = vector.load %arg8[%c0_43, %c0_44] : memref<1x2xf32, #tpu.memory_space<vmem>>, vector<1x2xf32>
    %53 = vector.broadcast %52 : vector<1x2xf32> to vector<2x2xf32>
    %54 = arith.addf %51, %53 : vector<2x2xf32>
    %cst_45 = arith.constant 0.000000e+00 : f32
    %55 = vector.broadcast %cst_45 : f32 to vector<2x2xf32>
    %56 = arith.maximumf %54, %55 : vector<2x2xf32>
    %cst_46 = arith.constant dense<0xFF800000> : vector<2xf32>
    %57 = vector.multi_reduction <maximumf>, %56, %cst_46 [1] : vector<2x2xf32> to vector<2xf32>
    %58 = vector.shape_cast %57 : vector<2xf32> to vector<2x1xf32>
    %59 = vector.broadcast %58 : vector<2x1xf32> to vector<2x2xf32>
    %60 = arith.subf %56, %59 : vector<2x2xf32>
    %61 = math.exp %60 : vector<2x2xf32>
    %cst_47 = arith.constant dense<0.000000e+00> : vector<2xf32>
    %62 = vector.multi_reduction <add>, %61, %cst_47 [1] : vector<2x2xf32> to vector<2xf32>
    %63 = vector.shape_cast %62 : vector<2xf32> to vector<2x1xf32>
    %64 = math.log %63 : vector<2x1xf32>
    %65 = arith.addf %58, %64 : vector<2x1xf32>
    %66 = vector.broadcast %65 : vector<2x1xf32> to vector<2x2xf32>
    %67 = arith.subf %56, %66 : vector<2x2xf32>
    %c0_48 = arith.constant 0 : index
    %c0_49 = arith.constant 0 : index
    %68 = vector.load %arg9[%c0_48, %c0_49] : memref<2x2xf32, #tpu.memory_space<vmem>>, vector<2x2xf32>
    tpu.vector_store %arg9[%c0_48, %c0_49], %67 {strides = array<i32>} : memref<2x2xf32, #tpu.memory_space<vmem>>, vector<2x2xf32>,
    return
  }
}

</mosaic_0001>

<llo_original>
// kernel: custom_net_forward.3
$region0: #{custom_net_forward.3}
  #allocation0 [shape = 'u32[]', space=smem, size = 0x4, offset = 0x4, fixed_abs, tag = 'smem constant byte address 0x4 - core index']
  #allocation1 [shape = 'u32[144,128]{1,0:T(1,128)}', space=vmem, size = 0x12000, scoped, tag = 'internal scratch']
  %s0 = inlined_call_operand.vmem [shape: bf16[27,1024], index: 0, kind: input, shape index: {}]
  %s1 = inlined_call_operand.vmem [shape: bf16[10,27], index: 1, kind: input, shape index: {}]
  %s2 = inlined_call_operand.vmem [shape: f32[10,1], index: 2, kind: input, shape index: {}]
  %s3 = inlined_call_operand.vmem [shape: bf16[10,1024], index: 3, kind: output, shape index: {}]
  %s4 = sld [smem:[#allocation0]]
  $region87: #{custom_net_forward.3} parent=0
    _
  %s6 = ssub.s32 1, %s4
  %s7 = scalar_select 0, %s6, %s4
  $region1: #{custom_net_forward.3} parent=0
    #allocation2 [shape = 'u8[65536]{0}', space=vmem, size = 0x10000, scoped, tag = 'input window, operand 0']
    #allocation3 [shape = 'u8[32768]{0}', space=vmem, size = 0x8000, scoped, tag = 'output window, operand 0']
    loop: start=0, step=1, limit=4
    $region2: #{custom_net_forward.3} parent=1 // loop_pre_header
      _
    $region3: #{custom_net_forward.3} parent=1 // loop_header
      %s9 = sphi 0, %s13
      %p10 = scmp.ge.s32.totalorder %s9, 4
      %s19 = sphi 0, %s21
      %s22 = sphi 0, %s19
      %s23 = sphi 0, %s22
      %s39 = sphi 0, %s23
      %s43 = sphi 0, %s43
      %s45 = sphi 0, %s43
      %s46 = sphi 0, %s45
      %s60 = sphi 0, %s46
      %s64 = sphi 0, %s64
      %s66 = sphi 0, %s64
      %s67 = sphi 0, %s66
      %s81 = sphi 0, %s67
      %s87 = sphi 0, %s89
      %s90 = sphi 0, %s87
      %s91 = sphi 0, %s90
      %s107 = sphi 0, %s91
    $region4: #{custom_net_forward.3} parent=1 // loop_header_branch
      %12 = sbr.rel (%p10) target = $region8
    $region5: #{custom_net_forward.3} parent=1 // loop_body
      %s14 = ssub.s32 %s9, 1
      %s15 = ssub.s32 %s9, 2
      %s16 = sadd.s32 %s9, 1
      %s17 = ssub.s32 %s9, %s16
      %p18 = scmp.eq.s32.totalorder %s17, 0
      %s20 = sadd.s32 %s19, 1
      %s21 = scalar_select %p18, %s19, %s20
      %p24 = pneg %p18
      %p25 = scmp.eq.s32.totalorder %s9, 1
      %p26 = por %p24, %p25
      %p27 = scmp.ne.s32.totalorder %s19, %s22
      %p28 = scmp.eq.s32.totalorder %s9, 0
      %p29 = por %p27, %p28
      %p30 = scmp.ne.s32.totalorder %s19, %s22
      %p31 = scmp.eq.s32.totalorder %s14, 1
      %p32 = por %p30, %p31
      %p33 = scmp.ne.s32.totalorder %s22, %s23
      %p34 = scmp.eq.s32.totalorder %s14, 0
      %p35 = por %p33, %p34
      %p36 = scmp.ne.s32.totalorder %s22, %s23
      %p37 = scmp.eq.s32.totalorder %s15, 1
      %p38 = por %p36, %p37
      %p40 = scmp.ne.s32.totalorder %s23, %s39
      %p41 = scmp.eq.s32.totalorder %s15, 0
      %p42 = por %p40, %p41
      %s44 = sadd.s32 %s43, 1
      %p47 = scmp.eq.s32.totalorder %s9, 1
      %p48 = scmp.ne.s32.totalorder %s43, %s45
      %p49 = scmp.eq.s32.totalorder %s9, 0
      %p50 = por %p48, %p49
      %p51 = scmp.ne.s32.totalorder %s43, %s45
      %p52 = scmp.eq.s32.totalorder %s14, 1
      %p53 = por %p51, %p52
      %p54 = scmp.ne.s32.totalorder %s45, %s46
      %p55 = scmp.eq.s32.totalorder %s14, 0
      %p56 = por %p54, %p55
      %p57 = scmp.ne.s32.totalorder %s45, %s46
      %p58 = scmp.eq.s32.totalorder %s15, 1
      %p59 = por %p57, %p58
      %p61 = scmp.ne.s32.totalorder %s46, %s60
      %p62 = scmp.eq.s32.totalorder %s15, 0
      %p63 = por %p61, %p62
      %s65 = sadd.s32 %s64, 1
      %p68 = scmp.eq.s32.totalorder %s9, 1
      %p69 = scmp.ne.s32.totalorder %s64, %s66
      %p70 = scmp.eq.s32.totalorder %s9, 0
      %p71 = por %p69, %p70
      %p72 = scmp.ne.s32.totalorder %s64, %s66
      %p73 = scmp.eq.s32.totalorder %s14, 1
      %p74 = por %p72, %p73
      %p75 = scmp.ne.s32.totalorder %s66, %s67
      %p76 = scmp.eq.s32.totalorder %s14, 0
      %p77 = por %p75, %p76
      %p78 = scmp.ne.s32.totalorder %s66, %s67
      %p79 = scmp.eq.s32.totalorder %s15, 1
      %p80 = por %p78, %p79
      %p82 = scmp.ne.s32.totalorder %s67, %s81
      %p83 = scmp.eq.s32.totalorder %s15, 0
      %p84 = por %p82, %p83
      %s85 = ssub.s32 %s9, %s16
      %p86 = scmp.eq.s32.totalorder %s85, 0
      %s88 = sadd.s32 %s87, 1
      %s89 = scalar_select %p86, %s87, %s88
      %p92 = pneg %p86
      %p93 = scmp.eq.s32.totalorder %s9, 1
      %p94 = por %p92, %p93
      %p95 = scmp.ne.s32.totalorder %s87, %s90
      %p96 = scmp.eq.s32.totalorder %s9, 0
      %p97 = por %p95, %p96
      %p98 = scmp.ne.s32.totalorder %s87, %s90
      %p99 = scmp.eq.s32.totalorder %s14, 1
      %p100 = por %p98, %p99
      %p101 = scmp.ne.s32.totalorder %s90, %s91
      %p102 = scmp.eq.s32.totalorder %s14, 0
      %p103 = por %p101, %p102
      %p104 = scmp.ne.s32.totalorder %s90, %s91
      %p105 = scmp.eq.s32.totalorder %s15, 1
      %p106 = por %p104, %p105
      %p108 = scmp.ne.s32.totalorder %s91, %s107
      %p109 = scmp.eq.s32.totalorder %s15, 0
      %p110 = por %p108, %p109
      %p111 = scmp.le.s32.totalorder 1, %s9
      %p112 = scmp.lt.s32.totalorder %s9, 3
      %p113 = pnand %p111, %p112
      %p114 = pneg %p113
      // Predicated region
      $region9: #{custom_net_forward.3} parent=5 // pred_check
        _
      $region10: #{custom_net_forward.3} parent=5 // pred_check_branch
        %116 = sbr.rel (%p113) target = $region12
      $region11: #{custom_net_forward.3} parent=5 // pred_region
        %s117 = ssub.s32 %s9, 1
        // Predicated region
        $region13: #{custom_net_forward.3} parent=11 // pred_check
          %p118 = pneg %p56
        $region14: #{custom_net_forward.3} parent=11 // pred_check_branch
          %120 = sbr.rel (%p118) target = $region16
        $region15: #{custom_net_forward.3} parent=11 // pred_region
          _
        $region16: #{custom_net_forward.3} parent=11 // pred_fallthru
          _
        // Predicated region
        $region17: #{custom_net_forward.3} parent=11 // pred_check
          %p121 = pneg %p77
        $region18: #{custom_net_forward.3} parent=11 // pred_check_branch
          %123 = sbr.rel (%p121) target = $region20
        $region19: #{custom_net_forward.3} parent=11 // pred_region
          _
        $region20: #{custom_net_forward.3} parent=11 // pred_fallthru
          _
      $region12: #{custom_net_forward.3} parent=5 // pred_fallthru
        _
      %p124 = scmp.lt.s32.totalorder %s9, 2
      // Predicated region
      $region21: #{custom_net_forward.3} parent=5 // pred_check
        %p125 = pneg %p124
      $region22: #{custom_net_forward.3} parent=5 // pred_check_branch
        %127 = sbr.rel (%p125) target = $region24
      $region23: #{custom_net_forward.3} parent=5 // pred_region
        // Predicated region
        $region25: #{custom_net_forward.3} parent=23 // pred_check
          %p128 = pneg %p29
        $region26: #{custom_net_forward.3} parent=23 // pred_check_branch
          %130 = sbr.rel (%p128) target = $region28
        $region27: #{custom_net_forward.3} parent=23 // pred_region
          %s131 = sand.u32 %s19, 1
          %s132 = sand.u32 %s19, 1
          %s133 = smul.addr %s132, 64
          %s134 = scalar_lea.vmem [#allocation2], %s133
          %s135 = smul.u32 4, %s9
          %s136 = smul.addr %s135, 4
          %s137 = scalar_lea.vmem %s0, %s136
          // Predicated region
          $region29: #{custom_net_forward.3} parent=27 // pred_check
            _
          $region30: #{custom_net_forward.3} parent=27 // pred_check_branch
            %139 = sbr.rel (0) target = $region32
          $region31: #{custom_net_forward.3} parent=27 // pred_region
            // Predicated region
            $region33: #{custom_net_forward.3} parent=31 // pred_check
              _
            $region34: #{custom_net_forward.3} parent=31 // pred_check_branch
              %141 = sbr.rel (0) target = $region36
            $region35: #{custom_net_forward.3} parent=31 // pred_region
              loop: start=0, step=1, limit=1
              $region37: #{custom_net_forward.3} parent=35 // loop_pre_header
                _
              $region38: #{custom_net_forward.3} parent=35 // loop_header
                %s143 = sphi 0, %s147
                %p144 = scmp.ge.s32.totalorder %s143, 1
                %s148 = sphi %s137, %s137
                %s149 = sphi %s134, %s134
              $region39: #{custom_net_forward.3} parent=35 // loop_header_branch
                %146 = sbr.rel (%p144) target = $region43
              $region40: #{custom_net_forward.3} parent=35 // loop_body
                %v150 = vld [vmem:[%s148] sm:$0xff]
                %151 = vst [vmem:[%s149] sm:$0xff] %v150
                %v152 = vld [vmem:[%s148 + $0x8] sm:$0xff]
                %153 = vst [vmem:[%s149 + $0x8] sm:$0xff] %v152
                %v154 = vld [vmem:[%s148 + $0x20] sm:$0xff]
                %155 = vst [vmem:[%s149 + $0x10] sm:$0xff] %v154
                %v156 = vld [vmem:[%s148 + $0x28] sm:$0xff]
                %157 = vst [vmem:[%s149 + $0x18] sm:$0xff] %v156
                %v158 = vld [vmem:[%s148 + $0x40] sm:$0xff]
                %159 = vst [vmem:[%s149 + $0x20] sm:$0xff] %v158
                %v160 = vld [vmem:[%s148 + $0x48] sm:$0xff]
                %161 = vst [vmem:[%s149 + $0x28] sm:$0xff] %v160
                %v162 = vld [vmem:[%s148 + $0x60] sm:$0xff]
                %163 = vst [vmem:[%s149 + $0x30] sm:$0xff] %v162
                %v164 = vld [vmem:[%s148 + $0x68] sm:$0xff]
                %165 = vst [vmem:[%s149 + $0x38] sm:$0xff] %v164
              $region41: #{custom_net_forward.3} parent=35 // loop_footer
                %s147 = sadd.s32 1, %s143
              $region42: #{custom_net_forward.3} parent=35 // loop_footer_branch
                %142 = sbr.rel target = $region38
              $region43: #{custom_net_forward.3} parent=35 // loop_exit
                _
            $region36: #{custom_net_forward.3} parent=31 // pred_fallthru
              _
            // Predicated region
            $region44: #{custom_net_forward.3} parent=31 // pred_check
              _
            $region45: #{custom_net_forward.3} parent=31 // pred_check_branch
              %167 = sbr.rel target = $region47
            $region46: #{custom_net_forward.3} parent=31 // pred_region
              _
            $region47: #{custom_net_forward.3} parent=31 // pred_fallthru
              _
          $region32: #{custom_net_forward.3} parent=27 // pred_fallthru
            _
          %168 = vnop
        $region28: #{custom_net_forward.3} parent=23 // pred_fallthru
          _
      $region24: #{custom_net_forward.3} parent=5 // pred_fallthru
        _
      %p169 = scmp.le.s32.totalorder 1, %s9
      %p170 = scmp.lt.s32.totalorder %s9, 3
      %p171 = pnand %p169, %p170
      %p172 = pneg %p171
      // Predicated region
      $region48: #{custom_net_forward.3} parent=5 // pred_check
        _
      $region49: #{custom_net_forward.3} parent=5 // pred_check_branch
        %174 = sbr.rel (%p171) target = $region51
      $region50: #{custom_net_forward.3} parent=5 // pred_region
        %s175 = ssub.s32 %s9, 1
        %s176 = sand.u32 %s22, 1
        %s177 = sand.u32 %s22, 1
        %s178 = smul.addr %s177, 64
        %s179 = scalar_lea.vmem [#allocation2], %s178
        // Predicated region
        $region52: #{custom_net_forward.3} parent=50 // pred_check
          %p180 = pneg %p35
        $region53: #{custom_net_forward.3} parent=50 // pred_check_branch
          %182 = sbr.rel (%p180) target = $region55
        $region54: #{custom_net_forward.3} parent=50 // pred_region
          _
        $region55: #{custom_net_forward.3} parent=50 // pred_fallthru
          _
        %s183 = sand.u32 %s22, 1
        %s184 = sand.u32 %s22, 1
        %s185 = smul.addr %s184, 64
        %s186 = scalar_lea.vmem [#allocation2], %s185
        %p187 = pneg %p35
        %p188 = pneg %p32
        %p189 = pneg %p56
        %p190 = pneg %p53
        %p191 = pneg %p77
        %p192 = pneg %p74
        %p193 = pneg %p103
        %p194 = pneg %p100
        %s195 = sand.u32 %s90, 1
        %s196 = sand.u32 %s90, 1
        %s197 = smul.addr %s196, 32
        %s198 = scalar_lea.vmem [#allocation3], %s197
        %s199 = smul.u32 4, %s14
        %s200 = smul.u32 4, %s14
        %v202 = vld [vmem:[%s1] sm:$0xf]
        %v203 = vld [vmem:[%s1 + $0x4] sm:$0x1]
        %v204 = vld [vmem:[%s179] sm:$0xff]
        %v205 = vld [vmem:[%s179 + $0x8] sm:$0xff]
        %v206 = vld [vmem:[%s179 + $0x10] sm:$0xff]
        %v207 = vld [vmem:[%s179 + $0x18] sm:$0xff]
        %v208 = vld [vmem:[%s179 + $0x20] sm:$0xff]
        %v209 = vld [vmem:[%s179 + $0x28] sm:$0xff]
        %v210 = vld [vmem:[%s179 + $0x30] sm:$0x33]
        %v211 = vld [vmem:[%s179 + $0x38] sm:$0x33]
        %v212 = vld [vmem:[%s2] sm:$0xff]
        %v213 = vld [vmem:[%s2 + $0x8] sm:$0x3]
        %215 = vset.pattern.permute.xlu0 0
        %216 = vperm.xlu0 %215, %v212
        %v217 = vpop.permute.xlu0 %216
        %220 = vset.pattern.permute.xlu0 0
        %221 = vperm.xlu0 %220, %v213
        %v222 = vpop.permute.xlu0 %221
        %v226 = vunpack.c.l.b16 %v202
        %v227 = vunpack.c.l.b16 %v203
        %v228 = vpack.c.b16 %v227, %v226
        %v237 = vunpack.c.l.b16 %v204
        %v238 = vunpack.c.h.b16 %v204
        %v239 = vunpack.c.l.b16 %v205
        %v240 = vunpack.c.h.b16 %v205
        %v241 = vunpack.c.l.b16 %v206
        %v242 = vunpack.c.h.b16 %v206
        %v243 = vunpack.c.l.b16 %v207
        %v244 = vunpack.c.h.b16 %v207
        %v245 = vunpack.c.l.b16 %v208
        %v246 = vunpack.c.h.b16 %v208
        %v247 = vunpack.c.l.b16 %v209
        %v248 = vunpack.c.h.b16 %v209
        %v249 = vunpack.c.l.b16 %v210
        %v250 = vunpack.c.h.b16 %v210
        %v251 = vunpack.c.l.b16 %v211
        %v252 = vunpack.c.h.b16 %v211
        %v253 = vpack.c.b16 %v241, %v237
        %v254 = vpack.c.b16 %v242, %v238
        %v255 = vpack.c.b16 %v243, %v239
        %v256 = vpack.c.b16 %v244, %v240
        %v257 = vpack.c.b16 %v249, %v245
        %v258 = vpack.c.b16 %v250, %v246
        %v259 = vpack.c.b16 %v251, %v247
        %v260 = vpack.c.b16 %v252, %v248
        %vm265 = vcmask 220160
        %v267 = vsel %vm265, %v228, 0
        %vm269 = vcmask 1044480
        %vm270 = vcmask 1045504
        %v271 = vsel %vm269, 4294967295, 65535
        %v272 = vsel %vm270, %v271, 0
        %v274 = vand.u32 %v257, %v272
        %v277 = vand.u32 %v258, %v272
        %v280 = vand.u32 %v259, %v272
        %v283 = vand.u32 %v260, %v272
        %285 = vmatprep.subr.bf16.mxu0 %v254
        %286 = vmatpush1.bf16.msra.mxu0 %v253
        %287 = vmatprep.subr.bf16.mxu0 %v277
        %288 = vmatpush1.bf16.msra.mxu0 %v274
        %289 = vmatprep.subr.bf16.mxu0 0
        %290 = vmatpush1.bf16.msra.mxu0 0
        %291 = vmatprep.subr.bf16.mxu0 0
        %292 = vmatpush1.bf16.msra.mxu0 0
        %293 = vmatprep.subr.bf16.mxu0 0
        %294 = vmatpush1.bf16.msra.mxu0 0
        %295 = vmatprep.subr.bf16.mxu0 0
        %296 = vmatpush1.bf16.msra.mxu0 0
        %297 = vmatprep.subr.bf16.mxu0 0
        %298 = vmatpush1.bf16.msra.mxu0 0
        %299 = vmatprep.subr.bf16.mxu0 0
        %300 = vmatpush1.bf16.msra.mxu0 0
        %301 = vmatprep.subr.bf16.mxu0 0
        %302 = vmatpush1.bf16.msra.mxu0 0
        %303 = vmatprep.subr.bf16.mxu0 0
        %304 = vmatpush1.bf16.msra.mxu0 0
        %305 = vmatprep.subr.bf16.mxu0 0
        %306 = vmatpush1.bf16.msra.mxu0 0
        %307 = vmatprep.subr.bf16.mxu0 0
        %308 = vmatpush1.bf16.msra.mxu0 0
        %309 = vmatprep.subr.bf16.mxu0 0
        %310 = vmatpush1.bf16.msra.mxu0 0
        %311 = vmatprep.subr.bf16.mxu0 0
        %312 = vmatpush1.bf16.msra.mxu0 0
        %313 = vmatprep.subr.bf16.mxu0 0
        %314 = vmatpush1.bf16.msra.mxu0 0
        %315 = vmatprep.subr.bf16.mxu0 0
        %316 = vmatpush1.bf16.msra.mxu0 0
        %317 = vmatprep.mubr.bf16.mxu0 0
        %318 = vmatmul.mubr.bf16.gmra.mrb[0].mxu0 %v267
        %v319 = vpop.f32.mrb[0].mxu0
        %v320 = vadd.f32 %v217, %v319
        %v321 = vpop.f32.mrb[0].mxu0
        %v322 = vadd.f32 %v217, %v321
        %v323 = vpop.f32.mrb[0].mxu0
        %v324 = vadd.f32 %v222, %v323
        %v325 = vpop.f32.mrb[0].mxu0
        %v326 = vadd.f32 %v222, %v325
        %327 = vdwg.mxu0
        %328 = vmatprep.subr.bf16.mxu0 %v256
        %329 = vmatpush1.bf16.msra.mxu0 %v255
        %330 = vmatprep.subr.bf16.mxu0 %v283
        %331 = vmatpush1.bf16.msra.mxu0 %v280
        %332 = vmatprep.subr.bf16.mxu0 0
        %333 = vmatpush1.bf16.msra.mxu0 0
        %334 = vmatprep.subr.bf16.mxu0 0
        %335 = vmatpush1.bf16.msra.mxu0 0
        %336 = vmatprep.subr.bf16.mxu0 0
        %337 = vmatpush1.bf16.msra.mxu0 0
        %338 = vmatprep.subr.bf16.mxu0 0
        %339 = vmatpush1.bf16.msra.mxu0 0
        %340 = vmatprep.subr.bf16.mxu0 0
        %341 = vmatpush1.bf16.msra.mxu0 0
        %342 = vmatprep.subr.bf16.mxu0 0
        %343 = vmatpush1.bf16.msra.mxu0 0
        %344 = vmatprep.subr.bf16.mxu0 0
        %345 = vmatpush1.bf16.msra.mxu0 0
        %346 = vmatprep.subr.bf16.mxu0 0
        %347 = vmatpush1.bf16.msra.mxu0 0
        %348 = vmatprep.subr.bf16.mxu0 0
        %349 = vmatpush1.bf16.msra.mxu0 0
        %350 = vmatprep.subr.bf16.mxu0 0
        %351 = vmatpush1.bf16.msra.mxu0 0
        %352 = vmatprep.subr.bf16.mxu0 0
        %353 = vmatpush1.bf16.msra.mxu0 0
        %354 = vmatprep.subr.bf16.mxu0 0
        %355 = vmatpush1.bf16.msra.mxu0 0
        %356 = vmatprep.subr.bf16.mxu0 0
        %357 = vmatpush1.bf16.msra.mxu0 0
        %358 = vmatprep.subr.bf16.mxu0 0
        %359 = vmatpush1.bf16.msra.mxu0 0
        %360 = vmatprep.mubr.bf16.mxu0 0
        %361 = vmatmul.mubr.bf16.gmra.mrb[0].mxu0 %v267
        %v362 = vpop.f32.mrb[0].mxu0
        %v363 = vadd.f32 %v217, %v362
        %v364 = vpop.f32.mrb[0].mxu0
        %v365 = vadd.f32 %v217, %v364
        %v366 = vpop.f32.mrb[0].mxu0
        %v367 = vadd.f32 %v222, %v366
        %v368 = vpop.f32.mrb[0].mxu0
        %v369 = vadd.f32 %v222, %v368
        %370 = vdwg.mxu0
        %v371 = vmax.f32 %v320, 0.0
        %v372 = vmax.f32 %v322, 0.0
        %v373 = vmax.f32 %v363, 0.0
        %v374 = vmax.f32 %v365, 0.0
        %v375 = vmax.f32 %v324, 0.0
        %v376 = vmax.f32 %v326, 0.0
        %v377 = vmax.f32 %v367, 0.0
        %v378 = vmax.f32 %v369, 0.0
        %v379 = vpack.c.bf16 %v375, %v371
        %v380 = vpack.c.bf16 %v376, %v372
        %v381 = vpack.c.bf16 %v377, %v373
        %v382 = vpack.c.bf16 %v378, %v374
        %v387 = vunpack.c.l.b16 %v379
        %v388 = vunpack.c.l.b16 %v380
        %v389 = vunpack.c.l.b16 %v381
        %v390 = vunpack.c.l.b16 %v382
        %v391 = vunpack.c.h.b16 %v379
        %v392 = vunpack.c.h.b16 %v380
        %v393 = vunpack.c.h.b16 %v381
        %v394 = vunpack.c.h.b16 %v382
        %v395 = vpack.c.b16 %v388, %v387
        %v396 = vpack.c.b16 %v390, %v389
        %v397 = vpack.c.b16 %v392, %v391
        %v398 = vpack.c.b16 %v394, %v393
        %403 = vst [vmem:[%s198] sm:$0xff] %v395
        %404 = vst [vmem:[%s198 + $0x8] sm:$0xff] %v396
        %405 = vst [vmem:[%s198 + $0x10] sm:$0x11] %v397
        %406 = vst [vmem:[%s198 + $0x18] sm:$0x11] %v398
        %s407 = sand.u32 %s90, 1
        %s408 = sand.u32 %s90, 1
        %s409 = smul.addr %s408, 32
        %s410 = scalar_lea.vmem [#allocation3], %s409
        // Predicated region
        $region56: #{custom_net_forward.3} parent=50 // pred_check
          %p411 = pneg %p100
        $region57: #{custom_net_forward.3} parent=50 // pred_check_branch
          %413 = sbr.rel (%p411) target = $region59
        $region58: #{custom_net_forward.3} parent=50 // pred_region
          %s414 = smul.u32 4, %s14
          %s415 = smul.addr %s414, 4
          %s416 = scalar_lea.vmem %s3, %s415
          // Predicated region
          $region60: #{custom_net_forward.3} parent=58 // pred_check
            _
          $region61: #{custom_net_forward.3} parent=58 // pred_check_branch
            %418 = sbr.rel (0) target = $region63
          $region62: #{custom_net_forward.3} parent=58 // pred_region
            // Predicated region
            $region64: #{custom_net_forward.3} parent=62 // pred_check
              _
            $region65: #{custom_net_forward.3} parent=62 // pred_check_branch
              %420 = sbr.rel (0) target = $region67
            $region66: #{custom_net_forward.3} parent=62 // pred_region
              loop: start=0, step=1, limit=1
              $region68: #{custom_net_forward.3} parent=66 // loop_pre_header
                _
              $region69: #{custom_net_forward.3} parent=66 // loop_header
                %s422 = sphi 0, %s426
                %p423 = scmp.ge.s32.totalorder %s422, 1
                %s427 = sphi %s410, %s410
                %s428 = sphi %s416, %s416
              $region70: #{custom_net_forward.3} parent=66 // loop_header_branch
                %425 = sbr.rel (%p423) target = $region74
              $region71: #{custom_net_forward.3} parent=66 // loop_body
                %v429 = vld [vmem:[%s427] sm:$0xff]
                %430 = vst [vmem:[%s428] sm:$0xff] %v429
                %v431 = vld [vmem:[%s427 + $0x8] sm:$0xff]
                %432 = vst [vmem:[%s428 + $0x8] sm:$0xff] %v431
                %v433 = vld [vmem:[%s427 + $0x10] sm:$0xff]
                %434 = vst [vmem:[%s428 + $0x20] sm:$0xff] %v433
                %v435 = vld [vmem:[%s427 + $0x18] sm:$0xff]
                %436 = vst [vmem:[%s428 + $0x28] sm:$0xff] %v435
              $region72: #{custom_net_forward.3} parent=66 // loop_footer
                %s426 = sadd.s32 1, %s422
              $region73: #{custom_net_forward.3} parent=66 // loop_footer_branch
                %421 = sbr.rel target = $region69
              $region74: #{custom_net_forward.3} parent=66 // loop_exit
                _
            $region67: #{custom_net_forward.3} parent=62 // pred_fallthru
              _
            // Predicated region
            $region75: #{custom_net_forward.3} parent=62 // pred_check
              _
            $region76: #{custom_net_forward.3} parent=62 // pred_check_branch
              %438 = sbr.rel target = $region78
            $region77: #{custom_net_forward.3} parent=62 // pred_region
              _
            $region78: #{custom_net_forward.3} parent=62 // pred_fallthru
              _
          $region63: #{custom_net_forward.3} parent=58 // pred_fallthru
            _
          %439 = vnop
        $region59: #{custom_net_forward.3} parent=50 // pred_fallthru
          _
      $region51: #{custom_net_forward.3} parent=5 // pred_fallthru
        _
      %p440 = scmp.le.s32.totalorder 2, %s9
      // Predicated region
      $region79: #{custom_net_forward.3} parent=5 // pred_check
        %p441 = pneg %p440
      $region80: #{custom_net_forward.3} parent=5 // pred_check_branch
        %443 = sbr.rel (%p441) target = $region82
      $region81: #{custom_net_forward.3} parent=5 // pred_region
        %s444 = ssub.s32 %s9, 2
        // Predicated region
        $region83: #{custom_net_forward.3} parent=81 // pred_check
          %p445 = pneg %p106
        $region84: #{custom_net_forward.3} parent=81 // pred_check_branch
          %447 = sbr.rel (%p445) target = $region86
        $region85: #{custom_net_forward.3} parent=81 // pred_region
          %s448 = sand.u32 %s91, 1
          %s449 = sand.u32 %s91, 1
          %s450 = smul.addr %s449, 32
          %s451 = scalar_lea.vmem [#allocation3], %s450
        $region86: #{custom_net_forward.3} parent=81 // pred_fallthru
          _
      $region82: #{custom_net_forward.3} parent=5 // pred_fallthru
        _
    $region6: #{custom_net_forward.3} parent=1 // loop_footer
      %s13 = sadd.s32 1, %s9
    $region7: #{custom_net_forward.3} parent=1 // loop_footer_branch
      %8 = sbr.rel target = $region3
    $region8: #{custom_net_forward.3} parent=1 // loop_exit
      _

// kernel: custom_net_forward.4
$region0: #{custom_net_forward.4}
  #allocation0 [shape = 'u32[]', space=smem, size = 0x4, offset = 0x4, fixed_abs, tag = 'smem constant byte address 0x4 - core index']
  #allocation1 [shape = 'u32[144,128]{1,0:T(1,128)}', space=vmem, size = 0x12000, scoped, tag = 'internal scratch']
  %s0 = inlined_call_operand.vmem [shape: bf16[90,256], index: 0, kind: input, shape index: {}]
  %s1 = inlined_call_operand.vmem [shape: bf16[50,90], index: 1, kind: input, shape index: {}]
  %s2 = inlined_call_operand.vmem [shape: f32[50,1], index: 2, kind: input, shape index: {}]
  %s3 = inlined_call_operand.vmem [shape: bf16[50,256], index: 3, kind: output, shape index: {}]
  %s4 = sld [smem:[#allocation0]]
  $region123: #{custom_net_forward.4} parent=0
    _
  %s6 = ssub.s32 1, %s4
  %s7 = scalar_select 0, %s6, %s4
  $region1: #{custom_net_forward.4} parent=0
    #allocation2 [shape = 'u8[49152]{0}', space=vmem, size = 0xc000, scoped, tag = 'input window, operand 0']
    #allocation3 [shape = 'u8[28672]{0}', space=vmem, size = 0x7000, scoped, tag = 'output window, operand 0']
    loop: start=0, step=1, limit=4
    $region2: #{custom_net_forward.4} parent=1 // loop_pre_header
      _
    $region3: #{custom_net_forward.4} parent=1 // loop_header
      %s9 = sphi 0, %s13
      %p10 = scmp.ge.s32.totalorder %s9, 4
      %s19 = sphi 0, %s21
      %s22 = sphi 0, %s19
      %s23 = sphi 0, %s22
      %s39 = sphi 0, %s23
      %s43 = sphi 0, %s43
      %s45 = sphi 0, %s43
      %s46 = sphi 0, %s45
      %s60 = sphi 0, %s46
      %s64 = sphi 0, %s64
      %s66 = sphi 0, %s64
      %s67 = sphi 0, %s66
      %s81 = sphi 0, %s67
      %s87 = sphi 0, %s89
      %s90 = sphi 0, %s87
      %s91 = sphi 0, %s90
      %s107 = sphi 0, %s91
    $region4: #{custom_net_forward.4} parent=1 // loop_header_branch
      %12 = sbr.rel (%p10) target = $region8
    $region5: #{custom_net_forward.4} parent=1 // loop_body
      %s14 = ssub.s32 %s9, 1
      %s15 = ssub.s32 %s9, 2
      %s16 = sadd.s32 %s9, 1
      %s17 = ssub.s32 %s9, %s16
      %p18 = scmp.eq.s32.totalorder %s17, 0
      %s20 = sadd.s32 %s19, 1
      %s21 = scalar_select %p18, %s19, %s20
      %p24 = pneg %p18
      %p25 = scmp.eq.s32.totalorder %s9, 1
      %p26 = por %p24, %p25
      %p27 = scmp.ne.s32.totalorder %s19, %s22
      %p28 = scmp.eq.s32.totalorder %s9, 0
      %p29 = por %p27, %p28
      %p30 = scmp.ne.s32.totalorder %s19, %s22
      %p31 = scmp.eq.s32.totalorder %s14, 1
      %p32 = por %p30, %p31
      %p33 = scmp.ne.s32.totalorder %s22, %s23
      %p34 = scmp.eq.s32.totalorder %s14, 0
      %p35 = por %p33, %p34
      %p36 = scmp.ne.s32.totalorder %s22, %s23
      %p37 = scmp.eq.s32.totalorder %s15, 1
      %p38 = por %p36, %p37
      %p40 = scmp.ne.s32.totalorder %s23, %s39
      %p41 = scmp.eq.s32.totalorder %s15, 0
      %p42 = por %p40, %p41
      %s44 = sadd.s32 %s43, 1
      %p47 = scmp.eq.s32.totalorder %s9, 1
      %p48 = scmp.ne.s32.totalorder %s43, %s45
      %p49 = scmp.eq.s32.totalorder %s9, 0
      %p50 = por %p48, %p49
      %p51 = scmp.ne.s32.totalorder %s43, %s45
      %p52 = scmp.eq.s32.totalorder %s14, 1
      %p53 = por %p51, %p52
      %p54 = scmp.ne.s32.totalorder %s45, %s46
      %p55 = scmp.eq.s32.totalorder %s14, 0
      %p56 = por %p54, %p55
      %p57 = scmp.ne.s32.totalorder %s45, %s46
      %p58 = scmp.eq.s32.totalorder %s15, 1
      %p59 = por %p57, %p58
      %p61 = scmp.ne.s32.totalorder %s46, %s60
      %p62 = scmp.eq.s32.totalorder %s15, 0
      %p63 = por %p61, %p62
      %s65 = sadd.s32 %s64, 1
      %p68 = scmp.eq.s32.totalorder %s9, 1
      %p69 = scmp.ne.s32.totalorder %s64, %s66
      %p70 = scmp.eq.s32.totalorder %s9, 0
      %p71 = por %p69, %p70
      %p72 = scmp.ne.s32.totalorder %s64, %s66
      %p73 = scmp.eq.s32.totalorder %s14, 1
      %p74 = por %p72, %p73
      %p75 = scmp.ne.s32.totalorder %s66, %s67
      %p76 = scmp.eq.s32.totalorder %s14, 0
      %p77 = por %p75, %p76
      %p78 = scmp.ne.s32.totalorder %s66, %s67
      %p79 = scmp.eq.s32.totalorder %s15, 1
      %p80 = por %p78, %p79
      %p82 = scmp.ne.s32.totalorder %s67, %s81
      %p83 = scmp.eq.s32.totalorder %s15, 0
      %p84 = por %p82, %p83
      %s85 = ssub.s32 %s9, %s16
      %p86 = scmp.eq.s32.totalorder %s85, 0
      %s88 = sadd.s32 %s87, 1
      %s89 = scalar_select %p86, %s87, %s88
      %p92 = pneg %p86
      %p93 = scmp.eq.s32.totalorder %s9, 1
      %p94 = por %p92, %p93
      %p95 = scmp.ne.s32.totalorder %s87, %s90
      %p96 = scmp.eq.s32.totalorder %s9, 0
      %p97 = por %p95, %p96
      %p98 = scmp.ne.s32.totalorder %s87, %s90
      %p99 = scmp.eq.s32.totalorder %s14, 1
      %p100 = por %p98, %p99
      %p101 = scmp.ne.s32.totalorder %s90, %s91
      %p102 = scmp.eq.s32.totalorder %s14, 0
      %p103 = por %p101, %p102
      %p104 = scmp.ne.s32.totalorder %s90, %s91
      %p105 = scmp.eq.s32.totalorder %s15, 1
      %p106 = por %p104, %p105
      %p108 = scmp.ne.s32.totalorder %s91, %s107
      %p109 = scmp.eq.s32.totalorder %s15, 0
      %p110 = por %p108, %p109
      %p111 = scmp.le.s32.totalorder 1, %s9
      %p112 = scmp.lt.s32.totalorder %s9, 3
      %p113 = pnand %p111, %p112
      %p114 = pneg %p113
      // Predicated region
      $region9: #{custom_net_forward.4} parent=5 // pred_check
        _
      $region10: #{custom_net_forward.4} parent=5 // pred_check_branch
        %116 = sbr.rel (%p113) target = $region12
      $region11: #{custom_net_forward.4} parent=5 // pred_region
        %s117 = ssub.s32 %s9, 1
        // Predicated region
        $region13: #{custom_net_forward.4} parent=11 // pred_check
          %p118 = pneg %p56
        $region14: #{custom_net_forward.4} parent=11 // pred_check_branch
          %120 = sbr.rel (%p118) target = $region16
        $region15: #{custom_net_forward.4} parent=11 // pred_region
          _
        $region16: #{custom_net_forward.4} parent=11 // pred_fallthru
          _
        // Predicated region
        $region17: #{custom_net_forward.4} parent=11 // pred_check
          %p121 = pneg %p77
        $region18: #{custom_net_forward.4} parent=11 // pred_check_branch
          %123 = sbr.rel (%p121) target = $region20
        $region19: #{custom_net_forward.4} parent=11 // pred_region
          _
        $region20: #{custom_net_forward.4} parent=11 // pred_fallthru
          _
      $region12: #{custom_net_forward.4} parent=5 // pred_fallthru
        _
      %p124 = scmp.lt.s32.totalorder %s9, 2
      // Predicated region
      $region21: #{custom_net_forward.4} parent=5 // pred_check
        %p125 = pneg %p124
      $region22: #{custom_net_forward.4} parent=5 // pred_check_branch
        %127 = sbr.rel (%p125) target = $region24
      $region23: #{custom_net_forward.4} parent=5 // pred_region
        // Predicated region
        $region25: #{custom_net_forward.4} parent=23 // pred_check
          %p128 = pneg %p29
        $region26: #{custom_net_forward.4} parent=23 // pred_check_branch
          %130 = sbr.rel (%p128) target = $region28
        $region27: #{custom_net_forward.4} parent=23 // pred_region
          %s131 = sand.u32 %s19, 1
          %s132 = sand.u32 %s19, 1
          %s133 = smul.addr %s132, 48
          %s134 = scalar_lea.vmem [#allocation2], %s133
          %s135 = smul.addr %s9, 4
          %s136 = scalar_lea.vmem %s0, %s135
          // Predicated region
          $region29: #{custom_net_forward.4} parent=27 // pred_check
            _
          $region30: #{custom_net_forward.4} parent=27 // pred_check_branch
            %138 = sbr.rel (0) target = $region32
          $region31: #{custom_net_forward.4} parent=27 // pred_region
            // Predicated region
            $region33: #{custom_net_forward.4} parent=31 // pred_check
              _
            $region34: #{custom_net_forward.4} parent=31 // pred_check_branch
              %140 = sbr.rel target = $region36
            $region35: #{custom_net_forward.4} parent=31 // pred_region
              // Predicated region
              $region48: #{custom_net_forward.4} parent=35 // pred_check
                _
              $region49: #{custom_net_forward.4} parent=35 // pred_check_branch
                %177 = sbr.rel (0) target = $region51
              $region50: #{custom_net_forward.4} parent=35 // pred_region
                loop: start=0, step=1, limit=1
                $region52: #{custom_net_forward.4} parent=50 // loop_pre_header
                  _
                $region53: #{custom_net_forward.4} parent=50 // loop_header
                  %s179 = sphi 0, %s183
                  %p180 = scmp.ge.s32.totalorder %s179, 1
                  %s184 = sphi %s136, %s136
                  %s185 = sphi %s134, %s134
                $region54: #{custom_net_forward.4} parent=50 // loop_header_branch
                  %182 = sbr.rel (%p180) target = $region58
                $region55: #{custom_net_forward.4} parent=50 // loop_body
                  _
                $region56: #{custom_net_forward.4} parent=50 // loop_footer
                  %s183 = sadd.s32 1, %s179
                $region57: #{custom_net_forward.4} parent=50 // loop_footer_branch
                  %178 = sbr.rel target = $region53
                $region58: #{custom_net_forward.4} parent=50 // loop_exit
                  _
                loop: start=0, step=1, limit=1
                $region59: #{custom_net_forward.4} parent=50 // loop_pre_header
                  _
                $region60: #{custom_net_forward.4} parent=50 // loop_header
                  %s188 = sphi 0, %s192
                  %p189 = scmp.ge.s32.totalorder %s188, 1
                  %s193 = sphi %s136, %s136
                  %s194 = sphi %s134, %s134
                $region61: #{custom_net_forward.4} parent=50 // loop_header_branch
                  %191 = sbr.rel (%p189) target = $region65
                $region62: #{custom_net_forward.4} parent=50 // loop_body
                  %v195 = vld [vmem:[%s193] sm:$0xf]
                  %196 = vst [vmem:[%s194] sm:$0xf] %v195
                  %v197 = vld [vmem:[%s193 + $0x8] sm:$0xf]
                  %198 = vst [vmem:[%s194 + $0x4] sm:$0xf] %v197
                  %v199 = vld [vmem:[%s193 + $0x10] sm:$0xf]
                  %200 = vst [vmem:[%s194 + $0x8] sm:$0xf] %v199
                  %v201 = vld [vmem:[%s193 + $0x18] sm:$0xf]
                  %202 = vst [vmem:[%s194 + $0xc] sm:$0xf] %v201
                  %v203 = vld [vmem:[%s193 + $0x20] sm:$0xf]
                  %204 = vst [vmem:[%s194 + $0x10] sm:$0xf] %v203
                  %v205 = vld [vmem:[%s193 + $0x28] sm:$0xf]
                  %206 = vst [vmem:[%s194 + $0x14] sm:$0xf] %v205
                  %v207 = vld [vmem:[%s193 + $0x30] sm:$0xf]
                  %208 = vst [vmem:[%s194 + $0x18] sm:$0xf] %v207
                  %v209 = vld [vmem:[%s193 + $0x38] sm:$0xf]
                  %210 = vst [vmem:[%s194 + $0x1c] sm:$0xf] %v209
                  %v211 = vld [vmem:[%s193 + $0x40] sm:$0xf]
                  %212 = vst [vmem:[%s194 + $0x20] sm:$0xf] %v211
                  %v213 = vld [vmem:[%s193 + $0x48] sm:$0xf]
                  %214 = vst [vmem:[%s194 + $0x24] sm:$0xf] %v213
                  %v215 = vld [vmem:[%s193 + $0x50] sm:$0xf]
                  %216 = vst [vmem:[%s194 + $0x28] sm:$0xf] %v215
                  %v217 = vld [vmem:[%s193 + $0x58] sm:$0xf]
                  %218 = vst [vmem:[%s194 + $0x2c] sm:$0xf] %v217
                $region63: #{custom_net_forward.4} parent=50 // loop_footer
                  %s192 = sadd.s32 1, %s188
                $region64: #{custom_net_forward.4} parent=50 // loop_footer_branch
                  %187 = sbr.rel target = $region60
                $region65: #{custom_net_forward.4} parent=50 // loop_exit
                  _
              $region51: #{custom_net_forward.4} parent=35 // pred_fallthru
                _
            $region36: #{custom_net_forward.4} parent=31 // pred_fallthru
              _
            // Predicated region
            $region37: #{custom_net_forward.4} parent=31 // pred_check
              _
            $region38: #{custom_net_forward.4} parent=31 // pred_check_branch
              %142 = sbr.rel (0) target = $region40
            $region39: #{custom_net_forward.4} parent=31 // pred_region
              loop: start=0, step=1, limit=1
              $region41: #{custom_net_forward.4} parent=39 // loop_pre_header
                _
              $region42: #{custom_net_forward.4} parent=39 // loop_header
                %s145 = sphi 0, %s149
                %p146 = scmp.ge.s32.totalorder %s145, 1
                %s150 = sphi %s136, %s136
                %s151 = sphi %s134, %s134
              $region43: #{custom_net_forward.4} parent=39 // loop_header_branch
                %148 = sbr.rel (%p146) target = $region47
              $region44: #{custom_net_forward.4} parent=39 // loop_body
                %v152 = vld [vmem:[%s150] sm:$0xf]
                %153 = vst [vmem:[%s151] sm:$0xf] %v152
                %v154 = vld [vmem:[%s150 + $0x8] sm:$0xf]
                %155 = vst [vmem:[%s151 + $0x4] sm:$0xf] %v154
                %v156 = vld [vmem:[%s150 + $0x10] sm:$0xf]
                %157 = vst [vmem:[%s151 + $0x8] sm:$0xf] %v156
                %v158 = vld [vmem:[%s150 + $0x18] sm:$0xf]
                %159 = vst [vmem:[%s151 + $0xc] sm:$0xf] %v158
                %v160 = vld [vmem:[%s150 + $0x20] sm:$0xf]
                %161 = vst [vmem:[%s151 + $0x10] sm:$0xf] %v160
                %v162 = vld [vmem:[%s150 + $0x28] sm:$0xf]
                %163 = vst [vmem:[%s151 + $0x14] sm:$0xf] %v162
                %v164 = vld [vmem:[%s150 + $0x30] sm:$0xf]
                %165 = vst [vmem:[%s151 + $0x18] sm:$0xf] %v164
                %v166 = vld [vmem:[%s150 + $0x38] sm:$0xf]
                %167 = vst [vmem:[%s151 + $0x1c] sm:$0xf] %v166
                %v168 = vld [vmem:[%s150 + $0x40] sm:$0xf]
                %169 = vst [vmem:[%s151 + $0x20] sm:$0xf] %v168
                %v170 = vld [vmem:[%s150 + $0x48] sm:$0xf]
                %171 = vst [vmem:[%s151 + $0x24] sm:$0xf] %v170
                %v172 = vld [vmem:[%s150 + $0x50] sm:$0xf]
                %173 = vst [vmem:[%s151 + $0x28] sm:$0xf] %v172
                %v174 = vld [vmem:[%s150 + $0x58] sm:$0xf]
                %175 = vst [vmem:[%s151 + $0x2c] sm:$0xf] %v174
              $region45: #{custom_net_forward.4} parent=39 // loop_footer
                %s149 = sadd.s32 1, %s145
              $region46: #{custom_net_forward.4} parent=39 // loop_footer_branch
                %144 = sbr.rel target = $region42
              $region47: #{custom_net_forward.4} parent=39 // loop_exit
                _
            $region40: #{custom_net_forward.4} parent=31 // pred_fallthru
              _
          $region32: #{custom_net_forward.4} parent=27 // pred_fallthru
            _
          %219 = vnop
        $region28: #{custom_net_forward.4} parent=23 // pred_fallthru
          _
      $region24: #{custom_net_forward.4} parent=5 // pred_fallthru
        _
      %p220 = scmp.le.s32.totalorder 1, %s9
      %p221 = scmp.lt.s32.totalorder %s9, 3
      %p222 = pnand %p220, %p221
      %p223 = pneg %p222
      // Predicated region
      $region66: #{custom_net_forward.4} parent=5 // pred_check
        _
      $region67: #{custom_net_forward.4} parent=5 // pred_check_branch
        %225 = sbr.rel (%p222) target = $region69
      $region68: #{custom_net_forward.4} parent=5 // pred_region
        %s226 = ssub.s32 %s9, 1
        %s227 = sand.u32 %s22, 1
        %s228 = sand.u32 %s22, 1
        %s229 = smul.addr %s228, 48
        %s230 = scalar_lea.vmem [#allocation2], %s229
        // Predicated region
        $region70: #{custom_net_forward.4} parent=68 // pred_check
          %p231 = pneg %p35
        $region71: #{custom_net_forward.4} parent=68 // pred_check_branch
          %233 = sbr.rel (%p231) target = $region73
        $region72: #{custom_net_forward.4} parent=68 // pred_region
          _
        $region73: #{custom_net_forward.4} parent=68 // pred_fallthru
          _
        %s234 = sand.u32 %s22, 1
        %s235 = sand.u32 %s22, 1
        %s236 = smul.addr %s235, 48
        %s237 = scalar_lea.vmem [#allocation2], %s236
        %p238 = pneg %p35
        %p239 = pneg %p32
        %p240 = pneg %p56
        %p241 = pneg %p53
        %p242 = pneg %p77
        %p243 = pneg %p74
        %p244 = pneg %p103
        %p245 = pneg %p100
        %s246 = sand.u32 %s90, 1
        %s247 = sand.u32 %s90, 1
        %s248 = smul.addr %s247, 28
        %s249 = scalar_lea.vmem [#allocation3], %s248
        %v251 = vld [vmem:[%s1] sm:$0xf]
        %v252 = vld [vmem:[%s1 + $0x4] sm:$0xf]
        %v253 = vld [vmem:[%s1 + $0x8] sm:$0xf]
        %v254 = vld [vmem:[%s1 + $0xc] sm:$0xf]
        %v255 = vld [vmem:[%s1 + $0x10] sm:$0xf]
        %v256 = vld [vmem:[%s1 + $0x14] sm:$0xf]
        %v257 = vld [vmem:[%s1 + $0x18] sm:$0x1]
        %v258 = vld [vmem:[%s230] sm:$0xf]
        %v259 = vld [vmem:[%s230 + $0x4] sm:$0xf]
        %v260 = vld [vmem:[%s230 + $0x8] sm:$0xf]
        %v261 = vld [vmem:[%s230 + $0xc] sm:$0xf]
        %v262 = vld [vmem:[%s230 + $0x10] sm:$0xf]
        %v263 = vld [vmem:[%s230 + $0x14] sm:$0xf]
        %v264 = vld [vmem:[%s230 + $0x18] sm:$0xf]
        %v265 = vld [vmem:[%s230 + $0x1c] sm:$0xf]
        %v266 = vld [vmem:[%s230 + $0x20] sm:$0xf]
        %v267 = vld [vmem:[%s230 + $0x24] sm:$0xf]
        %v268 = vld [vmem:[%s230 + $0x28] sm:$0xf]
        %v269 = vld [vmem:[%s230 + $0x2c] sm:$0x1]
        %v270 = vld [vmem:[%s2] sm:$0xff]
        %v271 = vld [vmem:[%s2 + $0x8] sm:$0xff]
        %v272 = vld [vmem:[%s2 + $0x10] sm:$0xff]
        %v273 = vld [vmem:[%s2 + $0x18] sm:$0xff]
        %v274 = vld [vmem:[%s2 + $0x20] sm:$0xff]
        %v275 = vld [vmem:[%s2 + $0x28] sm:$0xff]
        %v276 = vld [vmem:[%s2 + $0x30] sm:$0x3]
        %278 = vset.pattern.permute.xlu0 0
        %279 = vperm.xlu0 %278, %v270
        %v280 = vpop.permute.xlu0 %279
        %283 = vset.pattern.permute.xlu0 0
        %284 = vperm.xlu0 %283, %v271
        %v285 = vpop.permute.xlu0 %284
        %288 = vset.pattern.permute.xlu0 0
        %289 = vperm.xlu0 %288, %v272
        %v290 = vpop.permute.xlu0 %289
        %293 = vset.pattern.permute.xlu0 0
        %294 = vperm.xlu0 %293, %v273
        %v295 = vpop.permute.xlu0 %294
        %298 = vset.pattern.permute.xlu0 0
        %299 = vperm.xlu0 %298, %v274
        %v300 = vpop.permute.xlu0 %299
        %303 = vset.pattern.permute.xlu0 0
        %304 = vperm.xlu0 %303, %v275
        %v305 = vpop.permute.xlu0 %304
        %308 = vset.pattern.permute.xlu0 0
        %309 = vperm.xlu0 %308, %v276
        %v310 = vpop.permute.xlu0 %309
        %v319 = vunpack.c.l.b16 %v251
        %v320 = vunpack.c.l.b16 %v252
        %v321 = vunpack.c.l.b16 %v253
        %v322 = vunpack.c.l.b16 %v254
        %v323 = vunpack.c.l.b16 %v255
        %v324 = vunpack.c.l.b16 %v256
        %v325 = vunpack.c.l.b16 %v257
        %v326 = vpack.c.b16 %v320, %v319
        %v327 = vpack.c.b16 %v322, %v321
        %v328 = vpack.c.b16 %v324, %v323
        %v329 = vpack.c.b16 %v325, %v325
        %v342 = vunpack.c.l.b16 %v258
        %v343 = vunpack.c.l.b16 %v259
        %v344 = vunpack.c.l.b16 %v260
        %v345 = vunpack.c.l.b16 %v261
        %v346 = vunpack.c.l.b16 %v262
        %v347 = vunpack.c.l.b16 %v263
        %v348 = vunpack.c.l.b16 %v264
        %v349 = vunpack.c.l.b16 %v265
        %v350 = vunpack.c.l.b16 %v266
        %v351 = vunpack.c.l.b16 %v267
        %v352 = vunpack.c.l.b16 %v268
        %v353 = vunpack.c.l.b16 %v269
        %v354 = vpack.c.b16 %v343, %v342
        %v355 = vpack.c.b16 %v345, %v344
        %v356 = vpack.c.b16 %v347, %v346
        %v357 = vpack.c.b16 %v349, %v348
        %v358 = vpack.c.b16 %v351, %v350
        %v359 = vpack.c.b16 %v353, %v352
        %vm365 = vcmask 736256
        %v367 = vsel %vm365, %v326, 0
        %v370 = vsel %vm365, %v327, 0
        %v373 = vsel %vm365, %v328, 0
        %v376 = vsel %vm365, %v329, 0
        %vm378 = vcmask 1044480
        %v380 = vsel %vm378, %v359, 0
        %382 = vmatprep.subr.bf16.mxu0 0
        %383 = vmatpush1.bf16.msra.mxu0 %v354
        %384 = vmatprep.subr.bf16.mxu0 0
        %385 = vmatpush1.bf16.msra.mxu0 %v355
        %386 = vmatprep.subr.bf16.mxu0 0
        %387 = vmatpush1.bf16.msra.mxu0 %v356
        %388 = vmatprep.subr.bf16.mxu0 0
        %389 = vmatpush1.bf16.msra.mxu0 %v357
        %390 = vmatprep.subr.bf16.mxu0 0
        %391 = vmatpush1.bf16.msra.mxu0 %v358
        %392 = vmatprep.subr.bf16.mxu0 0
        %393 = vmatpush1.bf16.msra.mxu0 %v380
        %394 = vmatprep.subr.bf16.mxu0 0
        %395 = vmatpush1.bf16.msra.mxu0 0
        %396 = vmatprep.subr.bf16.mxu0 0
        %397 = vmatpush1.bf16.msra.mxu0 0
        %398 = vmatprep.subr.bf16.mxu0 0
        %399 = vmatpush1.bf16.msra.mxu0 0
        %400 = vmatprep.subr.bf16.mxu0 0
        %401 = vmatpush1.bf16.msra.mxu0 0
        %402 = vmatprep.subr.bf16.mxu0 0
        %403 = vmatpush1.bf16.msra.mxu0 0
        %404 = vmatprep.subr.bf16.mxu0 0
        %405 = vmatpush1.bf16.msra.mxu0 0
        %406 = vmatprep.subr.bf16.mxu0 0
        %407 = vmatpush1.bf16.msra.mxu0 0
        %408 = vmatprep.subr.bf16.mxu0 0
        %409 = vmatpush1.bf16.msra.mxu0 0
        %410 = vmatprep.subr.bf16.mxu0 0
        %411 = vmatpush1.bf16.msra.mxu0 0
        %412 = vmatprep.subr.bf16.mxu0 0
        %413 = vmatpush1.bf16.msra.mxu0 0
        %414 = vmatprep.mubr.bf16.mxu0 0
        %415 = vmatmul.mubr.bf16.gmra.mrb[0].mxu0 %v367
        %v416 = vpop.f32.mrb[0].mxu0
        %v417 = vadd.f32 %v280, %v416
        %v418 = vpop.f32.mrb[0].mxu0
        %v419 = vpop.f32.mrb[0].mxu0
        %v420 = vadd.f32 %v285, %v419
        %v421 = vpop.f32.mrb[0].mxu0
        %422 = vmatprep.mubr.bf16.mxu0 0
        %423 = vmatmul.mubr.bf16.gmra.mrb[0].mxu0 %v370
        %v424 = vpop.f32.mrb[0].mxu0
        %v425 = vadd.f32 %v290, %v424
        %v426 = vpop.f32.mrb[0].mxu0
        %v427 = vpop.f32.mrb[0].mxu0
        %v428 = vadd.f32 %v295, %v427
        %v429 = vpop.f32.mrb[0].mxu0
        %430 = vmatprep.mubr.bf16.mxu0 0
        %431 = vmatmul.mubr.bf16.gmra.mrb[0].mxu0 %v373
        %v432 = vpop.f32.mrb[0].mxu0
        %v433 = vadd.f32 %v300, %v432
        %v434 = vpop.f32.mrb[0].mxu0
        %v435 = vpop.f32.mrb[0].mxu0
        %v436 = vadd.f32 %v305, %v435
        %v437 = vpop.f32.mrb[0].mxu0
        %438 = vmatprep.mubr.bf16.mxu0 0
        %439 = vmatmul.mubr.bf16.gmra.mrb[0].mxu0 %v376
        %v440 = vpop.f32.mrb[0].mxu0
        %v441 = vadd.f32 %v310, %v440
        %v442 = vpop.f32.mrb[0].mxu0
        %v443 = vpop.f32.mrb[0].mxu0
        %v444 = vpop.f32.mrb[0].mxu0
        %445 = vdwg.mxu0
        %v446 = vmax.f32 %v417, 0.0
        %v447 = vmax.f32 %v420, 0.0
        %v448 = vmax.f32 %v425, 0.0
        %v449 = vmax.f32 %v428, 0.0
        %v450 = vmax.f32 %v433, 0.0
        %v451 = vmax.f32 %v436, 0.0
        %v452 = vmax.f32 %v441, 0.0
        %v453 = vpack.c.bf16 %v447, %v446
        %v454 = vpack.c.bf16 %v449, %v448
        %v455 = vpack.c.bf16 %v451, %v450
        %v456 = vpack.c.bf16 %v452, %v452
        %v461 = vunpack.c.l.b16 %v453
        %v462 = vunpack.c.h.b16 %v453
        %v463 = vunpack.c.l.b16 %v454
        %v464 = vunpack.c.h.b16 %v454
        %v465 = vunpack.c.l.b16 %v455
        %v466 = vunpack.c.h.b16 %v455
        %v467 = vunpack.c.l.b16 %v456
        %v468 = vpack.c.b16 %v461, %v461
        %v469 = vpack.c.b16 %v462, %v462
        %v470 = vpack.c.b16 %v463, %v463
        %v471 = vpack.c.b16 %v464, %v464
        %v472 = vpack.c.b16 %v465, %v465
        %v473 = vpack.c.b16 %v466, %v466
        %v474 = vpack.c.b16 %v467, %v467
        %482 = vst [vmem:[%s249] sm:$0xf] %v468
        %483 = vst [vmem:[%s249 + $0x4] sm:$0xf] %v469
        %484 = vst [vmem:[%s249 + $0x8] sm:$0xf] %v470
        %485 = vst [vmem:[%s249 + $0xc] sm:$0xf] %v471
        %486 = vst [vmem:[%s249 + $0x10] sm:$0xf] %v472
        %487 = vst [vmem:[%s249 + $0x14] sm:$0xf] %v473
        %488 = vst [vmem:[%s249 + $0x18] sm:$0x1] %v474
        %s489 = sand.u32 %s90, 1
        %s490 = sand.u32 %s90, 1
        %s491 = smul.addr %s490, 28
        %s492 = scalar_lea.vmem [#allocation3], %s491
        // Predicated region
        $region74: #{custom_net_forward.4} parent=68 // pred_check
          %p493 = pneg %p100
        $region75: #{custom_net_forward.4} parent=68 // pred_check_branch
          %495 = sbr.rel (%p493) target = $region77
        $region76: #{custom_net_forward.4} parent=68 // pred_region
          %s496 = smul.addr %s14, 4
          %s497 = scalar_lea.vmem %s3, %s496
          // Predicated region
          $region78: #{custom_net_forward.4} parent=76 // pred_check
            _
          $region79: #{custom_net_forward.4} parent=76 // pred_check_branch
            %499 = sbr.rel (0) target = $region81
          $region80: #{custom_net_forward.4} parent=76 // pred_region
            // Predicated region
            $region82: #{custom_net_forward.4} parent=80 // pred_check
              _
            $region83: #{custom_net_forward.4} parent=80 // pred_check_branch
              %501 = sbr.rel target = $region85
            $region84: #{custom_net_forward.4} parent=80 // pred_region
              // Predicated region
              $region97: #{custom_net_forward.4} parent=84 // pred_check
                _
              $region98: #{custom_net_forward.4} parent=84 // pred_check_branch
                %528 = sbr.rel (0) target = $region100
              $region99: #{custom_net_forward.4} parent=84 // pred_region
                loop: start=0, step=1, limit=1
                $region101: #{custom_net_forward.4} parent=99 // loop_pre_header
                  _
                $region102: #{custom_net_forward.4} parent=99 // loop_header
                  %s530 = sphi 0, %s534
                  %p531 = scmp.ge.s32.totalorder %s530, 1
                  %s535 = sphi %s492, %s492
                  %s536 = sphi %s497, %s497
                $region103: #{custom_net_forward.4} parent=99 // loop_header_branch
                  %533 = sbr.rel (%p531) target = $region107
                $region104: #{custom_net_forward.4} parent=99 // loop_body
                  _
                $region105: #{custom_net_forward.4} parent=99 // loop_footer
                  %s534 = sadd.s32 1, %s530
                $region106: #{custom_net_forward.4} parent=99 // loop_footer_branch
                  %529 = sbr.rel target = $region102
                $region107: #{custom_net_forward.4} parent=99 // loop_exit
                  _
                loop: start=0, step=1, limit=1
                $region108: #{custom_net_forward.4} parent=99 // loop_pre_header
                  _
                $region109: #{custom_net_forward.4} parent=99 // loop_header
                  %s539 = sphi 0, %s543
                  %p540 = scmp.ge.s32.totalorder %s539, 1
                  %s544 = sphi %s492, %s492
                  %s545 = sphi %s497, %s497
                $region110: #{custom_net_forward.4} parent=99 // loop_header_branch
                  %542 = sbr.rel (%p540) target = $region114
                $region111: #{custom_net_forward.4} parent=99 // loop_body
                  %v546 = vld [vmem:[%s544] sm:$0xf]
                  %547 = vst [vmem:[%s545] sm:$0xf] %v546
                  %v548 = vld [vmem:[%s544 + $0x4] sm:$0xf]
                  %549 = vst [vmem:[%s545 + $0x8] sm:$0xf] %v548
                  %v550 = vld [vmem:[%s544 + $0x8] sm:$0xf]
                  %551 = vst [vmem:[%s545 + $0x10] sm:$0xf] %v550
                  %v552 = vld [vmem:[%s544 + $0xc] sm:$0xf]
                  %553 = vst [vmem:[%s545 + $0x18] sm:$0xf] %v552
                  %v554 = vld [vmem:[%s544 + $0x10] sm:$0xf]
                  %555 = vst [vmem:[%s545 + $0x20] sm:$0xf] %v554
                  %v556 = vld [vmem:[%s544 + $0x14] sm:$0xf]
                  %557 = vst [vmem:[%s545 + $0x28] sm:$0xf] %v556
                  %v558 = vld [vmem:[%s544 + $0x18] sm:$0xf]
                  %559 = vst [vmem:[%s545 + $0x30] sm:$0xf] %v558
                $region112: #{custom_net_forward.4} parent=99 // loop_footer
                  %s543 = sadd.s32 1, %s539
                $region113: #{custom_net_forward.4} parent=99 // loop_footer_branch
                  %538 = sbr.rel target = $region109
                $region114: #{custom_net_forward.4} parent=99 // loop_exit
                  _
              $region100: #{custom_net_forward.4} parent=84 // pred_fallthru
                _
            $region85: #{custom_net_forward.4} parent=80 // pred_fallthru
              _
            // Predicated region
            $region86: #{custom_net_forward.4} parent=80 // pred_check
              _
            $region87: #{custom_net_forward.4} parent=80 // pred_check_branch
              %503 = sbr.rel (0) target = $region89
            $region88: #{custom_net_forward.4} parent=80 // pred_region
              loop: start=0, step=1, limit=1
              $region90: #{custom_net_forward.4} parent=88 // loop_pre_header
                _
              $region91: #{custom_net_forward.4} parent=88 // loop_header
                %s506 = sphi 0, %s510
                %p507 = scmp.ge.s32.totalorder %s506, 1
                %s511 = sphi %s492, %s492
                %s512 = sphi %s497, %s497
              $region92: #{custom_net_forward.4} parent=88 // loop_header_branch
                %509 = sbr.rel (%p507) target = $region96
              $region93: #{custom_net_forward.4} parent=88 // loop_body
                %v513 = vld [vmem:[%s511] sm:$0xf]
                %514 = vst [vmem:[%s512] sm:$0xf] %v513
                %v515 = vld [vmem:[%s511 + $0x4] sm:$0xf]
                %516 = vst [vmem:[%s512 + $0x8] sm:$0xf] %v515
                %v517 = vld [vmem:[%s511 + $0x8] sm:$0xf]
                %518 = vst [vmem:[%s512 + $0x10] sm:$0xf] %v517
                %v519 = vld [vmem:[%s511 + $0xc] sm:$0xf]
                %520 = vst [vmem:[%s512 + $0x18] sm:$0xf] %v519
                %v521 = vld [vmem:[%s511 + $0x10] sm:$0xf]
                %522 = vst [vmem:[%s512 + $0x20] sm:$0xf] %v521
                %v523 = vld [vmem:[%s511 + $0x14] sm:$0xf]
                %524 = vst [vmem:[%s512 + $0x28] sm:$0xf] %v523
                %v525 = vld [vmem:[%s511 + $0x18] sm:$0xf]
                %526 = vst [vmem:[%s512 + $0x30] sm:$0xf] %v525
              $region94: #{custom_net_forward.4} parent=88 // loop_footer
                %s510 = sadd.s32 1, %s506
              $region95: #{custom_net_forward.4} parent=88 // loop_footer_branch
                %505 = sbr.rel target = $region91
              $region96: #{custom_net_forward.4} parent=88 // loop_exit
                _
            $region89: #{custom_net_forward.4} parent=80 // pred_fallthru
              _
          $region81: #{custom_net_forward.4} parent=76 // pred_fallthru
            _
          %560 = vnop
        $region77: #{custom_net_forward.4} parent=68 // pred_fallthru
          _
      $region69: #{custom_net_forward.4} parent=5 // pred_fallthru
        _
      %p561 = scmp.le.s32.totalorder 2, %s9
      // Predicated region
      $region115: #{custom_net_forward.4} parent=5 // pred_check
        %p562 = pneg %p561
      $region116: #{custom_net_forward.4} parent=5 // pred_check_branch
        %564 = sbr.rel (%p562) target = $region118
      $region117: #{custom_net_forward.4} parent=5 // pred_region
        %s565 = ssub.s32 %s9, 2
        // Predicated region
        $region119: #{custom_net_forward.4} parent=117 // pred_check
          %p566 = pneg %p106
        $region120: #{custom_net_forward.4} parent=117 // pred_check_branch
          %568 = sbr.rel (%p566) target = $region122
        $region121: #{custom_net_forward.4} parent=117 // pred_region
          %s569 = sand.u32 %s91, 1
          %s570 = sand.u32 %s91, 1
          %s571 = smul.addr %s570, 28
          %s572 = scalar_lea.vmem [#allocation3], %s571
        $region122: #{custom_net_forward.4} parent=117 // pred_fallthru
          _
      $region118: #{custom_net_forward.4} parent=5 // pred_fallthru
        _
    $region6: #{custom_net_forward.4} parent=1 // loop_footer
      %s13 = sadd.s32 1, %s9
    $region7: #{custom_net_forward.4} parent=1 // loop_footer_branch
      %8 = sbr.rel target = $region3
    $region8: #{custom_net_forward.4} parent=1 // loop_exit
      _

// kernel: custom_net_forward.5
$region0: #{custom_net_forward.5}
  #allocation0 [shape = 'u32[]', space=smem, size = 0x4, offset = 0x4, fixed_abs, tag = 'smem constant byte address 0x4 - core index']
  #allocation1 [shape = 'u32[144,128]{1,0:T(1,128)}', space=vmem, size = 0x12000, scoped, tag = 'internal scratch']
  %s0 = inlined_call_operand.vmem [shape: bf16[4,2,450], index: 0, kind: input, shape index: {}]
  %s1 = inlined_call_operand.vmem [shape: bf16[450,250], index: 1, kind: input, shape index: {}]
  %s2 = inlined_call_operand.vmem [shape: f32[1,250], index: 2, kind: input, shape index: {}]
  %s3 = inlined_call_operand.vmem [shape: bf16[250,1000], index: 3, kind: input, shape index: {}]
  %s4 = inlined_call_operand.vmem [shape: f32[1,1000], index: 4, kind: input, shape index: {}]
  %s5 = inlined_call_operand.vmem [shape: bf16[1000,150], index: 5, kind: input, shape index: {}]
  %s6 = inlined_call_operand.vmem [shape: f32[1,150], index: 6, kind: input, shape index: {}]
  %s7 = inlined_call_operand.vmem [shape: bf16[150,2], index: 7, kind: input, shape index: {}]
  %s8 = inlined_call_operand.vmem [shape: f32[1,2], index: 8, kind: input, shape index: {}]
  %s9 = inlined_call_operand.hbm [shape: f32[2,2], index: 9, kind: output, shape index: {}]
  %s10 = sld [smem:[#allocation0]]
  $region46: #{custom_net_forward.5} parent=0
    _
  %s12 = ssub.s32 1, %s10
  %s13 = scalar_select 0, %s12, %s10
  $region1: #{custom_net_forward.5} parent=0
    #allocation2 [shape = 'u8[1024]{0}', space=vmem, size = 0x400, scoped, tag = 'output window, operand 0, single buffered']
    #allocation3 [shape = 's32[1]{0}', space=sflag, size = 0x4, scoped, tag = 'scoped memory for custom_net_forward.5']
    %14 = vsyncpa [#allocation3], 0
    // Predicated region
    $region2: #{custom_net_forward.5} parent=1 // pred_check
      _
    $region3: #{custom_net_forward.5} parent=1 // pred_check_branch
      %16 = sbr.rel (0) target = $region5
    $region4: #{custom_net_forward.5} parent=1 // pred_region
      _
    $region5: #{custom_net_forward.5} parent=1 // pred_fallthru
      _
    // Predicated region
    $region6: #{custom_net_forward.5} parent=1 // pred_check
      _
    $region7: #{custom_net_forward.5} parent=1 // pred_check_branch
      %18 = sbr.rel (0) target = $region9
    $region8: #{custom_net_forward.5} parent=1 // pred_region
      _
    $region9: #{custom_net_forward.5} parent=1 // pred_fallthru
      _
    // Predicated region
    $region10: #{custom_net_forward.5} parent=1 // pred_check
      _
    $region11: #{custom_net_forward.5} parent=1 // pred_check_branch
      %20 = sbr.rel (0) target = $region13
    $region12: #{custom_net_forward.5} parent=1 // pred_region
      _
    $region13: #{custom_net_forward.5} parent=1 // pred_fallthru
      _
    // Predicated region
    $region14: #{custom_net_forward.5} parent=1 // pred_check
      _
    $region15: #{custom_net_forward.5} parent=1 // pred_check_branch
      %22 = sbr.rel (0) target = $region17
    $region16: #{custom_net_forward.5} parent=1 // pred_region
      _
    $region17: #{custom_net_forward.5} parent=1 // pred_fallthru
      _
    // Predicated region
    $region18: #{custom_net_forward.5} parent=1 // pred_check
      _
    $region19: #{custom_net_forward.5} parent=1 // pred_check_branch
      %24 = sbr.rel (0) target = $region21
    $region20: #{custom_net_forward.5} parent=1 // pred_region
      _
    $region21: #{custom_net_forward.5} parent=1 // pred_fallthru
      _
    // Predicated region
    $region22: #{custom_net_forward.5} parent=1 // pred_check
      _
    $region23: #{custom_net_forward.5} parent=1 // pred_check_branch
      %26 = sbr.rel (0) target = $region25
    $region24: #{custom_net_forward.5} parent=1 // pred_region
      _
    $region25: #{custom_net_forward.5} parent=1 // pred_fallthru
      _
    // Predicated region
    $region26: #{custom_net_forward.5} parent=1 // pred_check
      _
    $region27: #{custom_net_forward.5} parent=1 // pred_check_branch
      %28 = sbr.rel (0) target = $region29
    $region28: #{custom_net_forward.5} parent=1 // pred_region
      _
    $region29: #{custom_net_forward.5} parent=1 // pred_fallthru
      _
    // Predicated region
    $region30: #{custom_net_forward.5} parent=1 // pred_check
      _
    $region31: #{custom_net_forward.5} parent=1 // pred_check_branch
      %30 = sbr.rel (0) target = $region33
    $region32: #{custom_net_forward.5} parent=1 // pred_region
      _
    $region33: #{custom_net_forward.5} parent=1 // pred_fallthru
      _
    // Predicated region
    $region34: #{custom_net_forward.5} parent=1 // pred_check
      _
    $region35: #{custom_net_forward.5} parent=1 // pred_check_branch
      %32 = sbr.rel (0) target = $region37
    $region36: #{custom_net_forward.5} parent=1 // pred_region
      _
    $region37: #{custom_net_forward.5} parent=1 // pred_fallthru
      _
    %v34 = vld [vmem:[%s0] sm:$0xf]
    %v35 = vld [vmem:[%s1] sm:$0xff]
    %v36 = vld [vmem:[%s1 + $0x8] sm:$0xff]
    %v37 = vld [vmem:[%s1 + $0x10] sm:$0xff]
    %v38 = vld [vmem:[%s1 + $0x18] sm:$0xff]
    %v39 = vld [vmem:[%s1 + $0x20] sm:$0xff]
    %v40 = vld [vmem:[%s1 + $0x28] sm:$0xff]
    %v41 = vld [vmem:[%s1 + $0x30] sm:$0xff]
    %v42 = vld [vmem:[%s1 + $0x38] sm:$0xff]
    %v43 = vld [vmem:[%s1 + $0x40] sm:$0xff]
    %v44 = vld [vmem:[%s1 + $0x48] sm:$0xff]
    %v45 = vld [vmem:[%s1 + $0x50] sm:$0xff]
    %v46 = vld [vmem:[%s1 + $0x58] sm:$0xff]
    %v47 = vld [vmem:[%s1 + $0x60] sm:$0xff]
    %v48 = vld [vmem:[%s1 + $0x68] sm:$0xff]
    %v49 = vld [vmem:[%s1 + $0x70] sm:$0xff]
    %v50 = vld [vmem:[%s1 + $0x78] sm:$0xff]
    %v51 = vld [vmem:[%s1 + $0x80] sm:$0xff]
    %v52 = vld [vmem:[%s1 + $0x88] sm:$0xff]
    %v53 = vld [vmem:[%s1 + $0x90] sm:$0xff]
    %v54 = vld [vmem:[%s1 + $0x98] sm:$0xff]
    %v55 = vld [vmem:[%s1 + $0xa0] sm:$0xff]
    %v56 = vld [vmem:[%s1 + $0xa8] sm:$0xff]
    %v57 = vld [vmem:[%s1 + $0xb0] sm:$0xff]
    %v58 = vld [vmem:[%s1 + $0xb8] sm:$0xff]
    %v59 = vld [vmem:[%s1 + $0xc0] sm:$0xff]
    %v60 = vld [vmem:[%s1 + $0xc8] sm:$0xff]
    %v61 = vld [vmem:[%s1 + $0xd0] sm:$0xff]
    %v62 = vld [vmem:[%s1 + $0xd8] sm:$0xff]
    %v63 = vld [vmem:[%s1 + $0xe0] sm:$0xff]
    %v64 = vld [vmem:[%s1 + $0xe8] sm:$0xff]
    %v65 = vld [vmem:[%s1 + $0xf0] sm:$0xff]
    %v66 = vld [vmem:[%s1 + $0xf8] sm:$0xff]
    %v67 = vld [vmem:[%s1 + $0x100] sm:$0xff]
    %v68 = vld [vmem:[%s1 + $0x108] sm:$0xff]
    %v69 = vld [vmem:[%s1 + $0x110] sm:$0xff]
    %v70 = vld [vmem:[%s1 + $0x118] sm:$0xff]
    %v71 = vld [vmem:[%s1 + $0x120] sm:$0xff]
    %v72 = vld [vmem:[%s1 + $0x128] sm:$0xff]
    %v73 = vld [vmem:[%s1 + $0x130] sm:$0xff]
    %v74 = vld [vmem:[%s1 + $0x138] sm:$0xff]
    %v75 = vld [vmem:[%s1 + $0x140] sm:$0xff]
    %v76 = vld [vmem:[%s1 + $0x148] sm:$0xff]
    %v77 = vld [vmem:[%s1 + $0x150] sm:$0xff]
    %v78 = vld [vmem:[%s1 + $0x158] sm:$0xff]
    %v79 = vld [vmem:[%s1 + $0x160] sm:$0xff]
    %v80 = vld [vmem:[%s1 + $0x168] sm:$0xff]
    %v81 = vld [vmem:[%s1 + $0x170] sm:$0xff]
    %v82 = vld [vmem:[%s1 + $0x178] sm:$0xff]
    %v83 = vld [vmem:[%s1 + $0x180] sm:$0xff]
    %v84 = vld [vmem:[%s1 + $0x188] sm:$0xff]
    %v85 = vld [vmem:[%s1 + $0x190] sm:$0xff]
    %v86 = vld [vmem:[%s1 + $0x198] sm:$0xff]
    %v87 = vld [vmem:[%s1 + $0x1a0] sm:$0xff]
    %v88 = vld [vmem:[%s1 + $0x1a8] sm:$0xff]
    %v89 = vld [vmem:[%s1 + $0x1b0] sm:$0xff]
    %v90 = vld [vmem:[%s1 + $0x1b8] sm:$0xff]
    %v91 = vld [vmem:[%s1 + $0x1c0] sm:$0x11]
    %v92 = vld [vmem:[%s2] sm:$0x3]
    %v94 = vlaneseq
    %v95 = vshrl.u32 %v94, 7
    %v96 = vsub.s32 0, %v95
    %v97 = vrot.slane %v92, %v96
    %v98 = vlaneseq
    %v99 = vshrl.u32 %v98, 7
    %v100 = vsub.s32 1, %v99
    %v101 = vrot.slane %v92, %v100
    %v106 = vunpack.c.l.s4 1966171168
    %v107 = vunpack.c.0.s8 %v106
    %v108 = vlaneseq
    %v109 = vshrl.u32 %v108, 7
    %v110 = vsub.s32 %v107, %v109
    %v111 = vrot.slane %v34, %v110
    %v112 = vcombine.high %v111, %v111
    %v114 = vunpack.c.l.s4 1966171168
    %v115 = vunpack.c.0.s8 %v114
    %v116 = vlaneseq
    %v117 = vshrl.u32 %v116, 7
    %v118 = vsub.s32 %v115, %v117
    %v119 = vrot.slane %v111, %v118
    %v121 = vunpack.c.l.s4 1966171168
    %v122 = vunpack.c.0.s8 %v121
    %v123 = vlaneseq
    %v124 = vshrl.u32 %v123, 7
    %v125 = vsub.s32 %v122, %v124
    %v126 = vrot.slane %v112, %v125
    %v127 = vcombine.high %v119, %v119
    %v128 = vcombine.high %v126, %v126
    %v189 = vunpack.c.l.b16 %v35
    %v190 = vunpack.c.h.b16 %v35
    %v191 = vunpack.c.l.b16 %v36
    %v192 = vunpack.c.h.b16 %v36
    %v193 = vunpack.c.l.b16 %v37
    %v194 = vunpack.c.h.b16 %v37
    %v195 = vunpack.c.l.b16 %v38
    %v196 = vunpack.c.h.b16 %v38
    %v197 = vunpack.c.l.b16 %v39
    %v198 = vunpack.c.h.b16 %v39
    %v199 = vunpack.c.l.b16 %v40
    %v200 = vunpack.c.h.b16 %v40
    %v201 = vunpack.c.l.b16 %v41
    %v202 = vunpack.c.h.b16 %v41
    %v203 = vunpack.c.l.b16 %v42
    %v204 = vunpack.c.h.b16 %v42
    %v205 = vunpack.c.l.b16 %v43
    %v206 = vunpack.c.h.b16 %v43
    %v207 = vunpack.c.l.b16 %v44
    %v208 = vunpack.c.h.b16 %v44
    %v209 = vunpack.c.l.b16 %v45
    %v210 = vunpack.c.h.b16 %v45
    %v211 = vunpack.c.l.b16 %v46
    %v212 = vunpack.c.h.b16 %v46
    %v213 = vunpack.c.l.b16 %v47
    %v214 = vunpack.c.h.b16 %v47
    %v215 = vunpack.c.l.b16 %v48
    %v216 = vunpack.c.h.b16 %v48
    %v217 = vunpack.c.l.b16 %v49
    %v218 = vunpack.c.h.b16 %v49
    %v219 = vunpack.c.l.b16 %v50
    %v220 = vunpack.c.h.b16 %v50
    %v221 = vunpack.c.l.b16 %v51
    %v222 = vunpack.c.h.b16 %v51
    %v223 = vunpack.c.l.b16 %v52
    %v224 = vunpack.c.h.b16 %v52
    %v225 = vunpack.c.l.b16 %v53
    %v226 = vunpack.c.h.b16 %v53
    %v227 = vunpack.c.l.b16 %v54
    %v228 = vunpack.c.h.b16 %v54
    %v229 = vunpack.c.l.b16 %v55
    %v230 = vunpack.c.h.b16 %v55
    %v231 = vunpack.c.l.b16 %v56
    %v232 = vunpack.c.h.b16 %v56
    %v233 = vunpack.c.l.b16 %v57
    %v234 = vunpack.c.h.b16 %v57
    %v235 = vunpack.c.l.b16 %v58
    %v236 = vunpack.c.h.b16 %v58
    %v237 = vunpack.c.l.b16 %v59
    %v238 = vunpack.c.h.b16 %v59
    %v239 = vunpack.c.l.b16 %v60
    %v240 = vunpack.c.h.b16 %v60
    %v241 = vunpack.c.l.b16 %v61
    %v242 = vunpack.c.h.b16 %v61
    %v243 = vunpack.c.l.b16 %v62
    %v244 = vunpack.c.h.b16 %v62
    %v245 = vunpack.c.l.b16 %v63
    %v246 = vunpack.c.h.b16 %v63
    %v247 = vunpack.c.l.b16 %v64
    %v248 = vunpack.c.h.b16 %v64
    %v249 = vunpack.c.l.b16 %v65
    %v250 = vunpack.c.h.b16 %v65
    %v251 = vunpack.c.l.b16 %v66
    %v252 = vunpack.c.h.b16 %v66
    %v253 = vunpack.c.l.b16 %v67
    %v254 = vunpack.c.h.b16 %v67
    %v255 = vunpack.c.l.b16 %v68
    %v256 = vunpack.c.h.b16 %v68
    %v257 = vunpack.c.l.b16 %v69
    %v258 = vunpack.c.h.b16 %v69
    %v259 = vunpack.c.l.b16 %v70
    %v260 = vunpack.c.h.b16 %v70
    %v261 = vunpack.c.l.b16 %v71
    %v262 = vunpack.c.h.b16 %v71
    %v263 = vunpack.c.l.b16 %v72
    %v264 = vunpack.c.h.b16 %v72
    %v265 = vunpack.c.l.b16 %v73
    %v266 = vunpack.c.h.b16 %v73
    %v267 = vunpack.c.l.b16 %v74
    %v268 = vunpack.c.h.b16 %v74
    %v269 = vunpack.c.l.b16 %v75
    %v270 = vunpack.c.h.b16 %v75
    %v271 = vunpack.c.l.b16 %v76
    %v272 = vunpack.c.h.b16 %v76
    %v273 = vunpack.c.l.b16 %v77
    %v274 = vunpack.c.h.b16 %v77
    %v275 = vunpack.c.l.b16 %v78
    %v276 = vunpack.c.h.b16 %v78
    %v277 = vunpack.c.l.b16 %v79
    %v278 = vunpack.c.h.b16 %v79
    %v279 = vunpack.c.l.b16 %v80
    %v280 = vunpack.c.h.b16 %v80
    %v281 = vunpack.c.l.b16 %v81
    %v282 = vunpack.c.h.b16 %v81
    %v283 = vunpack.c.l.b16 %v82
    %v284 = vunpack.c.h.b16 %v82
    %v285 = vunpack.c.l.b16 %v83
    %v286 = vunpack.c.h.b16 %v83
    %v287 = vunpack.c.l.b16 %v84
    %v288 = vunpack.c.h.b16 %v84
    %v289 = vunpack.c.l.b16 %v85
    %v290 = vunpack.c.h.b16 %v85
    %v291 = vunpack.c.l.b16 %v86
    %v292 = vunpack.c.h.b16 %v86
    %v293 = vunpack.c.l.b16 %v87
    %v294 = vunpack.c.h.b16 %v87
    %v295 = vunpack.c.l.b16 %v88
    %v296 = vunpack.c.h.b16 %v88
    %v297 = vunpack.c.l.b16 %v89
    %v298 = vunpack.c.h.b16 %v89
    %v299 = vunpack.c.l.b16 %v90
    %v300 = vunpack.c.h.b16 %v90
    %v301 = vunpack.c.l.b16 %v91
    %v302 = vunpack.c.h.b16 %v91
    %v303 = vpack.c.b16 %v191, %v189
    %v304 = vpack.c.b16 %v192, %v190
    %v305 = vpack.c.b16 %v195, %v193
    %v306 = vpack.c.b16 %v196, %v194
    %v307 = vpack.c.b16 %v199, %v197
    %v308 = vpack.c.b16 %v200, %v198
    %v309 = vpack.c.b16 %v203, %v201
    %v310 = vpack.c.b16 %v204, %v202
    %v311 = vpack.c.b16 %v207, %v205
    %v312 = vpack.c.b16 %v208, %v206
    %v313 = vpack.c.b16 %v211, %v209
    %v314 = vpack.c.b16 %v212, %v210
    %v315 = vpack.c.b16 %v215, %v213
    %v316 = vpack.c.b16 %v216, %v214
    %v317 = vpack.c.b16 %v219, %v217
    %v318 = vpack.c.b16 %v220, %v218
    %v319 = vpack.c.b16 %v223, %v221
    %v320 = vpack.c.b16 %v224, %v222
    %v321 = vpack.c.b16 %v227, %v225
    %v322 = vpack.c.b16 %v228, %v226
    %v323 = vpack.c.b16 %v231, %v229
    %v324 = vpack.c.b16 %v232, %v230
    %v325 = vpack.c.b16 %v235, %v233
    %v326 = vpack.c.b16 %v236, %v234
    %v327 = vpack.c.b16 %v239, %v237
    %v328 = vpack.c.b16 %v240, %v238
    %v329 = vpack.c.b16 %v243, %v241
    %v330 = vpack.c.b16 %v244, %v242
    %v331 = vpack.c.b16 %v247, %v245
    %v332 = vpack.c.b16 %v248, %v246
    %v333 = vpack.c.b16 %v251, %v249
    %v334 = vpack.c.b16 %v252, %v250
    %v335 = vpack.c.b16 %v255, %v253
    %v336 = vpack.c.b16 %v256, %v254
    %v337 = vpack.c.b16 %v259, %v257
    %v338 = vpack.c.b16 %v260, %v258
    %v339 = vpack.c.b16 %v263, %v261
    %v340 = vpack.c.b16 %v264, %v262
    %v341 = vpack.c.b16 %v267, %v265
    %v342 = vpack.c.b16 %v268, %v266
    %v343 = vpack.c.b16 %v271, %v269
    %v344 = vpack.c.b16 %v272, %v270
    %v345 = vpack.c.b16 %v275, %v273
    %v346 = vpack.c.b16 %v276, %v274
    %v347 = vpack.c.b16 %v279, %v277
    %v348 = vpack.c.b16 %v280, %v278
    %v349 = vpack.c.b16 %v283, %v281
    %v350 = vpack.c.b16 %v284, %v282
    %v351 = vpack.c.b16 %v287, %v285
    %v352 = vpack.c.b16 %v288, %v286
    %v353 = vpack.c.b16 %v291, %v289
    %v354 = vpack.c.b16 %v292, %v290
    %v355 = vpack.c.b16 %v295, %v293
    %v356 = vpack.c.b16 %v296, %v294
    %v357 = vpack.c.b16 %v299, %v297
    %v358 = vpack.c.b16 %v300, %v298
    %v359 = vpack.c.b16 %v301, %v301
    %v360 = vpack.c.b16 %v302, %v302
    %vm417 = vcmask 539648
    %v419 = vsel %vm417, %v128, 0
    %vm421 = vcmask 1040384
    %v423 = vsel %vm421, %v359, 0
    %v426 = vsel %vm421, %v360, 0
    %428 = vmatprep.subr.bf16.mxu0 %v304
    %429 = vmatpush1.bf16.msra.mxu0 %v303
    %430 = vmatprep.subr.bf16.mxu0 %v306
    %431 = vmatpush1.bf16.msra.mxu0 %v305
    %432 = vmatprep.subr.bf16.mxu0 %v308
    %433 = vmatpush1.bf16.msra.mxu0 %v307
    %434 = vmatprep.subr.bf16.mxu0 %v310
    %435 = vmatpush1.bf16.msra.mxu0 %v309
    %436 = vmatprep.subr.bf16.mxu0 %v312
    %437 = vmatpush1.bf16.msra.mxu0 %v311
    %438 = vmatprep.subr.bf16.mxu0 %v314
    %439 = vmatpush1.bf16.msra.mxu0 %v313
    %440 = vmatprep.subr.bf16.mxu0 %v316
    %441 = vmatpush1.bf16.msra.mxu0 %v315
    %442 = vmatprep.subr.bf16.mxu0 %v318
    %443 = vmatpush1.bf16.msra.mxu0 %v317
    %444 = vmatprep.subr.bf16.mxu0 %v320
    %445 = vmatpush1.bf16.msra.mxu0 %v319
    %446 = vmatprep.subr.bf16.mxu0 %v322
    %447 = vmatpush1.bf16.msra.mxu0 %v321
    %448 = vmatprep.subr.bf16.mxu0 %v324
    %449 = vmatpush1.bf16.msra.mxu0 %v323
    %450 = vmatprep.subr.bf16.mxu0 %v326
    %451 = vmatpush1.bf16.msra.mxu0 %v325
    %452 = vmatprep.subr.bf16.mxu0 %v328
    %453 = vmatpush1.bf16.msra.mxu0 %v327
    %454 = vmatprep.subr.bf16.mxu0 %v330
    %455 = vmatpush1.bf16.msra.mxu0 %v329
    %456 = vmatprep.subr.bf16.mxu0 %v332
    %457 = vmatpush1.bf16.msra.mxu0 %v331
    %458 = vmatprep.subr.bf16.mxu0 %v334
    %459 = vmatpush1.bf16.msra.mxu0 %v333
    %460 = vmatprep.mubr.bf16.mxu0 %v126
    %461 = vmatmul.mubr.bf16.gmra.mrb[0].mxu0 %v119
    %v462 = vpop.f32.mrb[0].mxu0
    %v463 = vadd.f32 %v97, %v462
    %v464 = vpop.f32.mrb[0].mxu0
    %v465 = vadd.f32 %v101, %v464
    %v466 = vpop.f32.mrb[0].mxu0
    %v467 = vpop.f32.mrb[0].mxu0
    %468 = vdwg.mxu0
    %469 = vmatprep.subr.bf16.mxu0 %v336
    %470 = vmatpush1.bf16.msra.mxu0 %v335
    %471 = vmatprep.subr.bf16.mxu0 %v338
    %472 = vmatpush1.bf16.msra.mxu0 %v337
    %473 = vmatprep.subr.bf16.mxu0 %v340
    %474 = vmatpush1.bf16.msra.mxu0 %v339
    %475 = vmatprep.subr.bf16.mxu0 %v342
    %476 = vmatpush1.bf16.msra.mxu0 %v341
    %477 = vmatprep.subr.bf16.mxu0 %v344
    %478 = vmatpush1.bf16.msra.mxu0 %v343
    %479 = vmatprep.subr.bf16.mxu0 %v346
    %480 = vmatpush1.bf16.msra.mxu0 %v345
    %481 = vmatprep.subr.bf16.mxu0 %v348
    %482 = vmatpush1.bf16.msra.mxu0 %v347
    %483 = vmatprep.subr.bf16.mxu0 %v350
    %484 = vmatpush1.bf16.msra.mxu0 %v349
    %485 = vmatprep.subr.bf16.mxu0 %v352
    %486 = vmatpush1.bf16.msra.mxu0 %v351
    %487 = vmatprep.subr.bf16.mxu0 %v354
    %488 = vmatpush1.bf16.msra.mxu0 %v353
    %489 = vmatprep.subr.bf16.mxu0 %v356
    %490 = vmatpush1.bf16.msra.mxu0 %v355
    %491 = vmatprep.subr.bf16.mxu0 %v358
    %492 = vmatpush1.bf16.msra.mxu0 %v357
    %493 = vmatprep.subr.bf16.mxu0 %v426
    %494 = vmatpush1.bf16.msra.mxu0 %v423
    %495 = vmatprep.subr.bf16.mxu0 0
    %496 = vmatpush1.bf16.msra.mxu0 0
    %497 = vmatprep.subr.bf16.mxu0 0
    %498 = vmatpush1.bf16.msra.mxu0 0
    %499 = vmatprep.subr.bf16.mxu0 0
    %500 = vmatpush1.bf16.msra.mxu0 0
    %501 = vmatprep.mubr.bf16.mxu0 %v419
    %502 = vmatmul.mubr.bf16.gmra.mrb[0].mxu0 %v127
    %v503 = vpop.f32.mrb[0].mxu0
    %v504 = vadd.f32 %v463, %v503
    %v505 = vpop.f32.mrb[0].mxu0
    %v506 = vadd.f32 %v465, %v505
    %v507 = vpop.f32.mrb[0].mxu0
    %v508 = vpop.f32.mrb[0].mxu0
    %509 = vdwg.mxu0
    %s510 = scalar_lea.vmem %s0, 4
    %v511 = vld [vmem:[%s510] sm:$0xf]
    %v514 = vunpack.c.l.s4 1966171168
    %v515 = vunpack.c.0.s8 %v514
    %v516 = vlaneseq
    %v517 = vshrl.u32 %v516, 7
    %v518 = vsub.s32 %v515, %v517
    %v519 = vrot.slane %v511, %v518
    %v520 = vcombine.high %v519, %v519
    %v522 = vunpack.c.l.s4 1966171168
    %v523 = vunpack.c.0.s8 %v522
    %v524 = vlaneseq
    %v525 = vshrl.u32 %v524, 7
    %v526 = vsub.s32 %v523, %v525
    %v527 = vrot.slane %v519, %v526
    %v529 = vunpack.c.l.s4 1966171168
    %v530 = vunpack.c.0.s8 %v529
    %v531 = vlaneseq
    %v532 = vshrl.u32 %v531, 7
    %v533 = vsub.s32 %v530, %v532
    %v534 = vrot.slane %v520, %v533
    %v535 = vcombine.high %v527, %v527
    %v536 = vcombine.high %v534, %v534
    %v541 = vsel %vm417, %v536, 0
    %543 = vmatprep.subr.bf16.mxu0 %v304
    %544 = vmatpush1.bf16.msra.mxu0 %v303
    %545 = vmatprep.subr.bf16.mxu0 %v306
    %546 = vmatpush1.bf16.msra.mxu0 %v305
    %547 = vmatprep.subr.bf16.mxu0 %v308
    %548 = vmatpush1.bf16.msra.mxu0 %v307
    %549 = vmatprep.subr.bf16.mxu0 %v310
    %550 = vmatpush1.bf16.msra.mxu0 %v309
    %551 = vmatprep.subr.bf16.mxu0 %v312
    %552 = vmatpush1.bf16.msra.mxu0 %v311
    %553 = vmatprep.subr.bf16.mxu0 %v314
    %554 = vmatpush1.bf16.msra.mxu0 %v313
    %555 = vmatprep.subr.bf16.mxu0 %v316
    %556 = vmatpush1.bf16.msra.mxu0 %v315
    %557 = vmatprep.subr.bf16.mxu0 %v318
    %558 = vmatpush1.bf16.msra.mxu0 %v317
    %559 = vmatprep.subr.bf16.mxu0 %v320
    %560 = vmatpush1.bf16.msra.mxu0 %v319
    %561 = vmatprep.subr.bf16.mxu0 %v322
    %562 = vmatpush1.bf16.msra.mxu0 %v321
    %563 = vmatprep.subr.bf16.mxu0 %v324
    %564 = vmatpush1.bf16.msra.mxu0 %v323
    %565 = vmatprep.subr.bf16.mxu0 %v326
    %566 = vmatpush1.bf16.msra.mxu0 %v325
    %567 = vmatprep.subr.bf16.mxu0 %v328
    %568 = vmatpush1.bf16.msra.mxu0 %v327
    %569 = vmatprep.subr.bf16.mxu0 %v330
    %570 = vmatpush1.bf16.msra.mxu0 %v329
    %571 = vmatprep.subr.bf16.mxu0 %v332
    %572 = vmatpush1.bf16.msra.mxu0 %v331
    %573 = vmatprep.subr.bf16.mxu0 %v334
    %574 = vmatpush1.bf16.msra.mxu0 %v333
    %575 = vmatprep.mubr.bf16.mxu0 %v534
    %576 = vmatmul.mubr.bf16.gmra.mrb[0].mxu0 %v527
    %v577 = vpop.f32.mrb[0].mxu0
    %v578 = vadd.f32 %v97, %v577
    %v579 = vpop.f32.mrb[0].mxu0
    %v580 = vadd.f32 %v101, %v579
    %v581 = vpop.f32.mrb[0].mxu0
    %v582 = vpop.f32.mrb[0].mxu0
    %583 = vdwg.mxu0
    %584 = vmatprep.subr.bf16.mxu0 %v336
    %585 = vmatpush1.bf16.msra.mxu0 %v335
    %586 = vmatprep.subr.bf16.mxu0 %v338
    %587 = vmatpush1.bf16.msra.mxu0 %v337
    %588 = vmatprep.subr.bf16.mxu0 %v340
    %589 = vmatpush1.bf16.msra.mxu0 %v339
    %590 = vmatprep.subr.bf16.mxu0 %v342
    %591 = vmatpush1.bf16.msra.mxu0 %v341
    %592 = vmatprep.subr.bf16.mxu0 %v344
    %593 = vmatpush1.bf16.msra.mxu0 %v343
    %594 = vmatprep.subr.bf16.mxu0 %v346
    %595 = vmatpush1.bf16.msra.mxu0 %v345
    %596 = vmatprep.subr.bf16.mxu0 %v348
    %597 = vmatpush1.bf16.msra.mxu0 %v347
    %598 = vmatprep.subr.bf16.mxu0 %v350
    %599 = vmatpush1.bf16.msra.mxu0 %v349
    %600 = vmatprep.subr.bf16.mxu0 %v352
    %601 = vmatpush1.bf16.msra.mxu0 %v351
    %602 = vmatprep.subr.bf16.mxu0 %v354
    %603 = vmatpush1.bf16.msra.mxu0 %v353
    %604 = vmatprep.subr.bf16.mxu0 %v356
    %605 = vmatpush1.bf16.msra.mxu0 %v355
    %606 = vmatprep.subr.bf16.mxu0 %v358
    %607 = vmatpush1.bf16.msra.mxu0 %v357
    %608 = vmatprep.subr.bf16.mxu0 %v426
    %609 = vmatpush1.bf16.msra.mxu0 %v423
    %610 = vmatprep.subr.bf16.mxu0 0
    %611 = vmatpush1.bf16.msra.mxu0 0
    %612 = vmatprep.subr.bf16.mxu0 0
    %613 = vmatpush1.bf16.msra.mxu0 0
    %614 = vmatprep.subr.bf16.mxu0 0
    %615 = vmatpush1.bf16.msra.mxu0 0
    %616 = vmatprep.mubr.bf16.mxu0 %v541
    %617 = vmatmul.mubr.bf16.gmra.mrb[0].mxu0 %v535
    %v618 = vpop.f32.mrb[0].mxu0
    %v619 = vadd.f32 %v578, %v618
    %v620 = vpop.f32.mrb[0].mxu0
    %v621 = vadd.f32 %v580, %v620
    %v622 = vpop.f32.mrb[0].mxu0
    %v623 = vpop.f32.mrb[0].mxu0
    %624 = vdwg.mxu0
    %v625 = vmax.f32 %v504, %v619
    %v626 = vmax.f32 %v506, %v621
    %s627 = scalar_lea.vmem %s0, 8
    %v628 = vld [vmem:[%s627] sm:$0xf]
    %v631 = vunpack.c.l.s4 1966171168
    %v632 = vunpack.c.0.s8 %v631
    %v633 = vlaneseq
    %v634 = vshrl.u32 %v633, 7
    %v635 = vsub.s32 %v632, %v634
    %v636 = vrot.slane %v628, %v635
    %v637 = vcombine.high %v636, %v636
    %v639 = vunpack.c.l.s4 1966171168
    %v640 = vunpack.c.0.s8 %v639
    %v641 = vlaneseq
    %v642 = vshrl.u32 %v641, 7
    %v643 = vsub.s32 %v640, %v642
    %v644 = vrot.slane %v636, %v643
    %v646 = vunpack.c.l.s4 1966171168
    %v647 = vunpack.c.0.s8 %v646
    %v648 = vlaneseq
    %v649 = vshrl.u32 %v648, 7
    %v650 = vsub.s32 %v647, %v649
    %v651 = vrot.slane %v637, %v650
    %v652 = vcombine.high %v644, %v644
    %v653 = vcombine.high %v651, %v651
    %v658 = vsel %vm417, %v653, 0
    %660 = vmatprep.subr.bf16.mxu0 %v304
    %661 = vmatpush1.bf16.msra.mxu0 %v303
    %662 = vmatprep.subr.bf16.mxu0 %v306
    %663 = vmatpush1.bf16.msra.mxu0 %v305
    %664 = vmatprep.subr.bf16.mxu0 %v308
    %665 = vmatpush1.bf16.msra.mxu0 %v307
    %666 = vmatprep.subr.bf16.mxu0 %v310
    %667 = vmatpush1.bf16.msra.mxu0 %v309
    %668 = vmatprep.subr.bf16.mxu0 %v312
    %669 = vmatpush1.bf16.msra.mxu0 %v311
    %670 = vmatprep.subr.bf16.mxu0 %v314
    %671 = vmatpush1.bf16.msra.mxu0 %v313
    %672 = vmatprep.subr.bf16.mxu0 %v316
    %673 = vmatpush1.bf16.msra.mxu0 %v315
    %674 = vmatprep.subr.bf16.mxu0 %v318
    %675 = vmatpush1.bf16.msra.mxu0 %v317
    %676 = vmatprep.subr.bf16.mxu0 %v320
    %677 = vmatpush1.bf16.msra.mxu0 %v319
    %678 = vmatprep.subr.bf16.mxu0 %v322
    %679 = vmatpush1.bf16.msra.mxu0 %v321
    %680 = vmatprep.subr.bf16.mxu0 %v324
    %681 = vmatpush1.bf16.msra.mxu0 %v323
    %682 = vmatprep.subr.bf16.mxu0 %v326
    %683 = vmatpush1.bf16.msra.mxu0 %v325
    %684 = vmatprep.subr.bf16.mxu0 %v328
    %685 = vmatpush1.bf16.msra.mxu0 %v327
    %686 = vmatprep.subr.bf16.mxu0 %v330
    %687 = vmatpush1.bf16.msra.mxu0 %v329
    %688 = vmatprep.subr.bf16.mxu0 %v332
    %689 = vmatpush1.bf16.msra.mxu0 %v331
    %690 = vmatprep.subr.bf16.mxu0 %v334
    %691 = vmatpush1.bf16.msra.mxu0 %v333
    %692 = vmatprep.mubr.bf16.mxu0 %v651
    %693 = vmatmul.mubr.bf16.gmra.mrb[0].mxu0 %v644
    %v694 = vpop.f32.mrb[0].mxu0
    %v695 = vadd.f32 %v97, %v694
    %v696 = vpop.f32.mrb[0].mxu0
    %v697 = vadd.f32 %v101, %v696
    %v698 = vpop.f32.mrb[0].mxu0
    %v699 = vpop.f32.mrb[0].mxu0
    %700 = vdwg.mxu0
    %701 = vmatprep.subr.bf16.mxu0 %v336
    %702 = vmatpush1.bf16.msra.mxu0 %v335
    %703 = vmatprep.subr.bf16.mxu0 %v338
    %704 = vmatpush1.bf16.msra.mxu0 %v337
    %705 = vmatprep.subr.bf16.mxu0 %v340
    %706 = vmatpush1.bf16.msra.mxu0 %v339
    %707 = vmatprep.subr.bf16.mxu0 %v342
    %708 = vmatpush1.bf16.msra.mxu0 %v341
    %709 = vmatprep.subr.bf16.mxu0 %v344
    %710 = vmatpush1.bf16.msra.mxu0 %v343
    %711 = vmatprep.subr.bf16.mxu0 %v346
    %712 = vmatpush1.bf16.msra.mxu0 %v345
    %713 = vmatprep.subr.bf16.mxu0 %v348
    %714 = vmatpush1.bf16.msra.mxu0 %v347
    %715 = vmatprep.subr.bf16.mxu0 %v350
    %716 = vmatpush1.bf16.msra.mxu0 %v349
    %717 = vmatprep.subr.bf16.mxu0 %v352
    %718 = vmatpush1.bf16.msra.mxu0 %v351
    %719 = vmatprep.subr.bf16.mxu0 %v354
    %720 = vmatpush1.bf16.msra.mxu0 %v353
    %721 = vmatprep.subr.bf16.mxu0 %v356
    %722 = vmatpush1.bf16.msra.mxu0 %v355
    %723 = vmatprep.subr.bf16.mxu0 %v358
    %724 = vmatpush1.bf16.msra.mxu0 %v357
    %725 = vmatprep.subr.bf16.mxu0 %v426
    %726 = vmatpush1.bf16.msra.mxu0 %v423
    %727 = vmatprep.subr.bf16.mxu0 0
    %728 = vmatpush1.bf16.msra.mxu0 0
    %729 = vmatprep.subr.bf16.mxu0 0
    %730 = vmatpush1.bf16.msra.mxu0 0
    %731 = vmatprep.subr.bf16.mxu0 0
    %732 = vmatpush1.bf16.msra.mxu0 0
    %733 = vmatprep.mubr.bf16.mxu0 %v658
    %734 = vmatmul.mubr.bf16.gmra.mrb[0].mxu0 %v652
    %v735 = vpop.f32.mrb[0].mxu0
    %v736 = vadd.f32 %v695, %v735
    %v737 = vpop.f32.mrb[0].mxu0
    %v738 = vadd.f32 %v697, %v737
    %v739 = vpop.f32.mrb[0].mxu0
    %v740 = vpop.f32.mrb[0].mxu0
    %741 = vdwg.mxu0
    %v742 = vmax.f32 %v625, %v736
    %v743 = vmax.f32 %v626, %v738
    %s744 = scalar_lea.vmem %s0, 12
    %v745 = vld [vmem:[%s744] sm:$0xf]
    %v748 = vunpack.c.l.s4 1966171168
    %v749 = vunpack.c.0.s8 %v748
    %v750 = vlaneseq
    %v751 = vshrl.u32 %v750, 7
    %v752 = vsub.s32 %v749, %v751
    %v753 = vrot.slane %v745, %v752
    %v754 = vcombine.high %v753, %v753
    %v756 = vunpack.c.l.s4 1966171168
    %v757 = vunpack.c.0.s8 %v756
    %v758 = vlaneseq
    %v759 = vshrl.u32 %v758, 7
    %v760 = vsub.s32 %v757, %v759
    %v761 = vrot.slane %v753, %v760
    %v763 = vunpack.c.l.s4 1966171168
    %v764 = vunpack.c.0.s8 %v763
    %v765 = vlaneseq
    %v766 = vshrl.u32 %v765, 7
    %v767 = vsub.s32 %v764, %v766
    %v768 = vrot.slane %v754, %v767
    %v769 = vcombine.high %v761, %v761
    %v770 = vcombine.high %v768, %v768
    %v775 = vsel %vm417, %v770, 0
    %777 = vmatprep.subr.bf16.mxu0 %v304
    %778 = vmatpush1.bf16.msra.mxu0 %v303
    %779 = vmatprep.subr.bf16.mxu0 %v306
    %780 = vmatpush1.bf16.msra.mxu0 %v305
    %781 = vmatprep.subr.bf16.mxu0 %v308
    %782 = vmatpush1.bf16.msra.mxu0 %v307
    %783 = vmatprep.subr.bf16.mxu0 %v310
    %784 = vmatpush1.bf16.msra.mxu0 %v309
    %785 = vmatprep.subr.bf16.mxu0 %v312
    %786 = vmatpush1.bf16.msra.mxu0 %v311
    %787 = vmatprep.subr.bf16.mxu0 %v314
    %788 = vmatpush1.bf16.msra.mxu0 %v313
    %789 = vmatprep.subr.bf16.mxu0 %v316
    %790 = vmatpush1.bf16.msra.mxu0 %v315
    %791 = vmatprep.subr.bf16.mxu0 %v318
    %792 = vmatpush1.bf16.msra.mxu0 %v317
    %793 = vmatprep.subr.bf16.mxu0 %v320
    %794 = vmatpush1.bf16.msra.mxu0 %v319
    %795 = vmatprep.subr.bf16.mxu0 %v322
    %796 = vmatpush1.bf16.msra.mxu0 %v321
    %797 = vmatprep.subr.bf16.mxu0 %v324
    %798 = vmatpush1.bf16.msra.mxu0 %v323
    %799 = vmatprep.subr.bf16.mxu0 %v326
    %800 = vmatpush1.bf16.msra.mxu0 %v325
    %801 = vmatprep.subr.bf16.mxu0 %v328
    %802 = vmatpush1.bf16.msra.mxu0 %v327
    %803 = vmatprep.subr.bf16.mxu0 %v330
    %804 = vmatpush1.bf16.msra.mxu0 %v329
    %805 = vmatprep.subr.bf16.mxu0 %v332
    %806 = vmatpush1.bf16.msra.mxu0 %v331
    %807 = vmatprep.subr.bf16.mxu0 %v334
    %808 = vmatpush1.bf16.msra.mxu0 %v333
    %809 = vmatprep.mubr.bf16.mxu0 %v768
    %810 = vmatmul.mubr.bf16.gmra.mrb[0].mxu0 %v761
    %v811 = vpop.f32.mrb[0].mxu0
    %v812 = vadd.f32 %v97, %v811
    %v813 = vpop.f32.mrb[0].mxu0
    %v814 = vadd.f32 %v101, %v813
    %v815 = vpop.f32.mrb[0].mxu0
    %v816 = vpop.f32.mrb[0].mxu0
    %817 = vdwg.mxu0
    %818 = vmatprep.subr.bf16.mxu0 %v336
    %819 = vmatpush1.bf16.msra.mxu0 %v335
    %820 = vmatprep.subr.bf16.mxu0 %v338
    %821 = vmatpush1.bf16.msra.mxu0 %v337
    %822 = vmatprep.subr.bf16.mxu0 %v340
    %823 = vmatpush1.bf16.msra.mxu0 %v339
    %824 = vmatprep.subr.bf16.mxu0 %v342
    %825 = vmatpush1.bf16.msra.mxu0 %v341
    %826 = vmatprep.subr.bf16.mxu0 %v344
    %827 = vmatpush1.bf16.msra.mxu0 %v343
    %828 = vmatprep.subr.bf16.mxu0 %v346
    %829 = vmatpush1.bf16.msra.mxu0 %v345
    %830 = vmatprep.subr.bf16.mxu0 %v348
    %831 = vmatpush1.bf16.msra.mxu0 %v347
    %832 = vmatprep.subr.bf16.mxu0 %v350
    %833 = vmatpush1.bf16.msra.mxu0 %v349
    %834 = vmatprep.subr.bf16.mxu0 %v352
    %835 = vmatpush1.bf16.msra.mxu0 %v351
    %836 = vmatprep.subr.bf16.mxu0 %v354
    %837 = vmatpush1.bf16.msra.mxu0 %v353
    %838 = vmatprep.subr.bf16.mxu0 %v356
    %839 = vmatpush1.bf16.msra.mxu0 %v355
    %840 = vmatprep.subr.bf16.mxu0 %v358
    %841 = vmatpush1.bf16.msra.mxu0 %v357
    %842 = vmatprep.subr.bf16.mxu0 %v426
    %843 = vmatpush1.bf16.msra.mxu0 %v423
    %844 = vmatprep.subr.bf16.mxu0 0
    %845 = vmatpush1.bf16.msra.mxu0 0
    %846 = vmatprep.subr.bf16.mxu0 0
    %847 = vmatpush1.bf16.msra.mxu0 0
    %848 = vmatprep.subr.bf16.mxu0 0
    %849 = vmatpush1.bf16.msra.mxu0 0
    %850 = vmatprep.mubr.bf16.mxu0 %v775
    %851 = vmatmul.mubr.bf16.gmra.mrb[0].mxu0 %v769
    %v852 = vpop.f32.mrb[0].mxu0
    %v853 = vadd.f32 %v812, %v852
    %v854 = vpop.f32.mrb[0].mxu0
    %v855 = vadd.f32 %v814, %v854
    %v856 = vpop.f32.mrb[0].mxu0
    %v857 = vpop.f32.mrb[0].mxu0
    %858 = vdwg.mxu0
    %v859 = vmax.f32 %v742, %v853
    %v860 = vmax.f32 %v743, %v855
    %v861 = vmax.f32 %v859, 0.0
    %v862 = vmax.f32 %v860, 0.0
    %v863 = vpack.c.bf16 %v861, %v861
    %v864 = vpack.c.bf16 %v862, %v862
    %v865 = vld [vmem:[%s3] sm:$0xff]
    %v866 = vld [vmem:[%s3 + $0x8] sm:$0xff]
    %v867 = vld [vmem:[%s3 + $0x10] sm:$0xff]
    %v868 = vld [vmem:[%s3 + $0x18] sm:$0xff]
    %v869 = vld [vmem:[%s3 + $0x20] sm:$0xff]
    %v870 = vld [vmem:[%s3 + $0x28] sm:$0xff]
    %v871 = vld [vmem:[%s3 + $0x30] sm:$0xff]
    %v872 = vld [vmem:[%s3 + $0x38] sm:$0xff]
    %v873 = vld [vmem:[%s3 + $0x40] sm:$0xff]
    %v874 = vld [vmem:[%s3 + $0x48] sm:$0xff]
    %v875 = vld [vmem:[%s3 + $0x50] sm:$0xff]
    %v876 = vld [vmem:[%s3 + $0x58] sm:$0xff]
    %v877 = vld [vmem:[%s3 + $0x60] sm:$0xff]
    %v878 = vld [vmem:[%s3 + $0x68] sm:$0xff]
    %v879 = vld [vmem:[%s3 + $0x70] sm:$0xff]
    %v880 = vld [vmem:[%s3 + $0x78] sm:$0xff]
    %v881 = vld [vmem:[%s3 + $0x80] sm:$0xff]
    %v882 = vld [vmem:[%s3 + $0x88] sm:$0xff]
    %v883 = vld [vmem:[%s3 + $0x90] sm:$0xff]
    %v884 = vld [vmem:[%s3 + $0x98] sm:$0xff]
    %v885 = vld [vmem:[%s3 + $0xa0] sm:$0xff]
    %v886 = vld [vmem:[%s3 + $0xa8] sm:$0xff]
    %v887 = vld [vmem:[%s3 + $0xb0] sm:$0xff]
    %v888 = vld [vmem:[%s3 + $0xb8] sm:$0xff]
    %v889 = vld [vmem:[%s3 + $0xc0] sm:$0xff]
    %v890 = vld [vmem:[%s3 + $0xc8] sm:$0xff]
    %v891 = vld [vmem:[%s3 + $0xd0] sm:$0xff]
    %v892 = vld [vmem:[%s3 + $0xd8] sm:$0xff]
    %v893 = vld [vmem:[%s3 + $0xe0] sm:$0xff]
    %v894 = vld [vmem:[%s3 + $0xe8] sm:$0xff]
    %v895 = vld [vmem:[%s3 + $0xf0] sm:$0xff]
    %v896 = vld [vmem:[%s3 + $0xf8] sm:$0xff]
    %v897 = vld [vmem:[%s3 + $0x100] sm:$0xff]
    %v898 = vld [vmem:[%s3 + $0x108] sm:$0xff]
    %v899 = vld [vmem:[%s3 + $0x110] sm:$0xff]
    %v900 = vld [vmem:[%s3 + $0x118] sm:$0xff]
    %v901 = vld [vmem:[%s3 + $0x120] sm:$0xff]
    %v902 = vld [vmem:[%s3 + $0x128] sm:$0xff]
    %v903 = vld [vmem:[%s3 + $0x130] sm:$0xff]
    %v904 = vld [vmem:[%s3 + $0x138] sm:$0xff]
    %v905 = vld [vmem:[%s3 + $0x140] sm:$0xff]
    %v906 = vld [vmem:[%s3 + $0x148] sm:$0xff]
    %v907 = vld [vmem:[%s3 + $0x150] sm:$0xff]
    %v908 = vld [vmem:[%s3 + $0x158] sm:$0xff]
    %v909 = vld [vmem:[%s3 + $0x160] sm:$0xff]
    %v910 = vld [vmem:[%s3 + $0x168] sm:$0xff]
    %v911 = vld [vmem:[%s3 + $0x170] sm:$0xff]
    %v912 = vld [vmem:[%s3 + $0x178] sm:$0xff]
    %v913 = vld [vmem:[%s3 + $0x180] sm:$0xff]
    %v914 = vld [vmem:[%s3 + $0x188] sm:$0xff]
    %v915 = vld [vmem:[%s3 + $0x190] sm:$0xff]
    %v916 = vld [vmem:[%s3 + $0x198] sm:$0xff]
    %v917 = vld [vmem:[%s3 + $0x1a0] sm:$0xff]
    %v918 = vld [vmem:[%s3 + $0x1a8] sm:$0xff]
    %v919 = vld [vmem:[%s3 + $0x1b0] sm:$0xff]
    %v920 = vld [vmem:[%s3 + $0x1b8] sm:$0xff]
    %v921 = vld [vmem:[%s3 + $0x1c0] sm:$0xff]
    %v922 = vld [vmem:[%s3 + $0x1c8] sm:$0xff]
    %v923 = vld [vmem:[%s3 + $0x1d0] sm:$0xff]
    %v924 = vld [vmem:[%s3 + $0x1d8] sm:$0xff]
    %v925 = vld [vmem:[%s3 + $0x1e0] sm:$0xff]
    %v926 = vld [vmem:[%s3 + $0x1e8] sm:$0xff]
    %v927 = vld [vmem:[%s3 + $0x1f0] sm:$0xff]
    %v928 = vld [vmem:[%s3 + $0x1f8] sm:$0xff]
    %v929 = vld [vmem:[%s3 + $0x200] sm:$0xff]
    %v930 = vld [vmem:[%s3 + $0x208] sm:$0xff]
    %v931 = vld [vmem:[%s3 + $0x210] sm:$0xff]
    %v932 = vld [vmem:[%s3 + $0x218] sm:$0xff]
    %v933 = vld [vmem:[%s3 + $0x220] sm:$0xff]
    %v934 = vld [vmem:[%s3 + $0x228] sm:$0xff]
    %v935 = vld [vmem:[%s3 + $0x230] sm:$0xff]
    %v936 = vld [vmem:[%s3 + $0x238] sm:$0xff]
    %v937 = vld [vmem:[%s3 + $0x240] sm:$0xff]
    %v938 = vld [vmem:[%s3 + $0x248] sm:$0xff]
    %v939 = vld [vmem:[%s3 + $0x250] sm:$0xff]
    %v940 = vld [vmem:[%s3 + $0x258] sm:$0xff]
    %v941 = vld [vmem:[%s3 + $0x260] sm:$0xff]
    %v942 = vld [vmem:[%s3 + $0x268] sm:$0xff]
    %v943 = vld [vmem:[%s3 + $0x270] sm:$0xff]
    %v944 = vld [vmem:[%s3 + $0x278] sm:$0xff]
    %v945 = vld [vmem:[%s3 + $0x280] sm:$0xff]
    %v946 = vld [vmem:[%s3 + $0x288] sm:$0xff]
    %v947 = vld [vmem:[%s3 + $0x290] sm:$0xff]
    %v948 = vld [vmem:[%s3 + $0x298] sm:$0xff]
    %v949 = vld [vmem:[%s3 + $0x2a0] sm:$0xff]
    %v950 = vld [vmem:[%s3 + $0x2a8] sm:$0xff]
    %v951 = vld [vmem:[%s3 + $0x2b0] sm:$0xff]
    %v952 = vld [vmem:[%s3 + $0x2b8] sm:$0xff]
    %v953 = vld [vmem:[%s3 + $0x2c0] sm:$0xff]
    %v954 = vld [vmem:[%s3 + $0x2c8] sm:$0xff]
    %v955 = vld [vmem:[%s3 + $0x2d0] sm:$0xff]
    %v956 = vld [vmem:[%s3 + $0x2d8] sm:$0xff]
    %v957 = vld [vmem:[%s3 + $0x2e0] sm:$0xff]
    %v958 = vld [vmem:[%s3 + $0x2e8] sm:$0xff]
    %v959 = vld [vmem:[%s3 + $0x2f0] sm:$0xff]
    %v960 = vld [vmem:[%s3 + $0x2f8] sm:$0xff]
    %v961 = vld [vmem:[%s3 + $0x300] sm:$0xff]
    %v962 = vld [vmem:[%s3 + $0x308] sm:$0xff]
    %v963 = vld [vmem:[%s3 + $0x310] sm:$0xff]
    %v964 = vld [vmem:[%s3 + $0x318] sm:$0xff]
    %v965 = vld [vmem:[%s3 + $0x320] sm:$0xff]
    %v966 = vld [vmem:[%s3 + $0x328] sm:$0xff]
    %v967 = vld [vmem:[%s3 + $0x330] sm:$0xff]
    %v968 = vld [vmem:[%s3 + $0x338] sm:$0xff]
    %v969 = vld [vmem:[%s3 + $0x340] sm:$0xff]
    %v970 = vld [vmem:[%s3 + $0x348] sm:$0xff]
    %v971 = vld [vmem:[%s3 + $0x350] sm:$0xff]
    %v972 = vld [vmem:[%s3 + $0x358] sm:$0xff]
    %v973 = vld [vmem:[%s3 + $0x360] sm:$0xff]
    %v974 = vld [vmem:[%s3 + $0x368] sm:$0xff]
    %v975 = vld [vmem:[%s3 + $0x370] sm:$0xff]
    %v976 = vld [vmem:[%s3 + $0x378] sm:$0xff]
    %v977 = vld [vmem:[%s3 + $0x380] sm:$0xff]
    %v978 = vld [vmem:[%s3 + $0x388] sm:$0xff]
    %v979 = vld [vmem:[%s3 + $0x390] sm:$0xff]
    %v980 = vld [vmem:[%s3 + $0x398] sm:$0xff]
    %v981 = vld [vmem:[%s3 + $0x3a0] sm:$0xff]
    %v982 = vld [vmem:[%s3 + $0x3a8] sm:$0xff]
    %v983 = vld [vmem:[%s3 + $0x3b0] sm:$0xff]
    %v984 = vld [vmem:[%s3 + $0x3b8] sm:$0xff]
    %v985 = vld [vmem:[%s3 + $0x3c0] sm:$0xff]
    %v986 = vld [vmem:[%s3 + $0x3c8] sm:$0xff]
    %v987 = vld [vmem:[%s3 + $0x3d0] sm:$0xff]
    %v988 = vld [vmem:[%s3 + $0x3d8] sm:$0xff]
    %v989 = vld [vmem:[%s3 + $0x3e0] sm:$0x11]
    %v990 = vld [vmem:[%s3 + $0x3e8] sm:$0x11]
    %v991 = vld [vmem:[%s3 + $0x3f0] sm:$0x11]
    %v992 = vld [vmem:[%s3 + $0x3f8] sm:$0x11]
    %v993 = vld [vmem:[%s4] sm:$0xff]
    %v995 = vlaneseq
    %v996 = vshrl.u32 %v995, 7
    %v997 = vsub.s32 0, %v996
    %v998 = vrot.slane %v993, %v997
    %v999 = vlaneseq
    %v1000 = vshrl.u32 %v999, 7
    %v1001 = vsub.s32 1, %v1000
    %v1002 = vrot.slane %v993, %v1001
    %v1003 = vlaneseq
    %v1004 = vshrl.u32 %v1003, 7
    %v1005 = vsub.s32 2, %v1004
    %v1006 = vrot.slane %v993, %v1005
    %v1007 = vlaneseq
    %v1008 = vshrl.u32 %v1007, 7
    %v1009 = vsub.s32 3, %v1008
    %v1010 = vrot.slane %v993, %v1009
    %v1011 = vlaneseq
    %v1012 = vshrl.u32 %v1011, 7
    %v1013 = vsub.s32 4, %v1012
    %v1014 = vrot.slane %v993, %v1013
    %v1015 = vlaneseq
    %v1016 = vshrl.u32 %v1015, 7
    %v1017 = vsub.s32 5, %v1016
    %v1018 = vrot.slane %v993, %v1017
    %v1019 = vlaneseq
    %v1020 = vshrl.u32 %v1019, 7
    %v1021 = vsub.s32 6, %v1020
    %v1022 = vrot.slane %v993, %v1021
    %v1023 = vlaneseq
    %v1024 = vshrl.u32 %v1023, 7
    %v1025 = vsub.s32 7, %v1024
    %v1026 = vrot.slane %v993, %v1025
    %v1163 = vunpack.c.l.b16 %v865
    %v1164 = vunpack.c.h.b16 %v865
    %v1165 = vunpack.c.l.b16 %v866
    %v1166 = vunpack.c.h.b16 %v866
    %v1167 = vunpack.c.l.b16 %v867
    %v1168 = vunpack.c.h.b16 %v867
    %v1169 = vunpack.c.l.b16 %v868
    %v1170 = vunpack.c.h.b16 %v868
    %v1171 = vunpack.c.l.b16 %v869
    %v1172 = vunpack.c.h.b16 %v869
    %v1173 = vunpack.c.l.b16 %v870
    %v1174 = vunpack.c.h.b16 %v870
    %v1175 = vunpack.c.l.b16 %v871
    %v1176 = vunpack.c.h.b16 %v871
    %v1177 = vunpack.c.l.b16 %v872
    %v1178 = vunpack.c.h.b16 %v872
    %v1179 = vunpack.c.l.b16 %v873
    %v1180 = vunpack.c.h.b16 %v873
    %v1181 = vunpack.c.l.b16 %v874
    %v1182 = vunpack.c.h.b16 %v874
    %v1183 = vunpack.c.l.b16 %v875
    %v1184 = vunpack.c.h.b16 %v875
    %v1185 = vunpack.c.l.b16 %v876
    %v1186 = vunpack.c.h.b16 %v876
    %v1187 = vunpack.c.l.b16 %v877
    %v1188 = vunpack.c.h.b16 %v877
    %v1189 = vunpack.c.l.b16 %v878
    %v1190 = vunpack.c.h.b16 %v878
    %v1191 = vunpack.c.l.b16 %v879
    %v1192 = vunpack.c.h.b16 %v879
    %v1193 = vunpack.c.l.b16 %v880
    %v1194 = vunpack.c.h.b16 %v880
    %v1195 = vunpack.c.l.b16 %v881
    %v1196 = vunpack.c.h.b16 %v881
    %v1197 = vunpack.c.l.b16 %v882
    %v1198 = vunpack.c.h.b16 %v882
    %v1199 = vunpack.c.l.b16 %v883
    %v1200 = vunpack.c.h.b16 %v883
    %v1201 = vunpack.c.l.b16 %v884
    %v1202 = vunpack.c.h.b16 %v884
    %v1203 = vunpack.c.l.b16 %v885
    %v1204 = vunpack.c.h.b16 %v885
    %v1205 = vunpack.c.l.b16 %v886
    %v1206 = vunpack.c.h.b16 %v886
    %v1207 = vunpack.c.l.b16 %v887
    %v1208 = vunpack.c.h.b16 %v887
    %v1209 = vunpack.c.l.b16 %v888
    %v1210 = vunpack.c.h.b16 %v888
    %v1211 = vunpack.c.l.b16 %v889
    %v1212 = vunpack.c.h.b16 %v889
    %v1213 = vunpack.c.l.b16 %v890
    %v1214 = vunpack.c.h.b16 %v890
    %v1215 = vunpack.c.l.b16 %v891
    %v1216 = vunpack.c.h.b16 %v891
    %v1217 = vunpack.c.l.b16 %v892
    %v1218 = vunpack.c.h.b16 %v892
    %v1219 = vunpack.c.l.b16 %v893
    %v1220 = vunpack.c.h.b16 %v893
    %v1221 = vunpack.c.l.b16 %v894
    %v1222 = vunpack.c.h.b16 %v894
    %v1223 = vunpack.c.l.b16 %v895
    %v1224 = vunpack.c.h.b16 %v895
    %v1225 = vunpack.c.l.b16 %v896
    %v1226 = vunpack.c.h.b16 %v896
    %v1227 = vunpack.c.l.b16 %v897
    %v1228 = vunpack.c.h.b16 %v897
    %v1229 = vunpack.c.l.b16 %v898
    %v1230 = vunpack.c.h.b16 %v898
    %v1231 = vunpack.c.l.b16 %v899
    %v1232 = vunpack.c.h.b16 %v899
    %v1233 = vunpack.c.l.b16 %v900
    %v1234 = vunpack.c.h.b16 %v900
    %v1235 = vunpack.c.l.b16 %v901
    %v1236 = vunpack.c.h.b16 %v901
    %v1237 = vunpack.c.l.b16 %v902
    %v1238 = vunpack.c.h.b16 %v902
    %v1239 = vunpack.c.l.b16 %v903
    %v1240 = vunpack.c.h.b16 %v903
    %v1241 = vunpack.c.l.b16 %v904
    %v1242 = vunpack.c.h.b16 %v904
    %v1243 = vunpack.c.l.b16 %v905
    %v1244 = vunpack.c.h.b16 %v905
    %v1245 = vunpack.c.l.b16 %v906
    %v1246 = vunpack.c.h.b16 %v906
    %v1247 = vunpack.c.l.b16 %v907
    %v1248 = vunpack.c.h.b16 %v907
    %v1249 = vunpack.c.l.b16 %v908
    %v1250 = vunpack.c.h.b16 %v908
    %v1251 = vunpack.c.l.b16 %v909
    %v1252 = vunpack.c.h.b16 %v909
    %v1253 = vunpack.c.l.b16 %v910
    %v1254 = vunpack.c.h.b16 %v910
    %v1255 = vunpack.c.l.b16 %v911
    %v1256 = vunpack.c.h.b16 %v911
    %v1257 = vunpack.c.l.b16 %v912
    %v1258 = vunpack.c.h.b16 %v912
    %v1259 = vunpack.c.l.b16 %v913
    %v1260 = vunpack.c.h.b16 %v913
    %v1261 = vunpack.c.l.b16 %v914
    %v1262 = vunpack.c.h.b16 %v914
    %v1263 = vunpack.c.l.b16 %v915
    %v1264 = vunpack.c.h.b16 %v915
    %v1265 = vunpack.c.l.b16 %v916
    %v1266 = vunpack.c.h.b16 %v916
    %v1267 = vunpack.c.l.b16 %v917
    %v1268 = vunpack.c.h.b16 %v917
    %v1269 = vunpack.c.l.b16 %v918
    %v1270 = vunpack.c.h.b16 %v918
    %v1271 = vunpack.c.l.b16 %v919
    %v1272 = vunpack.c.h.b16 %v919
    %v1273 = vunpack.c.l.b16 %v920
    %v1274 = vunpack.c.h.b16 %v920
    %v1275 = vunpack.c.l.b16 %v921
    %v1276 = vunpack.c.h.b16 %v921
    %v1277 = vunpack.c.l.b16 %v922
    %v1278 = vunpack.c.h.b16 %v922
    %v1279 = vunpack.c.l.b16 %v923
    %v1280 = vunpack.c.h.b16 %v923
    %v1281 = vunpack.c.l.b16 %v924
    %v1282 = vunpack.c.h.b16 %v924
    %v1283 = vunpack.c.l.b16 %v925
    %v1284 = vunpack.c.h.b16 %v925
    %v1285 = vunpack.c.l.b16 %v926
    %v1286 = vunpack.c.h.b16 %v926
    %v1287 = vunpack.c.l.b16 %v927
    %v1288 = vunpack.c.h.b16 %v927
    %v1289 = vunpack.c.l.b16 %v928
    %v1290 = vunpack.c.h.b16 %v928
    %v1291 = vunpack.c.l.b16 %v929
    %v1292 = vunpack.c.h.b16 %v929
    %v1293 = vunpack.c.l.b16 %v930
    %v1294 = vunpack.c.h.b16 %v930
    %v1295 = vunpack.c.l.b16 %v931
    %v1296 = vunpack.c.h.b16 %v931
    %v1297 = vunpack.c.l.b16 %v932
    %v1298 = vunpack.c.h.b16 %v932
    %v1299 = vunpack.c.l.b16 %v933
    %v1300 = vunpack.c.h.b16 %v933
    %v1301 = vunpack.c.l.b16 %v934
    %v1302 = vunpack.c.h.b16 %v934
    %v1303 = vunpack.c.l.b16 %v935
    %v1304 = vunpack.c.h.b16 %v935
    %v1305 = vunpack.c.l.b16 %v936
    %v1306 = vunpack.c.h.b16 %v936
    %v1307 = vunpack.c.l.b16 %v937
    %v1308 = vunpack.c.h.b16 %v937
    %v1309 = vunpack.c.l.b16 %v938
    %v1310 = vunpack.c.h.b16 %v938
    %v1311 = vunpack.c.l.b16 %v939
    %v1312 = vunpack.c.h.b16 %v939
    %v1313 = vunpack.c.l.b16 %v940
    %v1314 = vunpack.c.h.b16 %v940
    %v1315 = vunpack.c.l.b16 %v941
    %v1316 = vunpack.c.h.b16 %v941
    %v1317 = vunpack.c.l.b16 %v942
    %v1318 = vunpack.c.h.b16 %v942
    %v1319 = vunpack.c.l.b16 %v943
    %v1320 = vunpack.c.h.b16 %v943
    %v1321 = vunpack.c.l.b16 %v944
    %v1322 = vunpack.c.h.b16 %v944
    %v1323 = vunpack.c.l.b16 %v945
    %v1324 = vunpack.c.h.b16 %v945
    %v1325 = vunpack.c.l.b16 %v946
    %v1326 = vunpack.c.h.b16 %v946
    %v1327 = vunpack.c.l.b16 %v947
    %v1328 = vunpack.c.h.b16 %v947
    %v1329 = vunpack.c.l.b16 %v948
    %v1330 = vunpack.c.h.b16 %v948
    %v1331 = vunpack.c.l.b16 %v949
    %v1332 = vunpack.c.h.b16 %v949
    %v1333 = vunpack.c.l.b16 %v950
    %v1334 = vunpack.c.h.b16 %v950
    %v1335 = vunpack.c.l.b16 %v951
    %v1336 = vunpack.c.h.b16 %v951
    %v1337 = vunpack.c.l.b16 %v952
    %v1338 = vunpack.c.h.b16 %v952
    %v1339 = vunpack.c.l.b16 %v953
    %v1340 = vunpack.c.h.b16 %v953
    %v1341 = vunpack.c.l.b16 %v954
    %v1342 = vunpack.c.h.b16 %v954
    %v1343 = vunpack.c.l.b16 %v955
    %v1344 = vunpack.c.h.b16 %v955
    %v1345 = vunpack.c.l.b16 %v956
    %v1346 = vunpack.c.h.b16 %v956
    %v1347 = vunpack.c.l.b16 %v957
    %v1348 = vunpack.c.h.b16 %v957
    %v1349 = vunpack.c.l.b16 %v958
    %v1350 = vunpack.c.h.b16 %v958
    %v1351 = vunpack.c.l.b16 %v959
    %v1352 = vunpack.c.h.b16 %v959
    %v1353 = vunpack.c.l.b16 %v960
    %v1354 = vunpack.c.h.b16 %v960
    %v1355 = vunpack.c.l.b16 %v961
    %v1356 = vunpack.c.h.b16 %v961
    %v1357 = vunpack.c.l.b16 %v962
    %v1358 = vunpack.c.h.b16 %v962
    %v1359 = vunpack.c.l.b16 %v963
    %v1360 = vunpack.c.h.b16 %v963
    %v1361 = vunpack.c.l.b16 %v964
    %v1362 = vunpack.c.h.b16 %v964
    %v1363 = vunpack.c.l.b16 %v965
    %v1364 = vunpack.c.h.b16 %v965
    %v1365 = vunpack.c.l.b16 %v966
    %v1366 = vunpack.c.h.b16 %v966
    %v1367 = vunpack.c.l.b16 %v967
    %v1368 = vunpack.c.h.b16 %v967
    %v1369 = vunpack.c.l.b16 %v968
    %v1370 = vunpack.c.h.b16 %v968
    %v1371 = vunpack.c.l.b16 %v969
    %v1372 = vunpack.c.h.b16 %v969
    %v1373 = vunpack.c.l.b16 %v970
    %v1374 = vunpack.c.h.b16 %v970
    %v1375 = vunpack.c.l.b16 %v971
    %v1376 = vunpack.c.h.b16 %v971
    %v1377 = vunpack.c.l.b16 %v972
    %v1378 = vunpack.c.h.b16 %v972
    %v1379 = vunpack.c.l.b16 %v973
    %v1380 = vunpack.c.h.b16 %v973
    %v1381 = vunpack.c.l.b16 %v974
    %v1382 = vunpack.c.h.b16 %v974
    %v1383 = vunpack.c.l.b16 %v975
    %v1384 = vunpack.c.h.b16 %v975
    %v1385 = vunpack.c.l.b16 %v976
    %v1386 = vunpack.c.h.b16 %v976
    %v1387 = vunpack.c.l.b16 %v977
    %v1388 = vunpack.c.h.b16 %v977
    %v1389 = vunpack.c.l.b16 %v978
    %v1390 = vunpack.c.h.b16 %v978
    %v1391 = vunpack.c.l.b16 %v979
    %v1392 = vunpack.c.h.b16 %v979
    %v1393 = vunpack.c.l.b16 %v980
    %v1394 = vunpack.c.h.b16 %v980
    %v1395 = vunpack.c.l.b16 %v981
    %v1396 = vunpack.c.h.b16 %v981
    %v1397 = vunpack.c.l.b16 %v982
    %v1398 = vunpack.c.h.b16 %v982
    %v1399 = vunpack.c.l.b16 %v983
    %v1400 = vunpack.c.h.b16 %v983
    %v1401 = vunpack.c.l.b16 %v984
    %v1402 = vunpack.c.h.b16 %v984
    %v1403 = vunpack.c.l.b16 %v985
    %v1404 = vunpack.c.h.b16 %v985
    %v1405 = vunpack.c.l.b16 %v986
    %v1406 = vunpack.c.h.b16 %v986
    %v1407 = vunpack.c.l.b16 %v987
    %v1408 = vunpack.c.h.b16 %v987
    %v1409 = vunpack.c.l.b16 %v988
    %v1410 = vunpack.c.h.b16 %v988
    %v1411 = vunpack.c.l.b16 %v989
    %v1412 = vunpack.c.h.b16 %v989
    %v1413 = vunpack.c.l.b16 %v990
    %v1414 = vunpack.c.h.b16 %v990
    %v1415 = vunpack.c.l.b16 %v991
    %v1416 = vunpack.c.h.b16 %v991
    %v1417 = vunpack.c.l.b16 %v992
    %v1418 = vunpack.c.h.b16 %v992
    %v1419 = vpack.c.b16 %v1171, %v1163
    %v1420 = vpack.c.b16 %v1172, %v1164
    %v1421 = vpack.c.b16 %v1173, %v1165
    %v1422 = vpack.c.b16 %v1174, %v1166
    %v1423 = vpack.c.b16 %v1175, %v1167
    %v1424 = vpack.c.b16 %v1176, %v1168
    %v1425 = vpack.c.b16 %v1177, %v1169
    %v1426 = vpack.c.b16 %v1178, %v1170
    %v1427 = vpack.c.b16 %v1187, %v1179
    %v1428 = vpack.c.b16 %v1188, %v1180
    %v1429 = vpack.c.b16 %v1189, %v1181
    %v1430 = vpack.c.b16 %v1190, %v1182
    %v1431 = vpack.c.b16 %v1191, %v1183
    %v1432 = vpack.c.b16 %v1192, %v1184
    %v1433 = vpack.c.b16 %v1193, %v1185
    %v1434 = vpack.c.b16 %v1194, %v1186
    %v1435 = vpack.c.b16 %v1203, %v1195
    %v1436 = vpack.c.b16 %v1204, %v1196
    %v1437 = vpack.c.b16 %v1205, %v1197
    %v1438 = vpack.c.b16 %v1206, %v1198
    %v1439 = vpack.c.b16 %v1207, %v1199
    %v1440 = vpack.c.b16 %v1208, %v1200
    %v1441 = vpack.c.b16 %v1209, %v1201
    %v1442 = vpack.c.b16 %v1210, %v1202
    %v1443 = vpack.c.b16 %v1219, %v1211
    %v1444 = vpack.c.b16 %v1220, %v1212
    %v1445 = vpack.c.b16 %v1221, %v1213
    %v1446 = vpack.c.b16 %v1222, %v1214
    %v1447 = vpack.c.b16 %v1223, %v1215
    %v1448 = vpack.c.b16 %v1224, %v1216
    %v1449 = vpack.c.b16 %v1225, %v1217
    %v1450 = vpack.c.b16 %v1226, %v1218
    %v1451 = vpack.c.b16 %v1235, %v1227
    %v1452 = vpack.c.b16 %v1236, %v1228
    %v1453 = vpack.c.b16 %v1237, %v1229
    %v1454 = vpack.c.b16 %v1238, %v1230
    %v1455 = vpack.c.b16 %v1239, %v1231
    %v1456 = vpack.c.b16 %v1240, %v1232
    %v1457 = vpack.c.b16 %v1241, %v1233
    %v1458 = vpack.c.b16 %v1242, %v1234
    %v1459 = vpack.c.b16 %v1251, %v1243
    %v1460 = vpack.c.b16 %v1252, %v1244
    %v1461 = vpack.c.b16 %v1253, %v1245
    %v1462 = vpack.c.b16 %v1254, %v1246
    %v1463 = vpack.c.b16 %v1255, %v1247
    %v1464 = vpack.c.b16 %v1256, %v1248
    %v1465 = vpack.c.b16 %v1257, %v1249
    %v1466 = vpack.c.b16 %v1258, %v1250
    %v1467 = vpack.c.b16 %v1267, %v1259
    %v1468 = vpack.c.b16 %v1268, %v1260
    %v1469 = vpack.c.b16 %v1269, %v1261
    %v1470 = vpack.c.b16 %v1270, %v1262
    %v1471 = vpack.c.b16 %v1271, %v1263
    %v1472 = vpack.c.b16 %v1272, %v1264
    %v1473 = vpack.c.b16 %v1273, %v1265
    %v1474 = vpack.c.b16 %v1274, %v1266
    %v1475 = vpack.c.b16 %v1283, %v1275
    %v1476 = vpack.c.b16 %v1284, %v1276
    %v1477 = vpack.c.b16 %v1285, %v1277
    %v1478 = vpack.c.b16 %v1286, %v1278
    %v1479 = vpack.c.b16 %v1287, %v1279
    %v1480 = vpack.c.b16 %v1288, %v1280
    %v1481 = vpack.c.b16 %v1289, %v1281
    %v1482 = vpack.c.b16 %v1290, %v1282
    %v1483 = vpack.c.b16 %v1299, %v1291
    %v1484 = vpack.c.b16 %v1300, %v1292
    %v1485 = vpack.c.b16 %v1301, %v1293
    %v1486 = vpack.c.b16 %v1302, %v1294
    %v1487 = vpack.c.b16 %v1303, %v1295
    %v1488 = vpack.c.b16 %v1304, %v1296
    %v1489 = vpack.c.b16 %v1305, %v1297
    %v1490 = vpack.c.b16 %v1306, %v1298
    %v1491 = vpack.c.b16 %v1315, %v1307
    %v1492 = vpack.c.b16 %v1316, %v1308
    %v1493 = vpack.c.b16 %v1317, %v1309
    %v1494 = vpack.c.b16 %v1318, %v1310
    %v1495 = vpack.c.b16 %v1319, %v1311
    %v1496 = vpack.c.b16 %v1320, %v1312
    %v1497 = vpack.c.b16 %v1321, %v1313
    %v1498 = vpack.c.b16 %v1322, %v1314
    %v1499 = vpack.c.b16 %v1331, %v1323
    %v1500 = vpack.c.b16 %v1332, %v1324
    %v1501 = vpack.c.b16 %v1333, %v1325
    %v1502 = vpack.c.b16 %v1334, %v1326
    %v1503 = vpack.c.b16 %v1335, %v1327
    %v1504 = vpack.c.b16 %v1336, %v1328
    %v1505 = vpack.c.b16 %v1337, %v1329
    %v1506 = vpack.c.b16 %v1338, %v1330
    %v1507 = vpack.c.b16 %v1347, %v1339
    %v1508 = vpack.c.b16 %v1348, %v1340
    %v1509 = vpack.c.b16 %v1349, %v1341
    %v1510 = vpack.c.b16 %v1350, %v1342
    %v1511 = vpack.c.b16 %v1351, %v1343
    %v1512 = vpack.c.b16 %v1352, %v1344
    %v1513 = vpack.c.b16 %v1353, %v1345
    %v1514 = vpack.c.b16 %v1354, %v1346
    %v1515 = vpack.c.b16 %v1363, %v1355
    %v1516 = vpack.c.b16 %v1364, %v1356
    %v1517 = vpack.c.b16 %v1365, %v1357
    %v1518 = vpack.c.b16 %v1366, %v1358
    %v1519 = vpack.c.b16 %v1367, %v1359
    %v1520 = vpack.c.b16 %v1368, %v1360
    %v1521 = vpack.c.b16 %v1369, %v1361
    %v1522 = vpack.c.b16 %v1370, %v1362
    %v1523 = vpack.c.b16 %v1379, %v1371
    %v1524 = vpack.c.b16 %v1380, %v1372
    %v1525 = vpack.c.b16 %v1381, %v1373
    %v1526 = vpack.c.b16 %v1382, %v1374
    %v1527 = vpack.c.b16 %v1383, %v1375
    %v1528 = vpack.c.b16 %v1384, %v1376
    %v1529 = vpack.c.b16 %v1385, %v1377
    %v1530 = vpack.c.b16 %v1386, %v1378
    %v1531 = vpack.c.b16 %v1395, %v1387
    %v1532 = vpack.c.b16 %v1396, %v1388
    %v1533 = vpack.c.b16 %v1397, %v1389
    %v1534 = vpack.c.b16 %v1398, %v1390
    %v1535 = vpack.c.b16 %v1399, %v1391
    %v1536 = vpack.c.b16 %v1400, %v1392
    %v1537 = vpack.c.b16 %v1401, %v1393
    %v1538 = vpack.c.b16 %v1402, %v1394
    %v1539 = vpack.c.b16 %v1411, %v1403
    %v1540 = vpack.c.b16 %v1412, %v1404
    %v1541 = vpack.c.b16 %v1413, %v1405
    %v1542 = vpack.c.b16 %v1414, %v1406
    %v1543 = vpack.c.b16 %v1415, %v1407
    %v1544 = vpack.c.b16 %v1416, %v1408
    %v1545 = vpack.c.b16 %v1417, %v1409
    %v1546 = vpack.c.b16 %v1418, %v1410
    %vm1667 = vcmask 998400
    %v1669 = vsel %vm1667, %v864, 0
    %vm1671 = vcmask 1044480
    %v1673 = vsel %vm1671, %v1539, 0
    %v1676 = vsel %vm1671, %v1540, 0
    %v1679 = vsel %vm1671, %v1541, 0
    %v1682 = vsel %vm1671, %v1542, 0
    %v1685 = vsel %vm1671, %v1543, 0
    %v1688 = vsel %vm1671, %v1544, 0
    %v1691 = vsel %vm1671, %v1545, 0
    %v1694 = vsel %vm1671, %v1546, 0
    %1696 = vmatprep.subr.bf16.mxu0 %v1420
    %1697 = vmatpush1.bf16.msra.mxu0 %v1419
    %1698 = vmatprep.subr.bf16.mxu0 %v1428
    %1699 = vmatpush1.bf16.msra.mxu0 %v1427
    %1700 = vmatprep.subr.bf16.mxu0 %v1436
    %1701 = vmatpush1.bf16.msra.mxu0 %v1435
    %1702 = vmatprep.subr.bf16.mxu0 %v1444
    %1703 = vmatpush1.bf16.msra.mxu0 %v1443
    %1704 = vmatprep.subr.bf16.mxu0 %v1452
    %1705 = vmatpush1.bf16.msra.mxu0 %v1451
    %1706 = vmatprep.subr.bf16.mxu0 %v1460
    %1707 = vmatpush1.bf16.msra.mxu0 %v1459
    %1708 = vmatprep.subr.bf16.mxu0 %v1468
    %1709 = vmatpush1.bf16.msra.mxu0 %v1467
    %1710 = vmatprep.subr.bf16.mxu0 %v1476
    %1711 = vmatpush1.bf16.msra.mxu0 %v1475
    %1712 = vmatprep.subr.bf16.mxu0 %v1484
    %1713 = vmatpush1.bf16.msra.mxu0 %v1483
    %1714 = vmatprep.subr.bf16.mxu0 %v1492
    %1715 = vmatpush1.bf16.msra.mxu0 %v1491
    %1716 = vmatprep.subr.bf16.mxu0 %v1500
    %1717 = vmatpush1.bf16.msra.mxu0 %v1499
    %1718 = vmatprep.subr.bf16.mxu0 %v1508
    %1719 = vmatpush1.bf16.msra.mxu0 %v1507
    %1720 = vmatprep.subr.bf16.mxu0 %v1516
    %1721 = vmatpush1.bf16.msra.mxu0 %v1515
    %1722 = vmatprep.subr.bf16.mxu0 %v1524
    %1723 = vmatpush1.bf16.msra.mxu0 %v1523
    %1724 = vmatprep.subr.bf16.mxu0 %v1532
    %1725 = vmatpush1.bf16.msra.mxu0 %v1531
    %1726 = vmatprep.subr.bf16.mxu0 %v1676
    %1727 = vmatpush1.bf16.msra.mxu0 %v1673
    %1728 = vmatprep.mubr.bf16.mxu0 %v1669
    %1729 = vmatmul.mubr.bf16.gmra.mrb[0].mxu0 %v863
    %v1730 = vpop.f32.mrb[0].mxu0
    %v1731 = vadd.f32 %v998, %v1730
    %v1732 = vpop.f32.mrb[0].mxu0
    %v1733 = vadd.f32 %v1002, %v1732
    %v1734 = vpop.f32.mrb[0].mxu0
    %v1735 = vpop.f32.mrb[0].mxu0
    %1736 = vdwg.mxu0
    %1737 = vmatprep.subr.bf16.mxu0 %v1422
    %1738 = vmatpush1.bf16.msra.mxu0 %v1421
    %1739 = vmatprep.subr.bf16.mxu0 %v1430
    %1740 = vmatpush1.bf16.msra.mxu0 %v1429
    %1741 = vmatprep.subr.bf16.mxu0 %v1438
    %1742 = vmatpush1.bf16.msra.mxu0 %v1437
    %1743 = vmatprep.subr.bf16.mxu0 %v1446
    %1744 = vmatpush1.bf16.msra.mxu0 %v1445
    %1745 = vmatprep.subr.bf16.mxu0 %v1454
    %1746 = vmatpush1.bf16.msra.mxu0 %v1453
    %1747 = vmatprep.subr.bf16.mxu0 %v1462
    %1748 = vmatpush1.bf16.msra.mxu0 %v1461
    %1749 = vmatprep.subr.bf16.mxu0 %v1470
    %1750 = vmatpush1.bf16.msra.mxu0 %v1469
    %1751 = vmatprep.subr.bf16.mxu0 %v1478
    %1752 = vmatpush1.bf16.msra.mxu0 %v1477
    %1753 = vmatprep.subr.bf16.mxu0 %v1486
    %1754 = vmatpush1.bf16.msra.mxu0 %v1485
    %1755 = vmatprep.subr.bf16.mxu0 %v1494
    %1756 = vmatpush1.bf16.msra.mxu0 %v1493
    %1757 = vmatprep.subr.bf16.mxu0 %v1502
    %1758 = vmatpush1.bf16.msra.mxu0 %v1501
    %1759 = vmatprep.subr.bf16.mxu0 %v1510
    %1760 = vmatpush1.bf16.msra.mxu0 %v1509
    %1761 = vmatprep.subr.bf16.mxu0 %v1518
    %1762 = vmatpush1.bf16.msra.mxu0 %v1517
    %1763 = vmatprep.subr.bf16.mxu0 %v1526
    %1764 = vmatpush1.bf16.msra.mxu0 %v1525
    %1765 = vmatprep.subr.bf16.mxu0 %v1534
    %1766 = vmatpush1.bf16.msra.mxu0 %v1533
    %1767 = vmatprep.subr.bf16.mxu0 %v1682
    %1768 = vmatpush1.bf16.msra.mxu0 %v1679
    %1769 = vmatprep.mubr.bf16.mxu0 %v1669
    %1770 = vmatmul.mubr.bf16.gmra.mrb[0].mxu0 %v863
    %v1771 = vpop.f32.mrb[0].mxu0
    %v1772 = vadd.f32 %v1006, %v1771
    %v1773 = vpop.f32.mrb[0].mxu0
    %v1774 = vadd.f32 %v1010, %v1773
    %v1775 = vpop.f32.mrb[0].mxu0
    %v1776 = vpop.f32.mrb[0].mxu0
    %1777 = vdwg.mxu0
    %1778 = vmatprep.subr.bf16.mxu0 %v1424
    %1779 = vmatpush1.bf16.msra.mxu0 %v1423
    %1780 = vmatprep.subr.bf16.mxu0 %v1432
    %1781 = vmatpush1.bf16.msra.mxu0 %v1431
    %1782 = vmatprep.subr.bf16.mxu0 %v1440
    %1783 = vmatpush1.bf16.msra.mxu0 %v1439
    %1784 = vmatprep.subr.bf16.mxu0 %v1448
    %1785 = vmatpush1.bf16.msra.mxu0 %v1447
    %1786 = vmatprep.subr.bf16.mxu0 %v1456
    %1787 = vmatpush1.bf16.msra.mxu0 %v1455
    %1788 = vmatprep.subr.bf16.mxu0 %v1464
    %1789 = vmatpush1.bf16.msra.mxu0 %v1463
    %1790 = vmatprep.subr.bf16.mxu0 %v1472
    %1791 = vmatpush1.bf16.msra.mxu0 %v1471
    %1792 = vmatprep.subr.bf16.mxu0 %v1480
    %1793 = vmatpush1.bf16.msra.mxu0 %v1479
    %1794 = vmatprep.subr.bf16.mxu0 %v1488
    %1795 = vmatpush1.bf16.msra.mxu0 %v1487
    %1796 = vmatprep.subr.bf16.mxu0 %v1496
    %1797 = vmatpush1.bf16.msra.mxu0 %v1495
    %1798 = vmatprep.subr.bf16.mxu0 %v1504
    %1799 = vmatpush1.bf16.msra.mxu0 %v1503
    %1800 = vmatprep.subr.bf16.mxu0 %v1512
    %1801 = vmatpush1.bf16.msra.mxu0 %v1511
    %1802 = vmatprep.subr.bf16.mxu0 %v1520
    %1803 = vmatpush1.bf16.msra.mxu0 %v1519
    %1804 = vmatprep.subr.bf16.mxu0 %v1528
    %1805 = vmatpush1.bf16.msra.mxu0 %v1527
    %1806 = vmatprep.subr.bf16.mxu0 %v1536
    %1807 = vmatpush1.bf16.msra.mxu0 %v1535
    %1808 = vmatprep.subr.bf16.mxu0 %v1688
    %1809 = vmatpush1.bf16.msra.mxu0 %v1685
    %1810 = vmatprep.mubr.bf16.mxu0 %v1669
    %1811 = vmatmul.mubr.bf16.gmra.mrb[0].mxu0 %v863
    %v1812 = vpop.f32.mrb[0].mxu0
    %v1813 = vadd.f32 %v1014, %v1812
    %v1814 = vpop.f32.mrb[0].mxu0
    %v1815 = vadd.f32 %v1018, %v1814
    %v1816 = vpop.f32.mrb[0].mxu0
    %v1817 = vpop.f32.mrb[0].mxu0
    %1818 = vdwg.mxu0
    %1819 = vmatprep.subr.bf16.mxu0 %v1426
    %1820 = vmatpush1.bf16.msra.mxu0 %v1425
    %1821 = vmatprep.subr.bf16.mxu0 %v1434
    %1822 = vmatpush1.bf16.msra.mxu0 %v1433
    %1823 = vmatprep.subr.bf16.mxu0 %v1442
    %1824 = vmatpush1.bf16.msra.mxu0 %v1441
    %1825 = vmatprep.subr.bf16.mxu0 %v1450
    %1826 = vmatpush1.bf16.msra.mxu0 %v1449
    %1827 = vmatprep.subr.bf16.mxu0 %v1458
    %1828 = vmatpush1.bf16.msra.mxu0 %v1457
    %1829 = vmatprep.subr.bf16.mxu0 %v1466
    %1830 = vmatpush1.bf16.msra.mxu0 %v1465
    %1831 = vmatprep.subr.bf16.mxu0 %v1474
    %1832 = vmatpush1.bf16.msra.mxu0 %v1473
    %1833 = vmatprep.subr.bf16.mxu0 %v1482
    %1834 = vmatpush1.bf16.msra.mxu0 %v1481
    %1835 = vmatprep.subr.bf16.mxu0 %v1490
    %1836 = vmatpush1.bf16.msra.mxu0 %v1489
    %1837 = vmatprep.subr.bf16.mxu0 %v1498
    %1838 = vmatpush1.bf16.msra.mxu0 %v1497
    %1839 = vmatprep.subr.bf16.mxu0 %v1506
    %1840 = vmatpush1.bf16.msra.mxu0 %v1505
    %1841 = vmatprep.subr.bf16.mxu0 %v1514
    %1842 = vmatpush1.bf16.msra.mxu0 %v1513
    %1843 = vmatprep.subr.bf16.mxu0 %v1522
    %1844 = vmatpush1.bf16.msra.mxu0 %v1521
    %1845 = vmatprep.subr.bf16.mxu0 %v1530
    %1846 = vmatpush1.bf16.msra.mxu0 %v1529
    %1847 = vmatprep.subr.bf16.mxu0 %v1538
    %1848 = vmatpush1.bf16.msra.mxu0 %v1537
    %1849 = vmatprep.subr.bf16.mxu0 %v1694
    %1850 = vmatpush1.bf16.msra.mxu0 %v1691
    %1851 = vmatprep.mubr.bf16.mxu0 %v1669
    %1852 = vmatmul.mubr.bf16.gmra.mrb[0].mxu0 %v863
    %v1853 = vpop.f32.mrb[0].mxu0
    %v1854 = vadd.f32 %v1022, %v1853
    %v1855 = vpop.f32.mrb[0].mxu0
    %v1856 = vadd.f32 %v1026, %v1855
    %v1857 = vpop.f32.mrb[0].mxu0
    %v1858 = vpop.f32.mrb[0].mxu0
    %1859 = vdwg.mxu0
    %v1860 = vmax.f32 %v1731, 0.0
    %v1861 = vmax.f32 %v1733, 0.0
    %v1862 = vmax.f32 %v1772, 0.0
    %v1863 = vmax.f32 %v1774, 0.0
    %v1864 = vmax.f32 %v1813, 0.0
    %v1865 = vmax.f32 %v1815, 0.0
    %v1866 = vmax.f32 %v1854, 0.0
    %v1867 = vmax.f32 %v1856, 0.0
    %v1868 = vpack.c.bf16 %v1860, %v1860
    %v1869 = vpack.c.bf16 %v1861, %v1861
    %v1870 = vpack.c.bf16 %v1862, %v1862
    %v1871 = vpack.c.bf16 %v1863, %v1863
    %v1872 = vpack.c.bf16 %v1864, %v1864
    %v1873 = vpack.c.bf16 %v1865, %v1865
    %v1874 = vpack.c.bf16 %v1866, %v1866
    %v1875 = vpack.c.bf16 %v1867, %v1867
    %v1876 = vld [vmem:[%s5] sm:$0xff]
    %v1877 = vld [vmem:[%s5 + $0x8] sm:$0xff]
    %v1878 = vld [vmem:[%s5 + $0x10] sm:$0xff]
    %v1879 = vld [vmem:[%s5 + $0x18] sm:$0xff]
    %v1880 = vld [vmem:[%s5 + $0x20] sm:$0xff]
    %v1881 = vld [vmem:[%s5 + $0x28] sm:$0xff]
    %v1882 = vld [vmem:[%s5 + $0x30] sm:$0xff]
    %v1883 = vld [vmem:[%s5 + $0x38] sm:$0xff]
    %v1884 = vld [vmem:[%s5 + $0x40] sm:$0xff]
    %v1885 = vld [vmem:[%s5 + $0x48] sm:$0xff]
    %v1886 = vld [vmem:[%s5 + $0x50] sm:$0xff]
    %v1887 = vld [vmem:[%s5 + $0x58] sm:$0xff]
    %v1888 = vld [vmem:[%s5 + $0x60] sm:$0xff]
    %v1889 = vld [vmem:[%s5 + $0x68] sm:$0xff]
    %v1890 = vld [vmem:[%s5 + $0x70] sm:$0xff]
    %v1891 = vld [vmem:[%s5 + $0x78] sm:$0xff]
    %v1892 = vld [vmem:[%s5 + $0x80] sm:$0xff]
    %v1893 = vld [vmem:[%s5 + $0x88] sm:$0xff]
    %v1894 = vld [vmem:[%s5 + $0x90] sm:$0xff]
    %v1895 = vld [vmem:[%s5 + $0x98] sm:$0xff]
    %v1896 = vld [vmem:[%s5 + $0xa0] sm:$0xff]
    %v1897 = vld [vmem:[%s5 + $0xa8] sm:$0xff]
    %v1898 = vld [vmem:[%s5 + $0xb0] sm:$0xff]
    %v1899 = vld [vmem:[%s5 + $0xb8] sm:$0xff]
    %v1900 = vld [vmem:[%s5 + $0xc0] sm:$0xff]
    %v1901 = vld [vmem:[%s5 + $0xc8] sm:$0xff]
    %v1902 = vld [vmem:[%s5 + $0xd0] sm:$0xff]
    %v1903 = vld [vmem:[%s5 + $0xd8] sm:$0xff]
    %v1904 = vld [vmem:[%s5 + $0xe0] sm:$0xff]
    %v1905 = vld [vmem:[%s5 + $0xe8] sm:$0xff]
    %v1906 = vld [vmem:[%s5 + $0xf0] sm:$0xff]
    %v1907 = vld [vmem:[%s5 + $0xf8] sm:$0xff]
    %v1908 = vld [vmem:[%s5 + $0x100] sm:$0xff]
    %v1909 = vld [vmem:[%s5 + $0x108] sm:$0xff]
    %v1910 = vld [vmem:[%s5 + $0x110] sm:$0xff]
    %v1911 = vld [vmem:[%s5 + $0x118] sm:$0xff]
    %v1912 = vld [vmem:[%s5 + $0x120] sm:$0xff]
    %v1913 = vld [vmem:[%s5 + $0x128] sm:$0xff]
    %v1914 = vld [vmem:[%s5 + $0x130] sm:$0xff]
    %v1915 = vld [vmem:[%s5 + $0x138] sm:$0xff]
    %v1916 = vld [vmem:[%s5 + $0x140] sm:$0xff]
    %v1917 = vld [vmem:[%s5 + $0x148] sm:$0xff]
    %v1918 = vld [vmem:[%s5 + $0x150] sm:$0xff]
    %v1919 = vld [vmem:[%s5 + $0x158] sm:$0xff]
    %v1920 = vld [vmem:[%s5 + $0x160] sm:$0xff]
    %v1921 = vld [vmem:[%s5 + $0x168] sm:$0xff]
    %v1922 = vld [vmem:[%s5 + $0x170] sm:$0xff]
    %v1923 = vld [vmem:[%s5 + $0x178] sm:$0xff]
    %v1924 = vld [vmem:[%s5 + $0x180] sm:$0xff]
    %v1925 = vld [vmem:[%s5 + $0x188] sm:$0xff]
    %v1926 = vld [vmem:[%s5 + $0x190] sm:$0xff]
    %v1927 = vld [vmem:[%s5 + $0x198] sm:$0xff]
    %v1928 = vld [vmem:[%s5 + $0x1a0] sm:$0xff]
    %v1929 = vld [vmem:[%s5 + $0x1a8] sm:$0xff]
    %v1930 = vld [vmem:[%s5 + $0x1b0] sm:$0xff]
    %v1931 = vld [vmem:[%s5 + $0x1b8] sm:$0xff]
    %v1932 = vld [vmem:[%s5 + $0x1c0] sm:$0xff]
    %v1933 = vld [vmem:[%s5 + $0x1c8] sm:$0xff]
    %v1934 = vld [vmem:[%s5 + $0x1d0] sm:$0xff]
    %v1935 = vld [vmem:[%s5 + $0x1d8] sm:$0xff]
    %v1936 = vld [vmem:[%s5 + $0x1e0] sm:$0xff]
    %v1937 = vld [vmem:[%s5 + $0x1e8] sm:$0xff]
    %v1938 = vld [vmem:[%s5 + $0x1f0] sm:$0xff]
    %v1939 = vld [vmem:[%s5 + $0x1f8] sm:$0xff]
    %v1940 = vld [vmem:[%s5 + $0x200] sm:$0xff]
    %v1941 = vld [vmem:[%s5 + $0x208] sm:$0xff]
    %v1942 = vld [vmem:[%s5 + $0x210] sm:$0xff]
    %v1943 = vld [vmem:[%s5 + $0x218] sm:$0xff]
    %v1944 = vld [vmem:[%s5 + $0x220] sm:$0xff]
    %v1945 = vld [vmem:[%s5 + $0x228] sm:$0xff]
    %v1946 = vld [vmem:[%s5 + $0x230] sm:$0xff]
    %v1947 = vld [vmem:[%s5 + $0x238] sm:$0xff]
    %v1948 = vld [vmem:[%s5 + $0x240] sm:$0xff]
    %v1949 = vld [vmem:[%s5 + $0x248] sm:$0xff]
    %v1950 = vld [vmem:[%s5 + $0x250] sm:$0xff]
    %v1951 = vld [vmem:[%s5 + $0x258] sm:$0xff]
    %v1952 = vld [vmem:[%s5 + $0x260] sm:$0xff]
    %v1953 = vld [vmem:[%s5 + $0x268] sm:$0xff]
    %v1954 = vld [vmem:[%s5 + $0x270] sm:$0xff]
    %v1955 = vld [vmem:[%s5 + $0x278] sm:$0xff]
    %v1956 = vld [vmem:[%s5 + $0x280] sm:$0xff]
    %v1957 = vld [vmem:[%s5 + $0x288] sm:$0xff]
    %v1958 = vld [vmem:[%s5 + $0x290] sm:$0xff]
    %v1959 = vld [vmem:[%s5 + $0x298] sm:$0xff]
    %v1960 = vld [vmem:[%s5 + $0x2a0] sm:$0xff]
    %v1961 = vld [vmem:[%s5 + $0x2a8] sm:$0xff]
    %v1962 = vld [vmem:[%s5 + $0x2b0] sm:$0xff]
    %v1963 = vld [vmem:[%s5 + $0x2b8] sm:$0xff]
    %v1964 = vld [vmem:[%s5 + $0x2c0] sm:$0xff]
    %v1965 = vld [vmem:[%s5 + $0x2c8] sm:$0xff]
    %v1966 = vld [vmem:[%s5 + $0x2d0] sm:$0xff]
    %v1967 = vld [vmem:[%s5 + $0x2d8] sm:$0xff]
    %v1968 = vld [vmem:[%s5 + $0x2e0] sm:$0xff]
    %v1969 = vld [vmem:[%s5 + $0x2e8] sm:$0xff]
    %v1970 = vld [vmem:[%s5 + $0x2f0] sm:$0xff]
    %v1971 = vld [vmem:[%s5 + $0x2f8] sm:$0xff]
    %v1972 = vld [vmem:[%s5 + $0x300] sm:$0xff]
    %v1973 = vld [vmem:[%s5 + $0x308] sm:$0xff]
    %v1974 = vld [vmem:[%s5 + $0x310] sm:$0xff]
    %v1975 = vld [vmem:[%s5 + $0x318] sm:$0xff]
    %v1976 = vld [vmem:[%s5 + $0x320] sm:$0xff]
    %v1977 = vld [vmem:[%s5 + $0x328] sm:$0xff]
    %v1978 = vld [vmem:[%s5 + $0x330] sm:$0xff]
    %v1979 = vld [vmem:[%s5 + $0x338] sm:$0xff]
    %v1980 = vld [vmem:[%s5 + $0x340] sm:$0xff]
    %v1981 = vld [vmem:[%s5 + $0x348] sm:$0xff]
    %v1982 = vld [vmem:[%s5 + $0x350] sm:$0xff]
    %v1983 = vld [vmem:[%s5 + $0x358] sm:$0xff]
    %v1984 = vld [vmem:[%s5 + $0x360] sm:$0xff]
    %v1985 = vld [vmem:[%s5 + $0x368] sm:$0xff]
    %v1986 = vld [vmem:[%s5 + $0x370] sm:$0xff]
    %v1987 = vld [vmem:[%s5 + $0x378] sm:$0xff]
    %v1988 = vld [vmem:[%s5 + $0x380] sm:$0xff]
    %v1989 = vld [vmem:[%s5 + $0x388] sm:$0xff]
    %v1990 = vld [vmem:[%s5 + $0x390] sm:$0xff]
    %v1991 = vld [vmem:[%s5 + $0x398] sm:$0xff]
    %v1992 = vld [vmem:[%s5 + $0x3a0] sm:$0xff]
    %v1993 = vld [vmem:[%s5 + $0x3a8] sm:$0xff]
    %v1994 = vld [vmem:[%s5 + $0x3b0] sm:$0xff]
    %v1995 = vld [vmem:[%s5 + $0x3b8] sm:$0xff]
    %v1996 = vld [vmem:[%s5 + $0x3c0] sm:$0xff]
    %v1997 = vld [vmem:[%s5 + $0x3c8] sm:$0xff]
    %v1998 = vld [vmem:[%s5 + $0x3d0] sm:$0xff]
    %v1999 = vld [vmem:[%s5 + $0x3d8] sm:$0xff]
    %v2000 = vld [vmem:[%s5 + $0x3e0] sm:$0xff]
    %v2001 = vld [vmem:[%s6] sm:$0x3]
    %v2003 = vlaneseq
    %v2004 = vshrl.u32 %v2003, 7
    %v2005 = vsub.s32 0, %v2004
    %v2006 = vrot.slane %v2001, %v2005
    %v2007 = vlaneseq
    %v2008 = vshrl.u32 %v2007, 7
    %v2009 = vsub.s32 1, %v2008
    %v2010 = vrot.slane %v2001, %v2009
    %v2138 = vunpack.c.l.b16 %v1876
    %v2139 = vunpack.c.h.b16 %v1876
    %v2140 = vunpack.c.l.b16 %v1877
    %v2141 = vunpack.c.h.b16 %v1877
    %v2142 = vunpack.c.l.b16 %v1878
    %v2143 = vunpack.c.h.b16 %v1878
    %v2144 = vunpack.c.l.b16 %v1879
    %v2145 = vunpack.c.h.b16 %v1879
    %v2146 = vunpack.c.l.b16 %v1880
    %v2147 = vunpack.c.h.b16 %v1880
    %v2148 = vunpack.c.l.b16 %v1881
    %v2149 = vunpack.c.h.b16 %v1881
    %v2150 = vunpack.c.l.b16 %v1882
    %v2151 = vunpack.c.h.b16 %v1882
    %v2152 = vunpack.c.l.b16 %v1883
    %v2153 = vunpack.c.h.b16 %v1883
    %v2154 = vunpack.c.l.b16 %v1884
    %v2155 = vunpack.c.h.b16 %v1884
    %v2156 = vunpack.c.l.b16 %v1885
    %v2157 = vunpack.c.h.b16 %v1885
    %v2158 = vunpack.c.l.b16 %v1886
    %v2159 = vunpack.c.h.b16 %v1886
    %v2160 = vunpack.c.l.b16 %v1887
    %v2161 = vunpack.c.h.b16 %v1887
    %v2162 = vunpack.c.l.b16 %v1888
    %v2163 = vunpack.c.h.b16 %v1888
    %v2164 = vunpack.c.l.b16 %v1889
    %v2165 = vunpack.c.h.b16 %v1889
    %v2166 = vunpack.c.l.b16 %v1890
    %v2167 = vunpack.c.h.b16 %v1890
    %v2168 = vunpack.c.l.b16 %v1891
    %v2169 = vunpack.c.h.b16 %v1891
    %v2170 = vunpack.c.l.b16 %v1892
    %v2171 = vunpack.c.h.b16 %v1892
    %v2172 = vunpack.c.l.b16 %v1893
    %v2173 = vunpack.c.h.b16 %v1893
    %v2174 = vunpack.c.l.b16 %v1894
    %v2175 = vunpack.c.h.b16 %v1894
    %v2176 = vunpack.c.l.b16 %v1895
    %v2177 = vunpack.c.h.b16 %v1895
    %v2178 = vunpack.c.l.b16 %v1896
    %v2179 = vunpack.c.h.b16 %v1896
    %v2180 = vunpack.c.l.b16 %v1897
    %v2181 = vunpack.c.h.b16 %v1897
    %v2182 = vunpack.c.l.b16 %v1898
    %v2183 = vunpack.c.h.b16 %v1898
    %v2184 = vunpack.c.l.b16 %v1899
    %v2185 = vunpack.c.h.b16 %v1899
    %v2186 = vunpack.c.l.b16 %v1900
    %v2187 = vunpack.c.h.b16 %v1900
    %v2188 = vunpack.c.l.b16 %v1901
    %v2189 = vunpack.c.h.b16 %v1901
    %v2190 = vunpack.c.l.b16 %v1902
    %v2191 = vunpack.c.h.b16 %v1902
    %v2192 = vunpack.c.l.b16 %v1903
    %v2193 = vunpack.c.h.b16 %v1903
    %v2194 = vunpack.c.l.b16 %v1904
    %v2195 = vunpack.c.h.b16 %v1904
    %v2196 = vunpack.c.l.b16 %v1905
    %v2197 = vunpack.c.h.b16 %v1905
    %v2198 = vunpack.c.l.b16 %v1906
    %v2199 = vunpack.c.h.b16 %v1906
    %v2200 = vunpack.c.l.b16 %v1907
    %v2201 = vunpack.c.h.b16 %v1907
    %v2202 = vunpack.c.l.b16 %v1908
    %v2203 = vunpack.c.h.b16 %v1908
    %v2204 = vunpack.c.l.b16 %v1909
    %v2205 = vunpack.c.h.b16 %v1909
    %v2206 = vunpack.c.l.b16 %v1910
    %v2207 = vunpack.c.h.b16 %v1910
    %v2208 = vunpack.c.l.b16 %v1911
    %v2209 = vunpack.c.h.b16 %v1911
    %v2210 = vunpack.c.l.b16 %v1912
    %v2211 = vunpack.c.h.b16 %v1912
    %v2212 = vunpack.c.l.b16 %v1913
    %v2213 = vunpack.c.h.b16 %v1913
    %v2214 = vunpack.c.l.b16 %v1914
    %v2215 = vunpack.c.h.b16 %v1914
    %v2216 = vunpack.c.l.b16 %v1915
    %v2217 = vunpack.c.h.b16 %v1915
    %v2218 = vunpack.c.l.b16 %v1916
    %v2219 = vunpack.c.h.b16 %v1916
    %v2220 = vunpack.c.l.b16 %v1917
    %v2221 = vunpack.c.h.b16 %v1917
    %v2222 = vunpack.c.l.b16 %v1918
    %v2223 = vunpack.c.h.b16 %v1918
    %v2224 = vunpack.c.l.b16 %v1919
    %v2225 = vunpack.c.h.b16 %v1919
    %v2226 = vunpack.c.l.b16 %v1920
    %v2227 = vunpack.c.h.b16 %v1920
    %v2228 = vunpack.c.l.b16 %v1921
    %v2229 = vunpack.c.h.b16 %v1921
    %v2230 = vunpack.c.l.b16 %v1922
    %v2231 = vunpack.c.h.b16 %v1922
    %v2232 = vunpack.c.l.b16 %v1923
    %v2233 = vunpack.c.h.b16 %v1923
    %v2234 = vunpack.c.l.b16 %v1924
    %v2235 = vunpack.c.h.b16 %v1924
    %v2236 = vunpack.c.l.b16 %v1925
    %v2237 = vunpack.c.h.b16 %v1925
    %v2238 = vunpack.c.l.b16 %v1926
    %v2239 = vunpack.c.h.b16 %v1926
    %v2240 = vunpack.c.l.b16 %v1927
    %v2241 = vunpack.c.h.b16 %v1927
    %v2242 = vunpack.c.l.b16 %v1928
    %v2243 = vunpack.c.h.b16 %v1928
    %v2244 = vunpack.c.l.b16 %v1929
    %v2245 = vunpack.c.h.b16 %v1929
    %v2246 = vunpack.c.l.b16 %v1930
    %v2247 = vunpack.c.h.b16 %v1930
    %v2248 = vunpack.c.l.b16 %v1931
    %v2249 = vunpack.c.h.b16 %v1931
    %v2250 = vunpack.c.l.b16 %v1932
    %v2251 = vunpack.c.h.b16 %v1932
    %v2252 = vunpack.c.l.b16 %v1933
    %v2253 = vunpack.c.h.b16 %v1933
    %v2254 = vunpack.c.l.b16 %v1934
    %v2255 = vunpack.c.h.b16 %v1934
    %v2256 = vunpack.c.l.b16 %v1935
    %v2257 = vunpack.c.h.b16 %v1935
    %v2258 = vunpack.c.l.b16 %v1936
    %v2259 = vunpack.c.h.b16 %v1936
    %v2260 = vunpack.c.l.b16 %v1937
    %v2261 = vunpack.c.h.b16 %v1937
    %v2262 = vunpack.c.l.b16 %v1938
    %v2263 = vunpack.c.h.b16 %v1938
    %v2264 = vunpack.c.l.b16 %v1939
    %v2265 = vunpack.c.h.b16 %v1939
    %v2266 = vunpack.c.l.b16 %v1940
    %v2267 = vunpack.c.h.b16 %v1940
    %v2268 = vunpack.c.l.b16 %v1941
    %v2269 = vunpack.c.h.b16 %v1941
    %v2270 = vunpack.c.l.b16 %v1942
    %v2271 = vunpack.c.h.b16 %v1942
    %v2272 = vunpack.c.l.b16 %v1943
    %v2273 = vunpack.c.h.b16 %v1943
    %v2274 = vunpack.c.l.b16 %v1944
    %v2275 = vunpack.c.h.b16 %v1944
    %v2276 = vunpack.c.l.b16 %v1945
    %v2277 = vunpack.c.h.b16 %v1945
    %v2278 = vunpack.c.l.b16 %v1946
    %v2279 = vunpack.c.h.b16 %v1946
    %v2280 = vunpack.c.l.b16 %v1947
    %v2281 = vunpack.c.h.b16 %v1947
    %v2282 = vunpack.c.l.b16 %v1948
    %v2283 = vunpack.c.h.b16 %v1948
    %v2284 = vunpack.c.l.b16 %v1949
    %v2285 = vunpack.c.h.b16 %v1949
    %v2286 = vunpack.c.l.b16 %v1950
    %v2287 = vunpack.c.h.b16 %v1950
    %v2288 = vunpack.c.l.b16 %v1951
    %v2289 = vunpack.c.h.b16 %v1951
    %v2290 = vunpack.c.l.b16 %v1952
    %v2291 = vunpack.c.h.b16 %v1952
    %v2292 = vunpack.c.l.b16 %v1953
    %v2293 = vunpack.c.h.b16 %v1953
    %v2294 = vunpack.c.l.b16 %v1954
    %v2295 = vunpack.c.h.b16 %v1954
    %v2296 = vunpack.c.l.b16 %v1955
    %v2297 = vunpack.c.h.b16 %v1955
    %v2298 = vunpack.c.l.b16 %v1956
    %v2299 = vunpack.c.h.b16 %v1956
    %v2300 = vunpack.c.l.b16 %v1957
    %v2301 = vunpack.c.h.b16 %v1957
    %v2302 = vunpack.c.l.b16 %v1958
    %v2303 = vunpack.c.h.b16 %v1958
    %v2304 = vunpack.c.l.b16 %v1959
    %v2305 = vunpack.c.h.b16 %v1959
    %v2306 = vunpack.c.l.b16 %v1960
    %v2307 = vunpack.c.h.b16 %v1960
    %v2308 = vunpack.c.l.b16 %v1961
    %v2309 = vunpack.c.h.b16 %v1961
    %v2310 = vunpack.c.l.b16 %v1962
    %v2311 = vunpack.c.h.b16 %v1962
    %v2312 = vunpack.c.l.b16 %v1963
    %v2313 = vunpack.c.h.b16 %v1963
    %v2314 = vunpack.c.l.b16 %v1964
    %v2315 = vunpack.c.h.b16 %v1964
    %v2316 = vunpack.c.l.b16 %v1965
    %v2317 = vunpack.c.h.b16 %v1965
    %v2318 = vunpack.c.l.b16 %v1966
    %v2319 = vunpack.c.h.b16 %v1966
    %v2320 = vunpack.c.l.b16 %v1967
    %v2321 = vunpack.c.h.b16 %v1967
    %v2322 = vunpack.c.l.b16 %v1968
    %v2323 = vunpack.c.h.b16 %v1968
    %v2324 = vunpack.c.l.b16 %v1969
    %v2325 = vunpack.c.h.b16 %v1969
    %v2326 = vunpack.c.l.b16 %v1970
    %v2327 = vunpack.c.h.b16 %v1970
    %v2328 = vunpack.c.l.b16 %v1971
    %v2329 = vunpack.c.h.b16 %v1971
    %v2330 = vunpack.c.l.b16 %v1972
    %v2331 = vunpack.c.h.b16 %v1972
    %v2332 = vunpack.c.l.b16 %v1973
    %v2333 = vunpack.c.h.b16 %v1973
    %v2334 = vunpack.c.l.b16 %v1974
    %v2335 = vunpack.c.h.b16 %v1974
    %v2336 = vunpack.c.l.b16 %v1975
    %v2337 = vunpack.c.h.b16 %v1975
    %v2338 = vunpack.c.l.b16 %v1976
    %v2339 = vunpack.c.h.b16 %v1976
    %v2340 = vunpack.c.l.b16 %v1977
    %v2341 = vunpack.c.h.b16 %v1977
    %v2342 = vunpack.c.l.b16 %v1978
    %v2343 = vunpack.c.h.b16 %v1978
    %v2344 = vunpack.c.l.b16 %v1979
    %v2345 = vunpack.c.h.b16 %v1979
    %v2346 = vunpack.c.l.b16 %v1980
    %v2347 = vunpack.c.h.b16 %v1980
    %v2348 = vunpack.c.l.b16 %v1981
    %v2349 = vunpack.c.h.b16 %v1981
    %v2350 = vunpack.c.l.b16 %v1982
    %v2351 = vunpack.c.h.b16 %v1982
    %v2352 = vunpack.c.l.b16 %v1983
    %v2353 = vunpack.c.h.b16 %v1983
    %v2354 = vunpack.c.l.b16 %v1984
    %v2355 = vunpack.c.h.b16 %v1984
    %v2356 = vunpack.c.l.b16 %v1985
    %v2357 = vunpack.c.h.b16 %v1985
    %v2358 = vunpack.c.l.b16 %v1986
    %v2359 = vunpack.c.h.b16 %v1986
    %v2360 = vunpack.c.l.b16 %v1987
    %v2361 = vunpack.c.h.b16 %v1987
    %v2362 = vunpack.c.l.b16 %v1988
    %v2363 = vunpack.c.h.b16 %v1988
    %v2364 = vunpack.c.l.b16 %v1989
    %v2365 = vunpack.c.h.b16 %v1989
    %v2366 = vunpack.c.l.b16 %v1990
    %v2367 = vunpack.c.h.b16 %v1990
    %v2368 = vunpack.c.l.b16 %v1991
    %v2369 = vunpack.c.h.b16 %v1991
    %v2370 = vunpack.c.l.b16 %v1992
    %v2371 = vunpack.c.h.b16 %v1992
    %v2372 = vunpack.c.l.b16 %v1993
    %v2373 = vunpack.c.h.b16 %v1993
    %v2374 = vunpack.c.l.b16 %v1994
    %v2375 = vunpack.c.h.b16 %v1994
    %v2376 = vunpack.c.l.b16 %v1995
    %v2377 = vunpack.c.h.b16 %v1995
    %v2378 = vunpack.c.l.b16 %v1996
    %v2379 = vunpack.c.h.b16 %v1996
    %v2380 = vunpack.c.l.b16 %v1997
    %v2381 = vunpack.c.h.b16 %v1997
    %v2382 = vunpack.c.l.b16 %v1998
    %v2383 = vunpack.c.h.b16 %v1998
    %v2384 = vunpack.c.l.b16 %v1999
    %v2385 = vunpack.c.h.b16 %v1999
    %v2386 = vunpack.c.l.b16 %v2000
    %v2387 = vunpack.c.h.b16 %v2000
    %v2388 = vpack.c.b16 %v2140, %v2138
    %v2389 = vpack.c.b16 %v2141, %v2139
    %v2390 = vpack.c.b16 %v2144, %v2142
    %v2391 = vpack.c.b16 %v2145, %v2143
    %v2392 = vpack.c.b16 %v2148, %v2146
    %v2393 = vpack.c.b16 %v2149, %v2147
    %v2394 = vpack.c.b16 %v2152, %v2150
    %v2395 = vpack.c.b16 %v2153, %v2151
    %v2396 = vpack.c.b16 %v2156, %v2154
    %v2397 = vpack.c.b16 %v2157, %v2155
    %v2398 = vpack.c.b16 %v2160, %v2158
    %v2399 = vpack.c.b16 %v2161, %v2159
    %v2400 = vpack.c.b16 %v2164, %v2162
    %v2401 = vpack.c.b16 %v2165, %v2163
    %v2402 = vpack.c.b16 %v2168, %v2166
    %v2403 = vpack.c.b16 %v2169, %v2167
    %v2404 = vpack.c.b16 %v2172, %v2170
    %v2405 = vpack.c.b16 %v2173, %v2171
    %v2406 = vpack.c.b16 %v2176, %v2174
    %v2407 = vpack.c.b16 %v2177, %v2175
    %v2408 = vpack.c.b16 %v2180, %v2178
    %v2409 = vpack.c.b16 %v2181, %v2179
    %v2410 = vpack.c.b16 %v2184, %v2182
    %v2411 = vpack.c.b16 %v2185, %v2183
    %v2412 = vpack.c.b16 %v2188, %v2186
    %v2413 = vpack.c.b16 %v2189, %v2187
    %v2414 = vpack.c.b16 %v2192, %v2190
    %v2415 = vpack.c.b16 %v2193, %v2191
    %v2416 = vpack.c.b16 %v2196, %v2194
    %v2417 = vpack.c.b16 %v2197, %v2195
    %v2418 = vpack.c.b16 %v2200, %v2198
    %v2419 = vpack.c.b16 %v2201, %v2199
    %v2420 = vpack.c.b16 %v2204, %v2202
    %v2421 = vpack.c.b16 %v2205, %v2203
    %v2422 = vpack.c.b16 %v2208, %v2206
    %v2423 = vpack.c.b16 %v2209, %v2207
    %v2424 = vpack.c.b16 %v2212, %v2210
    %v2425 = vpack.c.b16 %v2213, %v2211
    %v2426 = vpack.c.b16 %v2216, %v2214
    %v2427 = vpack.c.b16 %v2217, %v2215
    %v2428 = vpack.c.b16 %v2220, %v2218
    %v2429 = vpack.c.b16 %v2221, %v2219
    %v2430 = vpack.c.b16 %v2224, %v2222
    %v2431 = vpack.c.b16 %v2225, %v2223
    %v2432 = vpack.c.b16 %v2228, %v2226
    %v2433 = vpack.c.b16 %v2229, %v2227
    %v2434 = vpack.c.b16 %v2232, %v2230
    %v2435 = vpack.c.b16 %v2233, %v2231
    %v2436 = vpack.c.b16 %v2236, %v2234
    %v2437 = vpack.c.b16 %v2237, %v2235
    %v2438 = vpack.c.b16 %v2240, %v2238
    %v2439 = vpack.c.b16 %v2241, %v2239
    %v2440 = vpack.c.b16 %v2244, %v2242
    %v2441 = vpack.c.b16 %v2245, %v2243
    %v2442 = vpack.c.b16 %v2248, %v2246
    %v2443 = vpack.c.b16 %v2249, %v2247
    %v2444 = vpack.c.b16 %v2252, %v2250
    %v2445 = vpack.c.b16 %v2253, %v2251
    %v2446 = vpack.c.b16 %v2256, %v2254
    %v2447 = vpack.c.b16 %v2257, %v2255
    %v2448 = vpack.c.b16 %v2260, %v2258
    %v2449 = vpack.c.b16 %v2261, %v2259
    %v2450 = vpack.c.b16 %v2264, %v2262
    %v2451 = vpack.c.b16 %v2265, %v2263
    %v2452 = vpack.c.b16 %v2268, %v2266
    %v2453 = vpack.c.b16 %v2269, %v2267
    %v2454 = vpack.c.b16 %v2272, %v2270
    %v2455 = vpack.c.b16 %v2273, %v2271
    %v2456 = vpack.c.b16 %v2276, %v2274
    %v2457 = vpack.c.b16 %v2277, %v2275
    %v2458 = vpack.c.b16 %v2280, %v2278
    %v2459 = vpack.c.b16 %v2281, %v2279
    %v2460 = vpack.c.b16 %v2284, %v2282
    %v2461 = vpack.c.b16 %v2285, %v2283
    %v2462 = vpack.c.b16 %v2288, %v2286
    %v2463 = vpack.c.b16 %v2289, %v2287
    %v2464 = vpack.c.b16 %v2292, %v2290
    %v2465 = vpack.c.b16 %v2293, %v2291
    %v2466 = vpack.c.b16 %v2296, %v2294
    %v2467 = vpack.c.b16 %v2297, %v2295
    %v2468 = vpack.c.b16 %v2300, %v2298
    %v2469 = vpack.c.b16 %v2301, %v2299
    %v2470 = vpack.c.b16 %v2304, %v2302
    %v2471 = vpack.c.b16 %v2305, %v2303
    %v2472 = vpack.c.b16 %v2308, %v2306
    %v2473 = vpack.c.b16 %v2309, %v2307
    %v2474 = vpack.c.b16 %v2312, %v2310
    %v2475 = vpack.c.b16 %v2313, %v2311
    %v2476 = vpack.c.b16 %v2316, %v2314
    %v2477 = vpack.c.b16 %v2317, %v2315
    %v2478 = vpack.c.b16 %v2320, %v2318
    %v2479 = vpack.c.b16 %v2321, %v2319
    %v2480 = vpack.c.b16 %v2324, %v2322
    %v2481 = vpack.c.b16 %v2325, %v2323
    %v2482 = vpack.c.b16 %v2328, %v2326
    %v2483 = vpack.c.b16 %v2329, %v2327
    %v2484 = vpack.c.b16 %v2332, %v2330
    %v2485 = vpack.c.b16 %v2333, %v2331
    %v2486 = vpack.c.b16 %v2336, %v2334
    %v2487 = vpack.c.b16 %v2337, %v2335
    %v2488 = vpack.c.b16 %v2340, %v2338
    %v2489 = vpack.c.b16 %v2341, %v2339
    %v2490 = vpack.c.b16 %v2344, %v2342
    %v2491 = vpack.c.b16 %v2345, %v2343
    %v2492 = vpack.c.b16 %v2348, %v2346
    %v2493 = vpack.c.b16 %v2349, %v2347
    %v2494 = vpack.c.b16 %v2352, %v2350
    %v2495 = vpack.c.b16 %v2353, %v2351
    %v2496 = vpack.c.b16 %v2356, %v2354
    %v2497 = vpack.c.b16 %v2357, %v2355
    %v2498 = vpack.c.b16 %v2360, %v2358
    %v2499 = vpack.c.b16 %v2361, %v2359
    %v2500 = vpack.c.b16 %v2364, %v2362
    %v2501 = vpack.c.b16 %v2365, %v2363
    %v2502 = vpack.c.b16 %v2368, %v2366
    %v2503 = vpack.c.b16 %v2369, %v2367
    %v2504 = vpack.c.b16 %v2372, %v2370
    %v2505 = vpack.c.b16 %v2373, %v2371
    %v2506 = vpack.c.b16 %v2376, %v2374
    %v2507 = vpack.c.b16 %v2377, %v2375
    %v2508 = vpack.c.b16 %v2380, %v2378
    %v2509 = vpack.c.b16 %v2381, %v2379
    %v2510 = vpack.c.b16 %v2384, %v2382
    %v2511 = vpack.c.b16 %v2385, %v2383
    %v2512 = vpack.c.b16 %v2386, %v2386
    %v2513 = vpack.c.b16 %v2387, %v2387
    %vm2638 = vcmask 850944
    %v2640 = vsel %vm2638, %v1875, 0
    %vm2642 = vcmask 1043456
    %v2644 = vsel %vm2642, %v2512, 0
    %v2647 = vsel %vm2642, %v2513, 0
    %2649 = vmatprep.subr.bf16.mxu0 %v2389
    %2650 = vmatpush1.bf16.msra.mxu0 %v2388
    %2651 = vmatprep.subr.bf16.mxu0 %v2391
    %2652 = vmatpush1.bf16.msra.mxu0 %v2390
    %2653 = vmatprep.subr.bf16.mxu0 %v2393
    %2654 = vmatpush1.bf16.msra.mxu0 %v2392
    %2655 = vmatprep.subr.bf16.mxu0 %v2395
    %2656 = vmatpush1.bf16.msra.mxu0 %v2394
    %2657 = vmatprep.subr.bf16.mxu0 %v2397
    %2658 = vmatpush1.bf16.msra.mxu0 %v2396
    %2659 = vmatprep.subr.bf16.mxu0 %v2399
    %2660 = vmatpush1.bf16.msra.mxu0 %v2398
    %2661 = vmatprep.subr.bf16.mxu0 %v2401
    %2662 = vmatpush1.bf16.msra.mxu0 %v2400
    %2663 = vmatprep.subr.bf16.mxu0 %v2403
    %2664 = vmatpush1.bf16.msra.mxu0 %v2402
    %2665 = vmatprep.subr.bf16.mxu0 %v2405
    %2666 = vmatpush1.bf16.msra.mxu0 %v2404
    %2667 = vmatprep.subr.bf16.mxu0 %v2407
    %2668 = vmatpush1.bf16.msra.mxu0 %v2406
    %2669 = vmatprep.subr.bf16.mxu0 %v2409
    %2670 = vmatpush1.bf16.msra.mxu0 %v2408
    %2671 = vmatprep.subr.bf16.mxu0 %v2411
    %2672 = vmatpush1.bf16.msra.mxu0 %v2410
    %2673 = vmatprep.subr.bf16.mxu0 %v2413
    %2674 = vmatpush1.bf16.msra.mxu0 %v2412
    %2675 = vmatprep.subr.bf16.mxu0 %v2415
    %2676 = vmatpush1.bf16.msra.mxu0 %v2414
    %2677 = vmatprep.subr.bf16.mxu0 %v2417
    %2678 = vmatpush1.bf16.msra.mxu0 %v2416
    %2679 = vmatprep.subr.bf16.mxu0 %v2419
    %2680 = vmatpush1.bf16.msra.mxu0 %v2418
    %2681 = vmatprep.mubr.bf16.mxu0 %v1869
    %2682 = vmatmul.mubr.bf16.gmra.mrb[0].mxu0 %v1868
    %v2683 = vpop.f32.mrb[0].mxu0
    %v2684 = vadd.f32 %v2006, %v2683
    %v2685 = vpop.f32.mrb[0].mxu0
    %v2686 = vadd.f32 %v2010, %v2685
    %v2687 = vpop.f32.mrb[0].mxu0
    %v2688 = vpop.f32.mrb[0].mxu0
    %2689 = vdwg.mxu0
    %2690 = vmatprep.subr.bf16.mxu0 %v2421
    %2691 = vmatpush1.bf16.msra.mxu0 %v2420
    %2692 = vmatprep.subr.bf16.mxu0 %v2423
    %2693 = vmatpush1.bf16.msra.mxu0 %v2422
    %2694 = vmatprep.subr.bf16.mxu0 %v2425
    %2695 = vmatpush1.bf16.msra.mxu0 %v2424
    %2696 = vmatprep.subr.bf16.mxu0 %v2427
    %2697 = vmatpush1.bf16.msra.mxu0 %v2426
    %2698 = vmatprep.subr.bf16.mxu0 %v2429
    %2699 = vmatpush1.bf16.msra.mxu0 %v2428
    %2700 = vmatprep.subr.bf16.mxu0 %v2431
    %2701 = vmatpush1.bf16.msra.mxu0 %v2430
    %2702 = vmatprep.subr.bf16.mxu0 %v2433
    %2703 = vmatpush1.bf16.msra.mxu0 %v2432
    %2704 = vmatprep.subr.bf16.mxu0 %v2435
    %2705 = vmatpush1.bf16.msra.mxu0 %v2434
    %2706 = vmatprep.subr.bf16.mxu0 %v2437
    %2707 = vmatpush1.bf16.msra.mxu0 %v2436
    %2708 = vmatprep.subr.bf16.mxu0 %v2439
    %2709 = vmatpush1.bf16.msra.mxu0 %v2438
    %2710 = vmatprep.subr.bf16.mxu0 %v2441
    %2711 = vmatpush1.bf16.msra.mxu0 %v2440
    %2712 = vmatprep.subr.bf16.mxu0 %v2443
    %2713 = vmatpush1.bf16.msra.mxu0 %v2442
    %2714 = vmatprep.subr.bf16.mxu0 %v2445
    %2715 = vmatpush1.bf16.msra.mxu0 %v2444
    %2716 = vmatprep.subr.bf16.mxu0 %v2447
    %2717 = vmatpush1.bf16.msra.mxu0 %v2446
    %2718 = vmatprep.subr.bf16.mxu0 %v2449
    %2719 = vmatpush1.bf16.msra.mxu0 %v2448
    %2720 = vmatprep.subr.bf16.mxu0 %v2451
    %2721 = vmatpush1.bf16.msra.mxu0 %v2450
    %2722 = vmatprep.mubr.bf16.mxu0 %v1871
    %2723 = vmatmul.mubr.bf16.gmra.mrb[0].mxu0 %v1870
    %v2724 = vpop.f32.mrb[0].mxu0
    %v2725 = vadd.f32 %v2684, %v2724
    %v2726 = vpop.f32.mrb[0].mxu0
    %v2727 = vadd.f32 %v2686, %v2726
    %v2728 = vpop.f32.mrb[0].mxu0
    %v2729 = vpop.f32.mrb[0].mxu0
    %2730 = vdwg.mxu0
    %2731 = vmatprep.subr.bf16.mxu0 %v2453
    %2732 = vmatpush1.bf16.msra.mxu0 %v2452
    %2733 = vmatprep.subr.bf16.mxu0 %v2455
    %2734 = vmatpush1.bf16.msra.mxu0 %v2454
    %2735 = vmatprep.subr.bf16.mxu0 %v2457
    %2736 = vmatpush1.bf16.msra.mxu0 %v2456
    %2737 = vmatprep.subr.bf16.mxu0 %v2459
    %2738 = vmatpush1.bf16.msra.mxu0 %v2458
    %2739 = vmatprep.subr.bf16.mxu0 %v2461
    %2740 = vmatpush1.bf16.msra.mxu0 %v2460
    %2741 = vmatprep.subr.bf16.mxu0 %v2463
    %2742 = vmatpush1.bf16.msra.mxu0 %v2462
    %2743 = vmatprep.subr.bf16.mxu0 %v2465
    %2744 = vmatpush1.bf16.msra.mxu0 %v2464
    %2745 = vmatprep.subr.bf16.mxu0 %v2467
    %2746 = vmatpush1.bf16.msra.mxu0 %v2466
    %2747 = vmatprep.subr.bf16.mxu0 %v2469
    %2748 = vmatpush1.bf16.msra.mxu0 %v2468
    %2749 = vmatprep.subr.bf16.mxu0 %v2471
    %2750 = vmatpush1.bf16.msra.mxu0 %v2470
    %2751 = vmatprep.subr.bf16.mxu0 %v2473
    %2752 = vmatpush1.bf16.msra.mxu0 %v2472
    %2753 = vmatprep.subr.bf16.mxu0 %v2475
    %2754 = vmatpush1.bf16.msra.mxu0 %v2474
    %2755 = vmatprep.subr.bf16.mxu0 %v2477
    %2756 = vmatpush1.bf16.msra.mxu0 %v2476
    %2757 = vmatprep.subr.bf16.mxu0 %v2479
    %2758 = vmatpush1.bf16.msra.mxu0 %v2478
    %2759 = vmatprep.subr.bf16.mxu0 %v2481
    %2760 = vmatpush1.bf16.msra.mxu0 %v2480
    %2761 = vmatprep.subr.bf16.mxu0 %v2483
    %2762 = vmatpush1.bf16.msra.mxu0 %v2482
    %2763 = vmatprep.mubr.bf16.mxu0 %v1873
    %2764 = vmatmul.mubr.bf16.gmra.mrb[0].mxu0 %v1872
    %v2765 = vpop.f32.mrb[0].mxu0
    %v2766 = vadd.f32 %v2725, %v2765
    %v2767 = vpop.f32.mrb[0].mxu0
    %v2768 = vadd.f32 %v2727, %v2767
    %v2769 = vpop.f32.mrb[0].mxu0
    %v2770 = vpop.f32.mrb[0].mxu0
    %2771 = vdwg.mxu0
    %2772 = vmatprep.subr.bf16.mxu0 %v2485
    %2773 = vmatpush1.bf16.msra.mxu0 %v2484
    %2774 = vmatprep.subr.bf16.mxu0 %v2487
    %2775 = vmatpush1.bf16.msra.mxu0 %v2486
    %2776 = vmatprep.subr.bf16.mxu0 %v2489
    %2777 = vmatpush1.bf16.msra.mxu0 %v2488
    %2778 = vmatprep.subr.bf16.mxu0 %v2491
    %2779 = vmatpush1.bf16.msra.mxu0 %v2490
    %2780 = vmatprep.subr.bf16.mxu0 %v2493
    %2781 = vmatpush1.bf16.msra.mxu0 %v2492
    %2782 = vmatprep.subr.bf16.mxu0 %v2495
    %2783 = vmatpush1.bf16.msra.mxu0 %v2494
    %2784 = vmatprep.subr.bf16.mxu0 %v2497
    %2785 = vmatpush1.bf16.msra.mxu0 %v2496
    %2786 = vmatprep.subr.bf16.mxu0 %v2499
    %2787 = vmatpush1.bf16.msra.mxu0 %v2498
    %2788 = vmatprep.subr.bf16.mxu0 %v2501
    %2789 = vmatpush1.bf16.msra.mxu0 %v2500
    %2790 = vmatprep.subr.bf16.mxu0 %v2503
    %2791 = vmatpush1.bf16.msra.mxu0 %v2502
    %2792 = vmatprep.subr.bf16.mxu0 %v2505
    %2793 = vmatpush1.bf16.msra.mxu0 %v2504
    %2794 = vmatprep.subr.bf16.mxu0 %v2507
    %2795 = vmatpush1.bf16.msra.mxu0 %v2506
    %2796 = vmatprep.subr.bf16.mxu0 %v2509
    %2797 = vmatpush1.bf16.msra.mxu0 %v2508
    %2798 = vmatprep.subr.bf16.mxu0 %v2511
    %2799 = vmatpush1.bf16.msra.mxu0 %v2510
    %2800 = vmatprep.subr.bf16.mxu0 %v2647
    %2801 = vmatpush1.bf16.msra.mxu0 %v2644
    %2802 = vmatprep.subr.bf16.mxu0 0
    %2803 = vmatpush1.bf16.msra.mxu0 0
    %2804 = vmatprep.mubr.bf16.mxu0 %v2640
    %2805 = vmatmul.mubr.bf16.gmra.mrb[0].mxu0 %v1874
    %v2806 = vpop.f32.mrb[0].mxu0
    %v2807 = vadd.f32 %v2766, %v2806
    %v2808 = vpop.f32.mrb[0].mxu0
    %v2809 = vadd.f32 %v2768, %v2808
    %v2810 = vpop.f32.mrb[0].mxu0
    %v2811 = vpop.f32.mrb[0].mxu0
    %2812 = vdwg.mxu0
    %v2813 = vmax.f32 %v2807, 0.0
    %v2814 = vmax.f32 %v2809, 0.0
    %v2815 = vpack.c.bf16 %v2813, %v2813
    %v2816 = vpack.c.bf16 %v2814, %v2814
    %v2817 = vld [vmem:[%s7] sm:$0xf]
    %v2818 = vld [vmem:[%s7 + $0x4] sm:$0xf]
    %v2819 = vld [vmem:[%s7 + $0x8] sm:$0xf]
    %v2820 = vld [vmem:[%s7 + $0xc] sm:$0xf]
    %v2821 = vld [vmem:[%s7 + $0x10] sm:$0xf]
    %v2822 = vld [vmem:[%s7 + $0x14] sm:$0xf]
    %v2823 = vld [vmem:[%s7 + $0x18] sm:$0xf]
    %v2824 = vld [vmem:[%s7 + $0x1c] sm:$0xf]
    %v2825 = vld [vmem:[%s7 + $0x20] sm:$0xf]
    %v2826 = vld [vmem:[%s7 + $0x24] sm:$0xf]
    %v2827 = vld [vmem:[%s7 + $0x28] sm:$0xf]
    %v2828 = vld [vmem:[%s7 + $0x2c] sm:$0xf]
    %v2829 = vld [vmem:[%s7 + $0x30] sm:$0xf]
    %v2830 = vld [vmem:[%s7 + $0x34] sm:$0xf]
    %v2831 = vld [vmem:[%s7 + $0x38] sm:$0xf]
    %v2832 = vld [vmem:[%s7 + $0x3c] sm:$0xf]
    %v2833 = vld [vmem:[%s7 + $0x40] sm:$0xf]
    %v2834 = vld [vmem:[%s7 + $0x44] sm:$0xf]
    %v2835 = vld [vmem:[%s7 + $0x48] sm:$0x7]
    %v2836 = vld [vmem:[%s8] sm:$0x1]
    %v2838 = vlaneseq
    %v2839 = vshrl.u32 %v2838, 7
    %v2840 = vsub.s32 0, %v2839
    %v2841 = vrot.slane %v2836, %v2840
    %v2862 = vunpack.c.l.b16 %v2817
    %v2863 = vunpack.c.l.b16 %v2818
    %v2864 = vunpack.c.l.b16 %v2819
    %v2865 = vunpack.c.l.b16 %v2820
    %v2866 = vunpack.c.l.b16 %v2821
    %v2867 = vunpack.c.l.b16 %v2822
    %v2868 = vunpack.c.l.b16 %v2823
    %v2869 = vunpack.c.l.b16 %v2824
    %v2870 = vunpack.c.l.b16 %v2825
    %v2871 = vunpack.c.l.b16 %v2826
    %v2872 = vunpack.c.l.b16 %v2827
    %v2873 = vunpack.c.l.b16 %v2828
    %v2874 = vunpack.c.l.b16 %v2829
    %v2875 = vunpack.c.l.b16 %v2830
    %v2876 = vunpack.c.l.b16 %v2831
    %v2877 = vunpack.c.l.b16 %v2832
    %v2878 = vunpack.c.l.b16 %v2833
    %v2879 = vunpack.c.l.b16 %v2834
    %v2880 = vunpack.c.l.b16 %v2835
    %v2881 = vpack.c.b16 %v2863, %v2862
    %v2882 = vpack.c.b16 %v2865, %v2864
    %v2883 = vpack.c.b16 %v2867, %v2866
    %v2884 = vpack.c.b16 %v2869, %v2868
    %v2885 = vpack.c.b16 %v2871, %v2870
    %v2886 = vpack.c.b16 %v2873, %v2872
    %v2887 = vpack.c.b16 %v2875, %v2874
    %v2888 = vpack.c.b16 %v2877, %v2876
    %v2889 = vpack.c.b16 %v2879, %v2878
    %v2890 = vpack.c.b16 %v2880, %v2880
    %vm2900 = vcmask 179200
    %v2902 = vsel %vm2900, %v2816, 0
    %vm2904 = vcmask 1042432
    %v2906 = vsel %vm2904, %v2890, 0
    %2908 = vmatprep.subr.bf16.mxu0 0
    %2909 = vmatpush1.bf16.msra.mxu0 %v2881
    %2910 = vmatprep.subr.bf16.mxu0 0
    %2911 = vmatpush1.bf16.msra.mxu0 %v2882
    %2912 = vmatprep.subr.bf16.mxu0 0
    %2913 = vmatpush1.bf16.msra.mxu0 %v2883
    %2914 = vmatprep.subr.bf16.mxu0 0
    %2915 = vmatpush1.bf16.msra.mxu0 %v2884
    %2916 = vmatprep.subr.bf16.mxu0 0
    %2917 = vmatpush1.bf16.msra.mxu0 %v2885
    %2918 = vmatprep.subr.bf16.mxu0 0
    %2919 = vmatpush1.bf16.msra.mxu0 %v2886
    %2920 = vmatprep.subr.bf16.mxu0 0
    %2921 = vmatpush1.bf16.msra.mxu0 %v2887
    %2922 = vmatprep.subr.bf16.mxu0 0
    %2923 = vmatpush1.bf16.msra.mxu0 %v2888
    %2924 = vmatprep.subr.bf16.mxu0 0
    %2925 = vmatpush1.bf16.msra.mxu0 %v2889
    %2926 = vmatprep.subr.bf16.mxu0 0
    %2927 = vmatpush1.bf16.msra.mxu0 %v2906
    %2928 = vmatprep.subr.bf16.mxu0 0
    %2929 = vmatpush1.bf16.msra.mxu0 0
    %2930 = vmatprep.subr.bf16.mxu0 0
    %2931 = vmatpush1.bf16.msra.mxu0 0
    %2932 = vmatprep.subr.bf16.mxu0 0
    %2933 = vmatpush1.bf16.msra.mxu0 0
    %2934 = vmatprep.subr.bf16.mxu0 0
    %2935 = vmatpush1.bf16.msra.mxu0 0
    %2936 = vmatprep.subr.bf16.mxu0 0
    %2937 = vmatpush1.bf16.msra.mxu0 0
    %2938 = vmatprep.subr.bf16.mxu0 0
    %2939 = vmatpush1.bf16.msra.mxu0 0
    %2940 = vmatprep.mubr.bf16.mxu0 %v2902
    %2941 = vmatmul.mubr.bf16.gmra.mrb[0].mxu0 %v2815
    %v2942 = vpop.f32.mrb[0].mxu0
    %v2943 = vadd.f32 %v2841, %v2942
    %v2944 = vpop.f32.mrb[0].mxu0
    %v2945 = vpop.f32.mrb[0].mxu0
    %v2946 = vpop.f32.mrb[0].mxu0
    %2947 = vdwg.mxu0
    %v2948 = vmax.f32 %v2943, 0.0
    %vm2949 = vcmask 9216
    %v2950 = vsel %vm2949, %v2948, -inf
    %2951 = vmax.xlane.f32.xlu0 %v2950
    %v2952 = vpop.xlane.xlu0 %2951
    %v2953 = vsub.f32 %v2948, %v2952
    %v2954 = vmul.f32 %v2953, 1.442695
    %v2955 = vpow.pop %v2954
    %v2956 = vsel %vm2949, %v2955, 0.0
    %2957 = vadd.xlane.f32.xlu0 %v2956
    %v2958 = vpop.xlane.xlu0 %2957
    %v2959 = vlog2.pop %v2958
    %v2960 = vmul.f32 %v2959, 0.6931472
    %v2961 = vadd.f32 %v2952, %v2960
    %v2962 = vsub.f32 %v2948, %v2961
    %2963 = vst.msk [vmem:[#allocation2] sm:$0x3] %vm2949, %v2962
    // Predicated region
    $region38: #{custom_net_forward.5} parent=1 // pred_check
      _
    $region39: #{custom_net_forward.5} parent=1 // pred_check_branch
      %2965 = sbr.rel (0) target = $region41
    $region40: #{custom_net_forward.5} parent=1 // pred_region
      %s2967 = ssub.s32 32, 32
      %2968 = vsyncadd [#allocation3], %s2967
      %s2970 = sshll.u32 [#allocation2], 4
      %s2971 = int_to_ptr.vmem [resolvable:$true] %s2970
      %2973 = dma.vmem_to_hbm [thread:$0]  %s2971, 32, %s9, [#allocation3]
    $region41: #{custom_net_forward.5} parent=1 // pred_fallthru
      _
    // Predicated region
    $region42: #{custom_net_forward.5} parent=1 // pred_check
      _
    $region43: #{custom_net_forward.5} parent=1 // pred_check_branch
      %2975 = sbr.rel (0) target = $region45
    $region44: #{custom_net_forward.5} parent=1 // pred_region
      %2976 = dma.done [#allocation3], 32
    $region45: #{custom_net_forward.5} parent=1 // pred_fallthru
      _
    %2977 = vsyncpa [#allocation3], 1

</llo_original>
